<compile_context>
chip_gen: v5e
topology: v5e:2x2
jax: 0.10.0
libtpu: 0.0.40
codegen_flags: <defaults>
</compile_context>

<pallas_src>
import functools

import jax
import jax.numpy as jnp
from jax import lax
from jax.experimental import pallas as pl
from jax.experimental.pallas import tpu as pltpu

# Hyper-parameters from Ipfl.__init__ defaults / forward constants
SCALE = 10.0
EPS = 1e-5
K_INTRA = 4          # sorted1[4:]
K_INTER = 6          # sorted2[6:]
MARGIN_INTRA = 40.0
MARGIN_INTER = 6.0

LANE = 128
TM = 128             # queries per grid step = lane width of every block
                     # (v6e/v5e could raise to 256 after checking the scoped VMEM limit)


def _round_up(x, m):
    return (x + m - 1) // m * m


def _ipfl_kernel(fq_ref, fk_ref, sqk_ref, camk_ref, sqq_ref, camq_ref, out_ref,
                 *, n_valid):
    """All Npad (padded) keys vs one lane-block of TM query columns.

    fq_ref  : (Dpad, TM)  bf16  query features, pre-transposed (queries on lanes)
    fk_ref  : (Npad, Dpad) bf16 key features, pre-scaled by -2   (grid-invariant)
    sqk_ref : (Npad, 1)   f32   ||f_k||^2 + eps                   (grid-invariant)
    camk_ref: (Npad, 1)   i32   key camera ids                    (grid-invariant)
    sqq_ref : (1, TM)     f32   ||f_q||^2 for this block
    camq_ref: (1, TM)     i32   query camera ids for this block
    out_ref : (1, TM)     f32   per-query loss (lane-dense store)
    """
    tm = fq_ref.shape[1]
    npad = fk_ref.shape[0]
    low_bits = (npad - 1).bit_length()              # bits needed for a key row id
    hi_mask = jnp.int32(~((1 << low_bits) - 1))

    # -2 * f_k . f_q on the MXU: standard (M,K)x(K,N), bf16 inputs, f32 accumulation.
    gram_m2 = lax.dot_general(
        fk_ref[...], fq_ref[...],
        dimension_numbers=(((1,), (0,)), ((), ())),
        preferred_element_type=jnp.float32)          # (Npad, TM)

    key_ids = lax.broadcasted_iota(jnp.int32, (npad, tm), 0)          # key row id
    q_ids = lax.broadcasted_iota(jnp.int32, (1, tm), 1) + pl.program_id(0) * tm

    d2 = sqq_ref[...] + sqk_ref[...] + gram_m2       # eps already folded into sqk
    # d2[i,i] is mathematically exactly eps; pin it so the bf16 Gram cannot blow up
    # the tiny self-distance through catastrophic cancellation.
    d2 = jnp.where(key_ids == q_ids, EPS, d2)
    dist = jnp.sqrt(jnp.maximum(d2, 1e-12))
    e = jnp.exp(-SCALE * dist)                       # single exp shared by x and y

    # Packed sort key: high bits = f32 bit pattern of e (order-preserving for e>=0),
    # low bits = key row id -> max(key) is an index-carrying argmax whose truncated
    # value feeds x directly; keys are unique per column so `key == max` removes
    # exactly one entry per step.
    packed = (pltpu.bitcast(e, jnp.int32) & hi_mask) | key_ids
    packed = jnp.where(key_ids < n_valid, packed, jnp.int32(-1))      # drop pad keys

    same_cam = camk_ref[...] == camq_ref[...]                         # (Npad, TM)
    key_intra = jnp.where(same_cam, packed, jnp.int32(-1))
    key_inter = jnp.where(same_cam, jnp.int32(-1), packed)

    def branch_loss(key, k_drop, margin):
        mk = jnp.max(key, axis=0, keepdims=True)                      # (1, TM)
        # x = log(max valid e) = -scale * min valid dist (reuses the first reduce).
        x = jnp.where(mk >= 0,
                      jnp.log(pltpu.bitcast(mk & hi_mask, jnp.float32)),
                      -jnp.inf)
        # Drop the k largest e (== k smallest distances): one select + one reduce/step.
        for step in range(k_drop):
            key = jnp.where(key == mk, jnp.int32(-1), key)
            if step + 1 < k_drop:
                mk = jnp.max(key, axis=0, keepdims=True)
        # y = log(sum of remaining valid e); dropped / invalid contribute exactly 0.
        y = jnp.log(jnp.sum(jnp.where(key >= 0, e, 0.0), axis=0, keepdims=True))
        return jnp.maximum(-x + y + margin, 0.0)                      # (1, TM)

    li = branch_loss(key_intra, K_INTRA, MARGIN_INTRA)
    le = branch_loss(key_inter, K_INTER, MARGIN_INTER)
    out_ref[...] = jnp.where(q_ids < n_valid, li + 0.5 * le, 0.0)     # pad queries -> 0


@functools.partial(jax.jit, static_argnames=("single_buffer_constants",))
def _ipfl_impl(feature, camid, *, single_buffer_constants=True):
    n, d = feature.shape
    npad = _round_up(n, LANE)
    dpad = _round_up(d, LANE)
    tm = TM if npad >= TM else npad
    grid = npad // tm
    # TODO(synk): for N <= 128 on v7x a sublane-tiled TM=64 variant would use both
    #             TensorCores; the lane-dense layout here needs TM to be a multiple
    #             of 128, so tiny batches run on one core.

    f_pad = jnp.zeros((npad, dpad), jnp.float32).at[:n, :d].set(
        feature.astype(jnp.float32))
    fk = (-2.0 * f_pad).astype(jnp.bfloat16)              # keys, -2 folded in, bf16
    fq_t = jnp.transpose(f_pad).astype(jnp.bfloat16)       # (Dpad, Npad) query side
    sq = jnp.sum(f_pad * f_pad, axis=1)                    # f32 norms (kept in f32)
    sqk_eps = (sq + EPS).reshape(npad, 1)
    sqq = sq.reshape(1, npad)
    cam_pad = jnp.full((npad,), -1, jnp.int32).at[:n].set(camid.astype(jnp.int32))
    camk = cam_pad.reshape(npad, 1)
    camq = cam_pad.reshape(1, npad)

    # Grid-invariant operands: single-buffer if supported (halves their VMEM footprint).
    const_kw = dict(pipeline_mode=pl.Buffered(1)) if single_buffer_constants else {}

    # VMEM plan: constants + double-buffered per-step blocks + ~16 live (Npad,TM) f32
    # intermediates; keep the limit >= the default scoped limit and <= physical VMEM.
    const_bytes = npad * dpad * 2 + npad * 8
    block_bytes = 2 * (dpad * tm * 2 + 3 * tm * 4)
    live_bytes = 16 * npad * tm * 4
    vmem_limit = int(min(max(2 * (2 * const_bytes + block_bytes + live_bytes),
                             32 * 1024 * 1024),
                         64 * 1024 * 1024))

    row_loss = pl.pallas_call(
        functools.partial(_ipfl_kernel, n_valid=n),
        out_shape=jax.ShapeDtypeStruct((1, npad), jnp.float32),
        grid=(grid,),
        in_specs=[
            pl.BlockSpec((dpad, tm), lambda i: (0, i)),              # query block
            pl.BlockSpec((npad, dpad), lambda i: (0, 0), **const_kw),  # keys (resident)
            pl.BlockSpec((npad, 1), lambda i: (0, 0), **const_kw),     # key ||.||^2+eps
            pl.BlockSpec((npad, 1), lambda i: (0, 0), **const_kw),     # key cam ids
            pl.BlockSpec((1, tm), lambda i: (0, i)),                  # query ||.||^2
            pl.BlockSpec((1, tm), lambda i: (0, i)),                  # query cam ids
        ],
        out_specs=pl.BlockSpec((1, tm), lambda i: (0, i)),            # lane-dense out
        compiler_params=pltpu.CompilerParams(
            dimension_semantics=("parallel",),
            vmem_limit_bytes=vmem_limit),
    )(fq_t, fk, sqk_eps, camk, sqq, camq)

    return jnp.sum(row_loss) / n                     # divide by the ORIGINAL N


def ipfl_loss(feature, camid):
    """feature: (N, D) float, camid: (N,) int. Returns scalar loss (float32)."""
    # pl.Buffered(1) single-buffers the grid-invariant operands; fall back to default
    # double buffering if this Pallas/Mosaic build rejects buffer_count=1.
    try:
        return jax.block_until_ready(
            _ipfl_impl(feature, camid, single_buffer_constants=True))
    except Exception:   # pragma: no cover - depends on jax/mosaic version
        return jax.block_until_ready(
            _ipfl_impl(feature, camid, single_buffer_constants=False))


def ipfl_reference(feature, camid):
    """Pure-JAX reference mirroring the PyTorch forward (eager, sort-based)."""
    n = feature.shape[0]
    sq = jnp.sum(feature * feature, axis=1, keepdims=True)
    gram = jnp.matmul(feature, feature.T, precision=jax.lax.Precision.HIGHEST)
    d2 = sq + sq.T + EPS - 2.0 * gram
    dist = jnp.sqrt(jnp.clip(d2, 1e-12, None))
    mask = camid[:, None] == camid[None, :]
    loss_intra = jnp.float32(0.0)
    loss_inter = jnp.float32(0.0)
    for i in range(n):
        s_same = jnp.sort(jnp.where(mask[i], dist[i], jnp.inf))
        s_diff = jnp.sort(jnp.where(~mask[i], dist[i], jnp.inf))
        x_intra = jnp.log(jnp.exp(-SCALE * s_same[0]))
        y_intra = jnp.log(jnp.sum(jnp.exp(-SCALE * s_same[K_INTRA:])))
        x_inter = jnp.log(jnp.exp(-SCALE * s_diff[0]))
        y_inter = jnp.log(jnp.sum(jnp.exp(-SCALE * s_diff[K_INTER:])))
        loss_intra = loss_intra + jnp.maximum(-x_intra + y_intra + MARGIN_INTRA, 0.0)
        loss_inter = loss_inter + jnp.maximum(-x_inter + y_inter + MARGIN_INTER, 0.0)
    return (loss_intra + 0.5 * loss_inter) / n


if __name__ == "__main__":
    key = jax.random.PRNGKey(0)
    n, d = 16, 32                               # 16 samples, 32-dim features
    feature = jax.random.normal(key, (n, d), dtype=jnp.float32)
    feature = feature / jnp.linalg.norm(feature, axis=1, keepdims=True)
    camid = jnp.arange(n, dtype=jnp.int32) % 2  # 2 cameras, 8 samples each
    # (each row has 8 same-cam and 8 diff-cam entries, so sorted1[4:] / sorted2[6:]
    #  are non-empty, matching the regime the PyTorch loss was written for)

    out = ipfl_loss(feature, camid)
    jax.block_until_ready(out)

    ref = ipfl_reference(feature, camid)
    assert abs(float(out) - float(ref)) <= 5e-3 * max(1.0, abs(float(ref))), (
        f"mismatch: kernel={float(out)} ref={float(ref)}")

    print("KERNEL_OK")
</pallas_src>

<mosaic_0001>
module attributes {stable_mosaic.version = 11 : i64} {
  func.func @_ipfl_kernel(%arg0: i32, %arg1: memref<128x128xbf16, #tpu.memory_space<vmem>>, %arg2: memref<128x128xbf16, #tpu.memory_space<vmem>>, %arg3: memref<128x1xf32, #tpu.memory_space<vmem>>, %arg4: memref<128x1xi32, #tpu.memory_space<vmem>>, %arg5: memref<1x128xf32, #tpu.memory_space<vmem>>, %arg6: memref<1x128xi32, #tpu.memory_space<vmem>>, %arg7: memref<1x128xf32, #tpu.memory_space<vmem>>) attributes {dimension_semantics = [#tpu.dimension_semantics<parallel>], iteration_bounds = array<i64: 1>, scalar_prefetch = 0 : i64, scratch_operands = 0 : i64, tpu.core_type = #tpu.core_type<tc>, window_params = [{transform_indices = @transform_0, window_bounds = array<i64: 128, 128>}, {pipeline_mode = #tpu.pipeline_mode<synchronous>, transform_indices = @transform_1, window_bounds = array<i64: 128, 128>}, {pipeline_mode = #tpu.pipeline_mode<synchronous>, transform_indices = @transform_2, window_bounds = array<i64: 128, 1>}, {pipeline_mode = #tpu.pipeline_mode<synchronous>, transform_indices = @transform_3, window_bounds = array<i64: 128, 1>}, {transform_indices = @transform_4, window_bounds = array<i64: 1, 128>}, {transform_indices = @transform_5, window_bounds = array<i64: 1, 128>}, {transform_indices = @transform_6, window_bounds = array<i64: 1, 128>}]} {
    %c0 = arith.constant 0 : index
    %c0_0 = arith.constant 0 : index
    %0 = vector.load %arg2[%c0, %c0_0] : memref<128x128xbf16, #tpu.memory_space<vmem>>, vector<128x128xbf16>
    %c0_1 = arith.constant 0 : index
    %c0_2 = arith.constant 0 : index
    %1 = vector.load %arg1[%c0_1, %c0_2] : memref<128x128xbf16, #tpu.memory_space<vmem>>, vector<128x128xbf16>
    %cst = arith.constant dense<0.000000e+00> : vector<128x128xf32>
    %2 = tpu.matmul %0, %1, %cst {dimension_numbers = #tpu.dot_dimension_numbers<[1], [0], [0], [1], [0, 0, 1, 1], [], []>} : vector<128x128xbf16>, vector<128x128xbf16>, vector<128x128xf32> -> vector<128x128xf32>
    %3 = tpu.iota {dimensions = array<i32: 0>} : vector<128x128xi32>
    %4 = tpu.iota {dimensions = array<i32: 1>} : vector<1x128xi32>
    %c128_i32 = arith.constant 128 : i32
    %5 = arith.muli %arg0, %c128_i32 : i32
    %6 = vector.broadcast %5 : i32 to vector<1x128xi32>
    %7 = arith.addi %4, %6 : vector<1x128xi32>
    %c0_3 = arith.constant 0 : index
    %c0_4 = arith.constant 0 : index
    %8 = vector.load %arg5[%c0_3, %c0_4] : memref<1x128xf32, #tpu.memory_space<vmem>>, vector<1x128xf32>
    %c0_5 = arith.constant 0 : index
    %c0_6 = arith.constant 0 : index
    %9 = vector.load %arg3[%c0_5, %c0_6] : memref<128x1xf32, #tpu.memory_space<vmem>>, vector<128x1xf32>
    %10 = vector.broadcast %8 : vector<1x128xf32> to vector<128x128xf32>
    %11 = vector.broadcast %9 : vector<128x1xf32> to vector<128x128xf32>
    %12 = arith.addf %10, %11 : vector<128x128xf32>
    %13 = arith.addf %12, %2 : vector<128x128xf32>
    %14 = vector.broadcast %7 : vector<1x128xi32> to vector<128x128xi32>
    %15 = arith.cmpi eq, %3, %14 : vector<128x128xi32>
    %cst_7 = arith.constant 9.99999974E-6 : f32
    %16 = vector.broadcast %cst_7 : f32 to vector<128x128xf32>
    %17 = arith.select %15, %16, %13 : vector<128x128xi1>, vector<128x128xf32>
    %cst_8 = arith.constant 9.99999996E-13 : f32
    %18 = vector.broadcast %cst_8 : f32 to vector<128x128xf32>
    %19 = arith.maximumf %17, %18 : vector<128x128xf32>
    %20 = math.sqrt %19 : vector<128x128xf32>
    %cst_9 = arith.constant -1.000000e+01 : f32
    %21 = vector.broadcast %cst_9 : f32 to vector<128x128xf32>
    %22 = arith.mulf %21, %20 : vector<128x128xf32>
    %23 = math.exp %22 : vector<128x128xf32>
    %24 = tpu.bitcast %23 : vector<128x128xf32> -> vector<128x128xi32>
    %c-128_i32 = arith.constant -128 : i32
    %25 = vector.broadcast %c-128_i32 : i32 to vector<128x128xi32>
    %26 = arith.andi %24, %25 : vector<128x128xi32>
    %27 = arith.ori %26, %3 : vector<128x128xi32>
    %c16_i32 = arith.constant 16 : i32
    %28 = vector.broadcast %c16_i32 : i32 to vector<128x128xi32>
    %29 = arith.cmpi slt, %3, %28 : vector<128x128xi32>
    %c-1_i32 = arith.constant -1 : i32
    %30 = vector.broadcast %c-1_i32 : i32 to vector<128x128xi32>
    %31 = arith.select %29, %27, %30 : vector<128x128xi1>, vector<128x128xi32>
    %c0_10 = arith.constant 0 : index
    %c0_11 = arith.constant 0 : index
    %32 = vector.load %arg4[%c0_10, %c0_11] : memref<128x1xi32, #tpu.memory_space<vmem>>, vector<128x1xi32>
    %c0_12 = arith.constant 0 : index
    %c0_13 = arith.constant 0 : index
    %33 = vector.load %arg6[%c0_12, %c0_13] : memref<1x128xi32, #tpu.memory_space<vmem>>, vector<1x128xi32>
    %34 = vector.broadcast %32 : vector<128x1xi32> to vector<128x128xi32>
    %35 = vector.broadcast %33 : vector<1x128xi32> to vector<128x128xi32>
    %36 = arith.cmpi eq, %34, %35 : vector<128x128xi32>
    %c-1_i32_14 = arith.constant -1 : i32
    %37 = vector.broadcast %c-1_i32_14 : i32 to vector<128x128xi32>
    %38 = arith.select %36, %31, %37 : vector<128x128xi1>, vector<128x128xi32>
    %c-1_i32_15 = arith.constant -1 : i32
    %39 = vector.broadcast %c-1_i32_15 : i32 to vector<128x128xi32>
    %40 = arith.select %36, %39, %31 : vector<128x128xi1>, vector<128x128xi32>
    %cst_16 = arith.constant dense<-2147483648> : vector<128xi32>
    %41 = vector.multi_reduction <maxsi>, %38, %cst_16 [0] : vector<128x128xi32> to vector<128xi32>
    %42 = vector.shape_cast %41 : vector<128xi32> to vector<1x128xi32>
    %c0_i32 = arith.constant 0 : i32
    %43 = vector.broadcast %c0_i32 : i32 to vector<1x128xi32>
    %44 = arith.cmpi sge, %42, %43 : vector<1x128xi32>
    %c-128_i32_17 = arith.constant -128 : i32
    %45 = vector.broadcast %c-128_i32_17 : i32 to vector<1x128xi32>
    %46 = arith.andi %42, %45 : vector<1x128xi32>
    %47 = tpu.bitcast %46 : vector<1x128xi32> -> vector<1x128xf32>
    %48 = math.log %47 : vector<1x128xf32>
    %cst_18 = arith.constant 0xFF800000 : f32
    %49 = vector.broadcast %cst_18 : f32 to vector<1x128xf32>
    %50 = arith.select %44, %48, %49 : vector<1x128xi1>, vector<1x128xf32>
    %51 = vector.broadcast %42 : vector<1x128xi32> to vector<128x128xi32>
    %52 = arith.cmpi eq, %38, %51 : vector<128x128xi32>
    %c-1_i32_19 = arith.constant -1 : i32
    %53 = vector.broadcast %c-1_i32_19 : i32 to vector<128x128xi32>
    %54 = arith.select %52, %53, %38 : vector<128x128xi1>, vector<128x128xi32>
    %cst_20 = arith.constant dense<-2147483648> : vector<128xi32>
    %55 = vector.multi_reduction <maxsi>, %54, %cst_20 [0] : vector<128x128xi32> to vector<128xi32>
    %56 = vector.shape_cast %55 : vector<128xi32> to vector<1x128xi32>
    %57 = vector.broadcast %56 : vector<1x128xi32> to vector<128x128xi32>
    %58 = arith.cmpi eq, %54, %57 : vector<128x128xi32>
    %c-1_i32_21 = arith.constant -1 : i32
    %59 = vector.broadcast %c-1_i32_21 : i32 to vector<128x128xi32>
    %60 = arith.select %58, %59, %54 : vector<128x128xi1>, vector<128x128xi32>
    %cst_22 = arith.constant dense<-2147483648> : vector<128xi32>
    %61 = vector.multi_reduction <maxsi>, %60, %cst_22 [0] : vector<128x128xi32> to vector<128xi32>
    %62 = vector.shape_cast %61 : vector<128xi32> to vector<1x128xi32>
    %63 = vector.broadcast %62 : vector<1x128xi32> to vector<128x128xi32>
    %64 = arith.cmpi eq, %60, %63 : vector<128x128xi32>
    %c-1_i32_23 = arith.constant -1 : i32
    %65 = vector.broadcast %c-1_i32_23 : i32 to vector<128x128xi32>
    %66 = arith.select %64, %65, %60 : vector<128x128xi1>, vector<128x128xi32>
    %cst_24 = arith.constant dense<-2147483648> : vector<128xi32>
    %67 = vector.multi_reduction <maxsi>, %66, %cst_24 [0] : vector<128x128xi32> to vector<128xi32>
    %68 = vector.shape_cast %67 : vector<128xi32> to vector<1x128xi32>
    %69 = vector.broadcast %68 : vector<1x128xi32> to vector<128x128xi32>
    %70 = arith.cmpi eq, %66, %69 : vector<128x128xi32>
    %c-1_i32_25 = arith.constant -1 : i32
    %71 = vector.broadcast %c-1_i32_25 : i32 to vector<128x128xi32>
    %72 = arith.select %70, %71, %66 : vector<128x128xi1>, vector<128x128xi32>
    %c0_i32_26 = arith.constant 0 : i32
    %73 = vector.broadcast %c0_i32_26 : i32 to vector<128x128xi32>
    %74 = arith.cmpi sge, %72, %73 : vector<128x128xi32>
    %cst_27 = arith.constant 0.000000e+00 : f32
    %75 = vector.broadcast %cst_27 : f32 to vector<128x128xf32>
    %76 = arith.select %74, %23, %75 : vector<128x128xi1>, vector<128x128xf32>
    %cst_28 = arith.constant dense<0.000000e+00> : vector<128xf32>
    %77 = vector.multi_reduction <add>, %76, %cst_28 [0] : vector<128x128xf32> to vector<128xf32>
    %78 = vector.shape_cast %77 : vector<128xf32> to vector<1x128xf32>
    %79 = math.log %78 : vector<1x128xf32>
    %cst_29 = arith.constant 0.000000e+00 : f32
    %80 = vector.broadcast %cst_29 : f32 to vector<1x128xf32>
    %81 = arith.subf %80, %50 : vector<1x128xf32>
    %82 = arith.addf %81, %79 : vector<1x128xf32>
    %cst_30 = arith.constant 4.000000e+01 : f32
    %83 = vector.broadcast %cst_30 : f32 to vector<1x128xf32>
    %84 = arith.addf %82, %83 : vector<1x128xf32>
    %cst_31 = arith.constant 0.000000e+00 : f32
    %85 = vector.broadcast %cst_31 : f32 to vector<1x128xf32>
    %86 = arith.maximumf %84, %85 : vector<1x128xf32>
    %cst_32 = arith.constant dense<-2147483648> : vector<128xi32>
    %87 = vector.multi_reduction <maxsi>, %40, %cst_32 [0] : vector<128x128xi32> to vector<128xi32>
    %88 = vector.shape_cast %87 : vector<128xi32> to vector<1x128xi32>
    %c0_i32_33 = arith.constant 0 : i32
    %89 = vector.broadcast %c0_i32_33 : i32 to vector<1x128xi32>
    %90 = arith.cmpi sge, %88, %89 : vector<1x128xi32>
    %c-128_i32_34 = arith.constant -128 : i32
    %91 = vector.broadcast %c-128_i32_34 : i32 to vector<1x128xi32>
    %92 = arith.andi %88, %91 : vector<1x128xi32>
    %93 = tpu.bitcast %92 : vector<1x128xi32> -> vector<1x128xf32>
    %94 = math.log %93 : vector<1x128xf32>
    %cst_35 = arith.constant 0xFF800000 : f32
    %95 = vector.broadcast %cst_35 : f32 to vector<1x128xf32>
    %96 = arith.select %90, %94, %95 : vector<1x128xi1>, vector<1x128xf32>
    %97 = vector.broadcast %88 : vector<1x128xi32> to vector<128x128xi32>
    %98 = arith.cmpi eq, %40, %97 : vector<128x128xi32>
    %c-1_i32_36 = arith.constant -1 : i32
    %99 = vector.broadcast %c-1_i32_36 : i32 to vector<128x128xi32>
    %100 = arith.select %98, %99, %40 : vector<128x128xi1>, vector<128x128xi32>
    %cst_37 = arith.constant dense<-2147483648> : vector<128xi32>
    %101 = vector.multi_reduction <maxsi>, %100, %cst_37 [0] : vector<128x128xi32> to vector<128xi32>
    %102 = vector.shape_cast %101 : vector<128xi32> to vector<1x128xi32>
    %103 = vector.broadcast %102 : vector<1x128xi32> to vector<128x128xi32>
    %104 = arith.cmpi eq, %100, %103 : vector<128x128xi32>
    %c-1_i32_38 = arith.constant -1 : i32
    %105 = vector.broadcast %c-1_i32_38 : i32 to vector<128x128xi32>
    %106 = arith.select %104, %105, %100 : vector<128x128xi1>, vector<128x128xi32>
    %cst_39 = arith.constant dense<-2147483648> : vector<128xi32>
    %107 = vector.multi_reduction <maxsi>, %106, %cst_39 [0] : vector<128x128xi32> to vector<128xi32>
    %108 = vector.shape_cast %107 : vector<128xi32> to vector<1x128xi32>
    %109 = vector.broadcast %108 : vector<1x128xi32> to vector<128x128xi32>
    %110 = arith.cmpi eq, %106, %109 : vector<128x128xi32>
    %c-1_i32_40 = arith.constant -1 : i32
    %111 = vector.broadcast %c-1_i32_40 : i32 to vector<128x128xi32>
    %112 = arith.select %110, %111, %106 : vector<128x128xi1>, vector<128x128xi32>
    %cst_41 = arith.constant dense<-2147483648> : vector<128xi32>
    %113 = vector.multi_reduction <maxsi>, %112, %cst_41 [0] : vector<128x128xi32> to vector<128xi32>
    %114 = vector.shape_cast %113 : vector<128xi32> to vector<1x128xi32>
    %115 = vector.broadcast %114 : vector<1x128xi32> to vector<128x128xi32>
    %116 = arith.cmpi eq, %112, %115 : vector<128x128xi32>
    %c-1_i32_42 = arith.constant -1 : i32
    %117 = vector.broadcast %c-1_i32_42 : i32 to vector<128x128xi32>
    %118 = arith.select %116, %117, %112 : vector<128x128xi1>, vector<128x128xi32>
    %cst_43 = arith.constant dense<-2147483648> : vector<128xi32>
    %119 = vector.multi_reduction <maxsi>, %118, %cst_43 [0] : vector<128x128xi32> to vector<128xi32>
    %120 = vector.shape_cast %119 : vector<128xi32> to vector<1x128xi32>
    %121 = vector.broadcast %120 : vector<1x128xi32> to vector<128x128xi32>
    %122 = arith.cmpi eq, %118, %121 : vector<128x128xi32>
    %c-1_i32_44 = arith.constant -1 : i32
    %123 = vector.broadcast %c-1_i32_44 : i32 to vector<128x128xi32>
    %124 = arith.select %122, %123, %118 : vector<128x128xi1>, vector<128x128xi32>
    %cst_45 = arith.constant dense<-2147483648> : vector<128xi32>
    %125 = vector.multi_reduction <maxsi>, %124, %cst_45 [0] : vector<128x128xi32> to vector<128xi32>
    %126 = vector.shape_cast %125 : vector<128xi32> to vector<1x128xi32>
    %127 = vector.broadcast %126 : vector<1x128xi32> to vector<128x128xi32>
    %128 = arith.cmpi eq, %124, %127 : vector<128x128xi32>
    %c-1_i32_46 = arith.constant -1 : i32
    %129 = vector.broadcast %c-1_i32_46 : i32 to vector<128x128xi32>
    %130 = arith.select %128, %129, %124 : vector<128x128xi1>, vector<128x128xi32>
    %c0_i32_47 = arith.constant 0 : i32
    %131 = vector.broadcast %c0_i32_47 : i32 to vector<128x128xi32>
    %132 = arith.cmpi sge, %130, %131 : vector<128x128xi32>
    %cst_48 = arith.constant 0.000000e+00 : f32
    %133 = vector.broadcast %cst_48 : f32 to vector<128x128xf32>
    %134 = arith.select %132, %23, %133 : vector<128x128xi1>, vector<128x128xf32>
    %cst_49 = arith.constant dense<0.000000e+00> : vector<128xf32>
    %135 = vector.multi_reduction <add>, %134, %cst_49 [0] : vector<128x128xf32> to vector<128xf32>
    %136 = vector.shape_cast %135 : vector<128xf32> to vector<1x128xf32>
    %137 = math.log %136 : vector<1x128xf32>
    %cst_50 = arith.constant 0.000000e+00 : f32
    %138 = vector.broadcast %cst_50 : f32 to vector<1x128xf32>
    %139 = arith.subf %138, %96 : vector<1x128xf32>
    %140 = arith.addf %139, %137 : vector<1x128xf32>
    %cst_51 = arith.constant 6.000000e+00 : f32
    %141 = vector.broadcast %cst_51 : f32 to vector<1x128xf32>
    %142 = arith.addf %140, %141 : vector<1x128xf32>
    %cst_52 = arith.constant 0.000000e+00 : f32
    %143 = vector.broadcast %cst_52 : f32 to vector<1x128xf32>
    %144 = arith.maximumf %142, %143 : vector<1x128xf32>
    %c16_i32_53 = arith.constant 16 : i32
    %145 = vector.broadcast %c16_i32_53 : i32 to vector<1x128xi32>
    %146 = arith.cmpi slt, %7, %145 : vector<1x128xi32>
    %cst_54 = arith.constant 5.000000e-01 : f32
    %147 = vector.broadcast %cst_54 : f32 to vector<1x128xf32>
    %148 = arith.mulf %147, %144 : vector<1x128xf32>
    %149 = arith.addf %86, %148 : vector<1x128xf32>
    %cst_55 = arith.constant 0.000000e+00 : f32
    %150 = vector.broadcast %cst_55 : f32 to vector<1x128xf32>
    %151 = arith.select %146, %149, %150 : vector<1x128xi1>, vector<1x128xf32>
    %c0_56 = arith.constant 0 : index
    %c0_57 = arith.constant 0 : index
    %152 = vector.load %arg7[%c0_56, %c0_57] : memref<1x128xf32, #tpu.memory_space<vmem>>, vector<1x128xf32>
    tpu.vector_store %arg7[%c0_56, %c0_57], %151 {strides = array<i32>} : memref<1x128xf32, #tpu.memory_space<vmem>>, vector<1x128xf32>,
    return
  }
  func.func @transform_0(%arg0: i32) -> (i32, i32) {
    %c0_i32 = arith.constant 0 : i32
    %c0_i32_0 = arith.constant 0 : i32
    return %c0_i32, %arg0 : i32, i32
  }
  func.func @transform_1(%arg0: i32) -> (i32, i32) {
    %c0_i32 = arith.constant 0 : i32
    %c0_i32_0 = arith.constant 0 : i32
    %c0_i32_1 = arith.constant 0 : i32
    return %c0_i32, %c0_i32_0 : i32, i32
  }
  func.func @transform_2(%arg0: i32) -> (i32, i32) {
    %c0_i32 = arith.constant 0 : i32
    %c0_i32_0 = arith.constant 0 : i32
    %c0_i32_1 = arith.constant 0 : i32
    return %c0_i32, %c0_i32_0 : i32, i32
  }
  func.func @transform_3(%arg0: i32) -> (i32, i32) {
    %c0_i32 = arith.constant 0 : i32
    %c0_i32_0 = arith.constant 0 : i32
    %c0_i32_1 = arith.constant 0 : i32
    return %c0_i32, %c0_i32_0 : i32, i32
  }
  func.func @transform_4(%arg0: i32) -> (i32, i32) {
    %c0_i32 = arith.constant 0 : i32
    %c0_i32_0 = arith.constant 0 : i32
    return %c0_i32, %arg0 : i32, i32
  }
  func.func @transform_5(%arg0: i32) -> (i32, i32) {
    %c0_i32 = arith.constant 0 : i32
    %c0_i32_0 = arith.constant 0 : i32
    return %c0_i32, %arg0 : i32, i32
  }
  func.func @transform_6(%arg0: i32) -> (i32, i32) {
    %c0_i32 = arith.constant 0 : i32
    %c0_i32_0 = arith.constant 0 : i32
    return %c0_i32, %arg0 : i32, i32
  }
}

module attributes {stable_mosaic.version = 11 : i64} {
  func.func @_ipfl_kernel(%arg0: i32, %arg1: memref<128x128xbf16, #tpu.memory_space<vmem>>, %arg2: memref<128x128xbf16, #tpu.memory_space<vmem>>, %arg3: memref<128x1xf32, #tpu.memory_space<vmem>>, %arg4: memref<128x1xi32, #tpu.memory_space<vmem>>, %arg5: memref<1x128xf32, #tpu.memory_space<vmem>>, %arg6: memref<1x128xi32, #tpu.memory_space<vmem>>, %arg7: memref<1x128xf32, #tpu.memory_space<vmem>>) attributes {dimension_semantics = [#tpu.dimension_semantics<parallel>], iteration_bounds = array<i64: 1>, scalar_prefetch = 0 : i64, scratch_operands = 0 : i64, tpu.core_type = #tpu.core_type<tc>, window_params = [{transform_indices = @transform_0, window_bounds = array<i64: 128, 128>}, {pipeline_mode = #tpu.pipeline_mode<synchronous>, transform_indices = @transform_1, window_bounds = array<i64: 128, 128>}, {pipeline_mode = #tpu.pipeline_mode<synchronous>, transform_indices = @transform_2, window_bounds = array<i64: 128, 1>}, {pipeline_mode = #tpu.pipeline_mode<synchronous>, transform_indices = @transform_3, window_bounds = array<i64: 128, 1>}, {transform_indices = @transform_4, window_bounds = array<i64: 1, 128>}, {transform_indices = @transform_5, window_bounds = array<i64: 1, 128>}, {transform_indices = @transform_6, window_bounds = array<i64: 1, 128>}]} {
    %c0 = arith.constant 0 : index
    %c0_0 = arith.constant 0 : index
    %0 = vector.load %arg2[%c0, %c0_0] : memref<128x128xbf16, #tpu.memory_space<vmem>>, vector<128x128xbf16>
    %c0_1 = arith.constant 0 : index
    %c0_2 = arith.constant 0 : index
    %1 = vector.load %arg1[%c0_1, %c0_2] : memref<128x128xbf16, #tpu.memory_space<vmem>>, vector<128x128xbf16>
    %cst = arith.constant dense<0.000000e+00> : vector<128x128xf32>
    %2 = tpu.matmul %0, %1, %cst {dimension_numbers = #tpu.dot_dimension_numbers<[1], [0], [0], [1], [0, 0, 1, 1], [], []>} : vector<128x128xbf16>, vector<128x128xbf16>, vector<128x128xf32> -> vector<128x128xf32>
    %3 = tpu.iota {dimensions = array<i32: 0>} : vector<128x128xi32>
    %4 = tpu.iota {dimensions = array<i32: 1>} : vector<1x128xi32>
    %c128_i32 = arith.constant 128 : i32
    %5 = arith.muli %arg0, %c128_i32 : i32
    %6 = vector.broadcast %5 : i32 to vector<1x128xi32>
    %7 = arith.addi %4, %6 : vector<1x128xi32>
    %c0_3 = arith.constant 0 : index
    %c0_4 = arith.constant 0 : index
    %8 = vector.load %arg5[%c0_3, %c0_4] : memref<1x128xf32, #tpu.memory_space<vmem>>, vector<1x128xf32>
    %c0_5 = arith.constant 0 : index
    %c0_6 = arith.constant 0 : index
    %9 = vector.load %arg3[%c0_5, %c0_6] : memref<128x1xf32, #tpu.memory_space<vmem>>, vector<128x1xf32>
    %10 = vector.broadcast %8 : vector<1x128xf32> to vector<128x128xf32>
    %11 = vector.broadcast %9 : vector<128x1xf32> to vector<128x128xf32>
    %12 = arith.addf %10, %11 : vector<128x128xf32>
    %13 = arith.addf %12, %2 : vector<128x128xf32>
    %14 = vector.broadcast %7 : vector<1x128xi32> to vector<128x128xi32>
    %15 = arith.cmpi eq, %3, %14 : vector<128x128xi32>
    %cst_7 = arith.constant 9.99999974E-6 : f32
    %16 = vector.broadcast %cst_7 : f32 to vector<128x128xf32>
    %17 = arith.select %15, %16, %13 : vector<128x128xi1>, vector<128x128xf32>
    %cst_8 = arith.constant 9.99999996E-13 : f32
    %18 = vector.broadcast %cst_8 : f32 to vector<128x128xf32>
    %19 = arith.maximumf %17, %18 : vector<128x128xf32>
    %20 = math.sqrt %19 : vector<128x128xf32>
    %cst_9 = arith.constant -1.000000e+01 : f32
    %21 = vector.broadcast %cst_9 : f32 to vector<128x128xf32>
    %22 = arith.mulf %21, %20 : vector<128x128xf32>
    %23 = math.exp %22 : vector<128x128xf32>
    %24 = tpu.bitcast %23 : vector<128x128xf32> -> vector<128x128xi32>
    %c-128_i32 = arith.constant -128 : i32
    %25 = vector.broadcast %c-128_i32 : i32 to vector<128x128xi32>
    %26 = arith.andi %24, %25 : vector<128x128xi32>
    %27 = arith.ori %26, %3 : vector<128x128xi32>
    %c16_i32 = arith.constant 16 : i32
    %28 = vector.broadcast %c16_i32 : i32 to vector<128x128xi32>
    %29 = arith.cmpi slt, %3, %28 : vector<128x128xi32>
    %c-1_i32 = arith.constant -1 : i32
    %30 = vector.broadcast %c-1_i32 : i32 to vector<128x128xi32>
    %31 = arith.select %29, %27, %30 : vector<128x128xi1>, vector<128x128xi32>
    %c0_10 = arith.constant 0 : index
    %c0_11 = arith.constant 0 : index
    %32 = vector.load %arg4[%c0_10, %c0_11] : memref<128x1xi32, #tpu.memory_space<vmem>>, vector<128x1xi32>
    %c0_12 = arith.constant 0 : index
    %c0_13 = arith.constant 0 : index
    %33 = vector.load %arg6[%c0_12, %c0_13] : memref<1x128xi32, #tpu.memory_space<vmem>>, vector<1x128xi32>
    %34 = vector.broadcast %32 : vector<128x1xi32> to vector<128x128xi32>
    %35 = vector.broadcast %33 : vector<1x128xi32> to vector<128x128xi32>
    %36 = arith.cmpi eq, %34, %35 : vector<128x128xi32>
    %c-1_i32_14 = arith.constant -1 : i32
    %37 = vector.broadcast %c-1_i32_14 : i32 to vector<128x128xi32>
    %38 = arith.select %36, %31, %37 : vector<128x128xi1>, vector<128x128xi32>
    %c-1_i32_15 = arith.constant -1 : i32
    %39 = vector.broadcast %c-1_i32_15 : i32 to vector<128x128xi32>
    %40 = arith.select %36, %39, %31 : vector<128x128xi1>, vector<128x128xi32>
    %cst_16 = arith.constant dense<-2147483648> : vector<128xi32>
    %41 = vector.multi_reduction <maxsi>, %38, %cst_16 [0] : vector<128x128xi32> to vector<128xi32>
    %42 = vector.shape_cast %41 : vector<128xi32> to vector<1x128xi32>
    %c0_i32 = arith.constant 0 : i32
    %43 = vector.broadcast %c0_i32 : i32 to vector<1x128xi32>
    %44 = arith.cmpi sge, %42, %43 : vector<1x128xi32>
    %c-128_i32_17 = arith.constant -128 : i32
    %45 = vector.broadcast %c-128_i32_17 : i32 to vector<1x128xi32>
    %46 = arith.andi %42, %45 : vector<1x128xi32>
    %47 = tpu.bitcast %46 : vector<1x128xi32> -> vector<1x128xf32>
    %48 = math.log %47 : vector<1x128xf32>
    %cst_18 = arith.constant 0xFF800000 : f32
    %49 = vector.broadcast %cst_18 : f32 to vector<1x128xf32>
    %50 = arith.select %44, %48, %49 : vector<1x128xi1>, vector<1x128xf32>
    %51 = vector.broadcast %42 : vector<1x128xi32> to vector<128x128xi32>
    %52 = arith.cmpi eq, %38, %51 : vector<128x128xi32>
    %c-1_i32_19 = arith.constant -1 : i32
    %53 = vector.broadcast %c-1_i32_19 : i32 to vector<128x128xi32>
    %54 = arith.select %52, %53, %38 : vector<128x128xi1>, vector<128x128xi32>
    %cst_20 = arith.constant dense<-2147483648> : vector<128xi32>
    %55 = vector.multi_reduction <maxsi>, %54, %cst_20 [0] : vector<128x128xi32> to vector<128xi32>
    %56 = vector.shape_cast %55 : vector<128xi32> to vector<1x128xi32>
    %57 = vector.broadcast %56 : vector<1x128xi32> to vector<128x128xi32>
    %58 = arith.cmpi eq, %54, %57 : vector<128x128xi32>
    %c-1_i32_21 = arith.constant -1 : i32
    %59 = vector.broadcast %c-1_i32_21 : i32 to vector<128x128xi32>
    %60 = arith.select %58, %59, %54 : vector<128x128xi1>, vector<128x128xi32>
    %cst_22 = arith.constant dense<-2147483648> : vector<128xi32>
    %61 = vector.multi_reduction <maxsi>, %60, %cst_22 [0] : vector<128x128xi32> to vector<128xi32>
    %62 = vector.shape_cast %61 : vector<128xi32> to vector<1x128xi32>
    %63 = vector.broadcast %62 : vector<1x128xi32> to vector<128x128xi32>
    %64 = arith.cmpi eq, %60, %63 : vector<128x128xi32>
    %c-1_i32_23 = arith.constant -1 : i32
    %65 = vector.broadcast %c-1_i32_23 : i32 to vector<128x128xi32>
    %66 = arith.select %64, %65, %60 : vector<128x128xi1>, vector<128x128xi32>
    %cst_24 = arith.constant dense<-2147483648> : vector<128xi32>
    %67 = vector.multi_reduction <maxsi>, %66, %cst_24 [0] : vector<128x128xi32> to vector<128xi32>
    %68 = vector.shape_cast %67 : vector<128xi32> to vector<1x128xi32>
    %69 = vector.broadcast %68 : vector<1x128xi32> to vector<128x128xi32>
    %70 = arith.cmpi eq, %66, %69 : vector<128x128xi32>
    %c-1_i32_25 = arith.constant -1 : i32
    %71 = vector.broadcast %c-1_i32_25 : i32 to vector<128x128xi32>
    %72 = arith.select %70, %71, %66 : vector<128x128xi1>, vector<128x128xi32>
    %c0_i32_26 = arith.constant 0 : i32
    %73 = vector.broadcast %c0_i32_26 : i32 to vector<128x128xi32>
    %74 = arith.cmpi sge, %72, %73 : vector<128x128xi32>
    %cst_27 = arith.constant 0.000000e+00 : f32
    %75 = vector.broadcast %cst_27 : f32 to vector<128x128xf32>
    %76 = arith.select %74, %23, %75 : vector<128x128xi1>, vector<128x128xf32>
    %cst_28 = arith.constant dense<0.000000e+00> : vector<128xf32>
    %77 = vector.multi_reduction <add>, %76, %cst_28 [0] : vector<128x128xf32> to vector<128xf32>
    %78 = vector.shape_cast %77 : vector<128xf32> to vector<1x128xf32>
    %79 = math.log %78 : vector<1x128xf32>
    %cst_29 = arith.constant 0.000000e+00 : f32
    %80 = vector.broadcast %cst_29 : f32 to vector<1x128xf32>
    %81 = arith.subf %80, %50 : vector<1x128xf32>
    %82 = arith.addf %81, %79 : vector<1x128xf32>
    %cst_30 = arith.constant 4.000000e+01 : f32
    %83 = vector.broadcast %cst_30 : f32 to vector<1x128xf32>
    %84 = arith.addf %82, %83 : vector<1x128xf32>
    %cst_31 = arith.constant 0.000000e+00 : f32
    %85 = vector.broadcast %cst_31 : f32 to vector<1x128xf32>
    %86 = arith.maximumf %84, %85 : vector<1x128xf32>
    %cst_32 = arith.constant dense<-2147483648> : vector<128xi32>
    %87 = vector.multi_reduction <maxsi>, %40, %cst_32 [0] : vector<128x128xi32> to vector<128xi32>
    %88 = vector.shape_cast %87 : vector<128xi32> to vector<1x128xi32>
    %c0_i32_33 = arith.constant 0 : i32
    %89 = vector.broadcast %c0_i32_33 : i32 to vector<1x128xi32>
    %90 = arith.cmpi sge, %88, %89 : vector<1x128xi32>
    %c-128_i32_34 = arith.constant -128 : i32
    %91 = vector.broadcast %c-128_i32_34 : i32 to vector<1x128xi32>
    %92 = arith.andi %88, %91 : vector<1x128xi32>
    %93 = tpu.bitcast %92 : vector<1x128xi32> -> vector<1x128xf32>
    %94 = math.log %93 : vector<1x128xf32>
    %cst_35 = arith.constant 0xFF800000 : f32
    %95 = vector.broadcast %cst_35 : f32 to vector<1x128xf32>
    %96 = arith.select %90, %94, %95 : vector<1x128xi1>, vector<1x128xf32>
    %97 = vector.broadcast %88 : vector<1x128xi32> to vector<128x128xi32>
    %98 = arith.cmpi eq, %40, %97 : vector<128x128xi32>
    %c-1_i32_36 = arith.constant -1 : i32
    %99 = vector.broadcast %c-1_i32_36 : i32 to vector<128x128xi32>
    %100 = arith.select %98, %99, %40 : vector<128x128xi1>, vector<128x128xi32>
    %cst_37 = arith.constant dense<-2147483648> : vector<128xi32>
    %101 = vector.multi_reduction <maxsi>, %100, %cst_37 [0] : vector<128x128xi32> to vector<128xi32>
    %102 = vector.shape_cast %101 : vector<128xi32> to vector<1x128xi32>
    %103 = vector.broadcast %102 : vector<1x128xi32> to vector<128x128xi32>
    %104 = arith.cmpi eq, %100, %103 : vector<128x128xi32>
    %c-1_i32_38 = arith.constant -1 : i32
    %105 = vector.broadcast %c-1_i32_38 : i32 to vector<128x128xi32>
    %106 = arith.select %104, %105, %100 : vector<128x128xi1>, vector<128x128xi32>
    %cst_39 = arith.constant dense<-2147483648> : vector<128xi32>
    %107 = vector.multi_reduction <maxsi>, %106, %cst_39 [0] : vector<128x128xi32> to vector<128xi32>
    %108 = vector.shape_cast %107 : vector<128xi32> to vector<1x128xi32>
    %109 = vector.broadcast %108 : vector<1x128xi32> to vector<128x128xi32>
    %110 = arith.cmpi eq, %106, %109 : vector<128x128xi32>
    %c-1_i32_40 = arith.constant -1 : i32
    %111 = vector.broadcast %c-1_i32_40 : i32 to vector<128x128xi32>
    %112 = arith.select %110, %111, %106 : vector<128x128xi1>, vector<128x128xi32>
    %cst_41 = arith.constant dense<-2147483648> : vector<128xi32>
    %113 = vector.multi_reduction <maxsi>, %112, %cst_41 [0] : vector<128x128xi32> to vector<128xi32>
    %114 = vector.shape_cast %113 : vector<128xi32> to vector<1x128xi32>
    %115 = vector.broadcast %114 : vector<1x128xi32> to vector<128x128xi32>
    %116 = arith.cmpi eq, %112, %115 : vector<128x128xi32>
    %c-1_i32_42 = arith.constant -1 : i32
    %117 = vector.broadcast %c-1_i32_42 : i32 to vector<128x128xi32>
    %118 = arith.select %116, %117, %112 : vector<128x128xi1>, vector<128x128xi32>
    %cst_43 = arith.constant dense<-2147483648> : vector<128xi32>
    %119 = vector.multi_reduction <maxsi>, %118, %cst_43 [0] : vector<128x128xi32> to vector<128xi32>
    %120 = vector.shape_cast %119 : vector<128xi32> to vector<1x128xi32>
    %121 = vector.broadcast %120 : vector<1x128xi32> to vector<128x128xi32>
    %122 = arith.cmpi eq, %118, %121 : vector<128x128xi32>
    %c-1_i32_44 = arith.constant -1 : i32
    %123 = vector.broadcast %c-1_i32_44 : i32 to vector<128x128xi32>
    %124 = arith.select %122, %123, %118 : vector<128x128xi1>, vector<128x128xi32>
    %cst_45 = arith.constant dense<-2147483648> : vector<128xi32>
    %125 = vector.multi_reduction <maxsi>, %124, %cst_45 [0] : vector<128x128xi32> to vector<128xi32>
    %126 = vector.shape_cast %125 : vector<128xi32> to vector<1x128xi32>
    %127 = vector.broadcast %126 : vector<1x128xi32> to vector<128x128xi32>
    %128 = arith.cmpi eq, %124, %127 : vector<128x128xi32>
    %c-1_i32_46 = arith.constant -1 : i32
    %129 = vector.broadcast %c-1_i32_46 : i32 to vector<128x128xi32>
    %130 = arith.select %128, %129, %124 : vector<128x128xi1>, vector<128x128xi32>
    %c0_i32_47 = arith.constant 0 : i32
    %131 = vector.broadcast %c0_i32_47 : i32 to vector<128x128xi32>
    %132 = arith.cmpi sge, %130, %131 : vector<128x128xi32>
    %cst_48 = arith.constant 0.000000e+00 : f32
    %133 = vector.broadcast %cst_48 : f32 to vector<128x128xf32>
    %134 = arith.select %132, %23, %133 : vector<128x128xi1>, vector<128x128xf32>
    %cst_49 = arith.constant dense<0.000000e+00> : vector<128xf32>
    %135 = vector.multi_reduction <add>, %134, %cst_49 [0] : vector<128x128xf32> to vector<128xf32>
    %136 = vector.shape_cast %135 : vector<128xf32> to vector<1x128xf32>
    %137 = math.log %136 : vector<1x128xf32>
    %cst_50 = arith.constant 0.000000e+00 : f32
    %138 = vector.broadcast %cst_50 : f32 to vector<1x128xf32>
    %139 = arith.subf %138, %96 : vector<1x128xf32>
    %140 = arith.addf %139, %137 : vector<1x128xf32>
    %cst_51 = arith.constant 6.000000e+00 : f32
    %141 = vector.broadcast %cst_51 : f32 to vector<1x128xf32>
    %142 = arith.addf %140, %141 : vector<1x128xf32>
    %cst_52 = arith.constant 0.000000e+00 : f32
    %143 = vector.broadcast %cst_52 : f32 to vector<1x128xf32>
    %144 = arith.maximumf %142, %143 : vector<1x128xf32>
    %c16_i32_53 = arith.constant 16 : i32
    %145 = vector.broadcast %c16_i32_53 : i32 to vector<1x128xi32>
    %146 = arith.cmpi slt, %7, %145 : vector<1x128xi32>
    %cst_54 = arith.constant 5.000000e-01 : f32
    %147 = vector.broadcast %cst_54 : f32 to vector<1x128xf32>
    %148 = arith.mulf %147, %144 : vector<1x128xf32>
    %149 = arith.addf %86, %148 : vector<1x128xf32>
    %cst_55 = arith.constant 0.000000e+00 : f32
    %150 = vector.broadcast %cst_55 : f32 to vector<1x128xf32>
    %151 = arith.select %146, %149, %150 : vector<1x128xi1>, vector<1x128xf32>
    %c0_56 = arith.constant 0 : index
    %c0_57 = arith.constant 0 : index
    %152 = vector.load %arg7[%c0_56, %c0_57] : memref<1x128xf32, #tpu.memory_space<vmem>>, vector<1x128xf32>
    tpu.vector_store %arg7[%c0_56, %c0_57], %151 {strides = array<i32>} : memref<1x128xf32, #tpu.memory_space<vmem>>, vector<1x128xf32>,
    return
  }
  func.func @transform_0(%arg0: i32) -> (i32, i32) {
    %c0_i32 = arith.constant 0 : i32
    %c0_i32_0 = arith.constant 0 : i32
    return %c0_i32, %arg0 : i32, i32
  }
  func.func @transform_1(%arg0: i32) -> (i32, i32) {
    %c0_i32 = arith.constant 0 : i32
    %c0_i32_0 = arith.constant 0 : i32
    %c0_i32_1 = arith.constant 0 : i32
    return %c0_i32, %c0_i32_0 : i32, i32
  }
  func.func @transform_2(%arg0: i32) -> (i32, i32) {
    %c0_i32 = arith.constant 0 : i32
    %c0_i32_0 = arith.constant 0 : i32
    %c0_i32_1 = arith.constant 0 : i32
    return %c0_i32, %c0_i32_0 : i32, i32
  }
  func.func @transform_3(%arg0: i32) -> (i32, i32) {
    %c0_i32 = arith.constant 0 : i32
    %c0_i32_0 = arith.constant 0 : i32
    %c0_i32_1 = arith.constant 0 : i32
    return %c0_i32, %c0_i32_0 : i32, i32
  }
  func.func @transform_4(%arg0: i32) -> (i32, i32) {
    %c0_i32 = arith.constant 0 : i32
    %c0_i32_0 = arith.constant 0 : i32
    return %c0_i32, %arg0 : i32, i32
  }
  func.func @transform_5(%arg0: i32) -> (i32, i32) {
    %c0_i32 = arith.constant 0 : i32
    %c0_i32_0 = arith.constant 0 : i32
    return %c0_i32, %arg0 : i32, i32
  }
  func.func @transform_6(%arg0: i32) -> (i32, i32) {
    %c0_i32 = arith.constant 0 : i32
    %c0_i32_0 = arith.constant 0 : i32
    return %c0_i32, %arg0 : i32, i32
  }
}

</mosaic_0001>

<llo_original>
// kernel: _ipfl_impl.1
$region0: #{_ipfl_impl.1}
  #allocation0 [shape = 'u32[]', space=smem, size = 0x4, offset = 0x4, fixed_abs, tag = 'smem constant byte address 0x4 - core index']
  #allocation1 [shape = 'u32[72,128]{1,0:T(1,128)}', space=vmem, size = 0x9000, scoped, tag = 'internal scratch']
  %s0 = inlined_call_operand.vmem [shape: bf16[128,128], index: 0, kind: input, shape index: {}]
  %s1 = inlined_call_operand.vmem [shape: bf16[128,128], index: 1, kind: input, shape index: {}]
  %s2 = inlined_call_operand.vmem [shape: f32[128,1], index: 2, kind: input, shape index: {}]
  %s3 = inlined_call_operand.vmem [shape: s32[128,1], index: 3, kind: input, shape index: {}]
  %s4 = inlined_call_operand.vmem [shape: f32[1,128], index: 4, kind: input, shape index: {}]
  %s5 = inlined_call_operand.vmem [shape: s32[1,128], index: 5, kind: input, shape index: {}]
  %s6 = inlined_call_operand.vmem [shape: f32[1,128], index: 6, kind: output, shape index: {}]
  %s7 = sld [smem:[#allocation0]]
  $region34: #{_ipfl_impl.1} parent=0
    _
  %s9 = ssub.s32 1, %s7
  %s10 = scalar_select 0, %s9, %s7
  // Predicated region
  $region2: #{_ipfl_impl.1} parent=0 // pred_check
    _
  $region3: #{_ipfl_impl.1} parent=0 // pred_check_branch
    %12 = sbr.rel (0) target = $region5
  $region4: #{_ipfl_impl.1} parent=0 // pred_region
    _
  $region5: #{_ipfl_impl.1} parent=0 // pred_fallthru
    _
  // Predicated region
  $region6: #{_ipfl_impl.1} parent=0 // pred_check
    _
  $region7: #{_ipfl_impl.1} parent=0 // pred_check_branch
    %14 = sbr.rel (0) target = $region9
  $region8: #{_ipfl_impl.1} parent=0 // pred_region
    _
  $region9: #{_ipfl_impl.1} parent=0 // pred_fallthru
    _
  // Predicated region
  $region10: #{_ipfl_impl.1} parent=0 // pred_check
    _
  $region11: #{_ipfl_impl.1} parent=0 // pred_check_branch
    %16 = sbr.rel (0) target = $region13
  $region12: #{_ipfl_impl.1} parent=0 // pred_region
    _
  $region13: #{_ipfl_impl.1} parent=0 // pred_fallthru
    _
  // Predicated region
  $region14: #{_ipfl_impl.1} parent=0 // pred_check
    _
  $region15: #{_ipfl_impl.1} parent=0 // pred_check_branch
    %18 = sbr.rel (0) target = $region17
  $region16: #{_ipfl_impl.1} parent=0 // pred_region
    _
  $region17: #{_ipfl_impl.1} parent=0 // pred_fallthru
    _
  // Predicated region
  $region18: #{_ipfl_impl.1} parent=0 // pred_check
    _
  $region19: #{_ipfl_impl.1} parent=0 // pred_check_branch
    %20 = sbr.rel (0) target = $region21
  $region20: #{_ipfl_impl.1} parent=0 // pred_region
    _
  $region21: #{_ipfl_impl.1} parent=0 // pred_fallthru
    _
  // Predicated region
  $region22: #{_ipfl_impl.1} parent=0 // pred_check
    _
  $region23: #{_ipfl_impl.1} parent=0 // pred_check_branch
    %22 = sbr.rel (0) target = $region25
  $region24: #{_ipfl_impl.1} parent=0 // pred_region
    _
  $region25: #{_ipfl_impl.1} parent=0 // pred_fallthru
    _
  %v23 = vld [vmem:[%s1] sm:$0xf]
  %v24 = vld [vmem:[%s1 + $0x4] sm:$0xf]
  %v25 = vld [vmem:[%s1 + $0x8] sm:$0xf]
  %v26 = vld [vmem:[%s1 + $0xc] sm:$0xf]
  %v27 = vld [vmem:[%s1 + $0x10] sm:$0xf]
  %v28 = vld [vmem:[%s1 + $0x14] sm:$0xf]
  %v29 = vld [vmem:[%s1 + $0x18] sm:$0xf]
  %v30 = vld [vmem:[%s1 + $0x1c] sm:$0xf]
  %v31 = vld [vmem:[%s1 + $0x20] sm:$0xf]
  %v32 = vld [vmem:[%s1 + $0x24] sm:$0xf]
  %v33 = vld [vmem:[%s1 + $0x28] sm:$0xf]
  %v34 = vld [vmem:[%s1 + $0x2c] sm:$0xf]
  %v35 = vld [vmem:[%s1 + $0x30] sm:$0xf]
  %v36 = vld [vmem:[%s1 + $0x34] sm:$0xf]
  %v37 = vld [vmem:[%s1 + $0x38] sm:$0xf]
  %v38 = vld [vmem:[%s1 + $0x3c] sm:$0xf]
  %v39 = vld [vmem:[%s0] sm:$0xf]
  %v40 = vld [vmem:[%s0 + $0x4] sm:$0xf]
  %v41 = vld [vmem:[%s0 + $0x8] sm:$0xf]
  %v42 = vld [vmem:[%s0 + $0xc] sm:$0xf]
  %v43 = vld [vmem:[%s0 + $0x10] sm:$0xf]
  %v44 = vld [vmem:[%s0 + $0x14] sm:$0xf]
  %v45 = vld [vmem:[%s0 + $0x18] sm:$0xf]
  %v46 = vld [vmem:[%s0 + $0x1c] sm:$0xf]
  %v47 = vld [vmem:[%s0 + $0x20] sm:$0xf]
  %v48 = vld [vmem:[%s0 + $0x24] sm:$0xf]
  %v49 = vld [vmem:[%s0 + $0x28] sm:$0xf]
  %v50 = vld [vmem:[%s0 + $0x2c] sm:$0xf]
  %v51 = vld [vmem:[%s0 + $0x30] sm:$0xf]
  %v52 = vld [vmem:[%s0 + $0x34] sm:$0xf]
  %v53 = vld [vmem:[%s0 + $0x38] sm:$0xf]
  %v54 = vld [vmem:[%s0 + $0x3c] sm:$0xf]
  %v71 = vunpack.c.l.b16 %v23
  %v72 = vunpack.c.l.b16 %v24
  %v73 = vunpack.c.l.b16 %v25
  %v74 = vunpack.c.l.b16 %v26
  %v75 = vunpack.c.l.b16 %v27
  %v76 = vunpack.c.l.b16 %v28
  %v77 = vunpack.c.l.b16 %v29
  %v78 = vunpack.c.l.b16 %v30
  %v79 = vunpack.c.l.b16 %v31
  %v80 = vunpack.c.l.b16 %v32
  %v81 = vunpack.c.l.b16 %v33
  %v82 = vunpack.c.l.b16 %v34
  %v83 = vunpack.c.l.b16 %v35
  %v84 = vunpack.c.l.b16 %v36
  %v85 = vunpack.c.l.b16 %v37
  %v86 = vunpack.c.l.b16 %v38
  %v87 = vpack.c.b16 %v72, %v71
  %v88 = vpack.c.b16 %v74, %v73
  %v89 = vpack.c.b16 %v76, %v75
  %v90 = vpack.c.b16 %v78, %v77
  %v91 = vpack.c.b16 %v80, %v79
  %v92 = vpack.c.b16 %v82, %v81
  %v93 = vpack.c.b16 %v84, %v83
  %v94 = vpack.c.b16 %v86, %v85
  %v119 = vunpack.c.l.b16 %v39
  %v120 = vunpack.c.l.b16 %v40
  %v121 = vunpack.c.l.b16 %v41
  %v122 = vunpack.c.l.b16 %v42
  %v123 = vunpack.c.l.b16 %v43
  %v124 = vunpack.c.l.b16 %v44
  %v125 = vunpack.c.l.b16 %v45
  %v126 = vunpack.c.l.b16 %v46
  %v127 = vunpack.c.l.b16 %v47
  %v128 = vunpack.c.l.b16 %v48
  %v129 = vunpack.c.l.b16 %v49
  %v130 = vunpack.c.l.b16 %v50
  %v131 = vunpack.c.l.b16 %v51
  %v132 = vunpack.c.l.b16 %v52
  %v133 = vunpack.c.l.b16 %v53
  %v134 = vunpack.c.l.b16 %v54
  %v135 = vpack.c.b16 %v120, %v119
  %v136 = vpack.c.b16 %v122, %v121
  %v137 = vpack.c.b16 %v124, %v123
  %v138 = vpack.c.b16 %v126, %v125
  %v139 = vpack.c.b16 %v128, %v127
  %v140 = vpack.c.b16 %v130, %v129
  %v141 = vpack.c.b16 %v132, %v131
  %v142 = vpack.c.b16 %v134, %v133
  %151 = vmatpush.bf16.msra.mxu0 %v142
  %152 = vmatpush.bf16.msra.mxu0 %v141
  %153 = vmatpush.bf16.msra.mxu0 %v140
  %154 = vmatpush.bf16.msra.mxu0 %v139
  %155 = vmatpush.bf16.msra.mxu0 %v138
  %156 = vmatpush.bf16.msra.mxu0 %v137
  %157 = vmatpush.bf16.msra.mxu0 %v136
  %158 = vmatpush.bf16.msra.mxu0 %v135
  %159 = vmatmul.bf16.gmra.mxu0 %v87
  %v160 = vpop.f32.mrf.mxu0
  %v161 = vadd.f32 0.0, %v160
  %v162 = vpop.f32.mrf.mxu0
  %v163 = vadd.f32 0.0, %v162
  %164 = vmatmul.bf16.gmra.mxu0 %v88
  %v165 = vpop.f32.mrf.mxu0
  %v166 = vadd.f32 0.0, %v165
  %v167 = vpop.f32.mrf.mxu0
  %v168 = vadd.f32 0.0, %v167
  %169 = vmatmul.bf16.gmra.mxu0 %v89
  %v170 = vpop.f32.mrf.mxu0
  %v171 = vadd.f32 0.0, %v170
  %v172 = vpop.f32.mrf.mxu0
  %v173 = vadd.f32 0.0, %v172
  %174 = vmatmul.bf16.gmra.mxu0 %v90
  %v175 = vpop.f32.mrf.mxu0
  %v176 = vadd.f32 0.0, %v175
  %v177 = vpop.f32.mrf.mxu0
  %v178 = vadd.f32 0.0, %v177
  %179 = vmatmul.bf16.gmra.mxu0 %v91
  %v180 = vpop.f32.mrf.mxu0
  %v181 = vadd.f32 0.0, %v180
  %v182 = vpop.f32.mrf.mxu0
  %v183 = vadd.f32 0.0, %v182
  %184 = vmatmul.bf16.gmra.mxu0 %v92
  %v185 = vpop.f32.mrf.mxu0
  %v186 = vadd.f32 0.0, %v185
  %v187 = vpop.f32.mrf.mxu0
  %v188 = vadd.f32 0.0, %v187
  %189 = vmatmul.bf16.gmra.mxu0 %v93
  %v190 = vpop.f32.mrf.mxu0
  %v191 = vadd.f32 0.0, %v190
  %v192 = vpop.f32.mrf.mxu0
  %v193 = vadd.f32 0.0, %v192
  %194 = vmatmul.bf16.gmra.mxu0 %v94
  %v195 = vpop.f32.mrf.mxu0
  %v196 = vadd.f32 0.0, %v195
  %v197 = vpop.f32.mrf.mxu0
  %v198 = vadd.f32 0.0, %v197
  %199 = vdwg.mxu0
  %v200 = vlaneseq
  %v201 = vshrl.u32 %v200, 7
  %v202 = vadd.s32 %v201, 8
  %v203 = vadd.s32 %v201, 16
  %v204 = vadd.s32 %v201, 24
  %v205 = vadd.s32 %v201, 32
  %v206 = vadd.s32 %v201, 40
  %v207 = vadd.s32 %v201, 48
  %v208 = vadd.s32 %v201, 56
  %v209 = vadd.s32 %v201, 64
  %v210 = vadd.s32 %v201, 72
  %v211 = vadd.s32 %v201, 80
  %v212 = vadd.s32 %v201, 88
  %v213 = vadd.s32 %v201, 96
  %v214 = vadd.s32 %v201, 104
  %v215 = vadd.s32 %v201, 112
  %v216 = vadd.s32 %v201, 120
  %v217 = vlaneseq
  %v218 = vand.u32 %v217, 127
  %s219 = smul.u32 0, 128
  %v220 = vstv %s219
  %v221 = vadd.s32 %v218, %v220
  %v222 = vld [vmem:[%s4] sm:$0x1]
  %v223 = vld [vmem:[%s2] sm:$0xff]
  %v224 = vld [vmem:[%s2 + $0x8] sm:$0xff]
  %v225 = vld [vmem:[%s2 + $0x10] sm:$0xff]
  %v226 = vld [vmem:[%s2 + $0x18] sm:$0xff]
  %v227 = vld [vmem:[%s2 + $0x20] sm:$0xff]
  %v228 = vld [vmem:[%s2 + $0x28] sm:$0xff]
  %v229 = vld [vmem:[%s2 + $0x30] sm:$0xff]
  %v230 = vld [vmem:[%s2 + $0x38] sm:$0xff]
  %v231 = vld [vmem:[%s2 + $0x40] sm:$0xff]
  %v232 = vld [vmem:[%s2 + $0x48] sm:$0xff]
  %v233 = vld [vmem:[%s2 + $0x50] sm:$0xff]
  %v234 = vld [vmem:[%s2 + $0x58] sm:$0xff]
  %v235 = vld [vmem:[%s2 + $0x60] sm:$0xff]
  %v236 = vld [vmem:[%s2 + $0x68] sm:$0xff]
  %v237 = vld [vmem:[%s2 + $0x70] sm:$0xff]
  %v238 = vld [vmem:[%s2 + $0x78] sm:$0xff]
  %v240 = vperm.slane %v222, 0
  %243 = vset.pattern.permute.xlu0 0
  %244 = vperm.xlu0 %243, %v223
  %v245 = vpop.permute.xlu0 %244
  %248 = vset.pattern.permute.xlu0 0
  %249 = vperm.xlu0 %248, %v224
  %v250 = vpop.permute.xlu0 %249
  %253 = vset.pattern.permute.xlu0 0
  %254 = vperm.xlu0 %253, %v225
  %v255 = vpop.permute.xlu0 %254
  %258 = vset.pattern.permute.xlu0 0
  %259 = vperm.xlu0 %258, %v226
  %v260 = vpop.permute.xlu0 %259
  %263 = vset.pattern.permute.xlu0 0
  %264 = vperm.xlu0 %263, %v227
  %v265 = vpop.permute.xlu0 %264
  %268 = vset.pattern.permute.xlu0 0
  %269 = vperm.xlu0 %268, %v228
  %v270 = vpop.permute.xlu0 %269
  %273 = vset.pattern.permute.xlu0 0
  %274 = vperm.xlu0 %273, %v229
  %v275 = vpop.permute.xlu0 %274
  %278 = vset.pattern.permute.xlu0 0
  %279 = vperm.xlu0 %278, %v230
  %v280 = vpop.permute.xlu0 %279
  %283 = vset.pattern.permute.xlu0 0
  %284 = vperm.xlu0 %283, %v231
  %v285 = vpop.permute.xlu0 %284
  %288 = vset.pattern.permute.xlu0 0
  %289 = vperm.xlu0 %288, %v232
  %v290 = vpop.permute.xlu0 %289
  %293 = vset.pattern.permute.xlu0 0
  %294 = vperm.xlu0 %293, %v233
  %v295 = vpop.permute.xlu0 %294
  %298 = vset.pattern.permute.xlu0 0
  %299 = vperm.xlu0 %298, %v234
  %v300 = vpop.permute.xlu0 %299
  %303 = vset.pattern.permute.xlu0 0
  %304 = vperm.xlu0 %303, %v235
  %v305 = vpop.permute.xlu0 %304
  %308 = vset.pattern.permute.xlu0 0
  %309 = vperm.xlu0 %308, %v236
  %v310 = vpop.permute.xlu0 %309
  %313 = vset.pattern.permute.xlu0 0
  %314 = vperm.xlu0 %313, %v237
  %v315 = vpop.permute.xlu0 %314
  %318 = vset.pattern.permute.xlu0 0
  %319 = vperm.xlu0 %318, %v238
  %v320 = vpop.permute.xlu0 %319
  %v322 = vadd.f32 %v240, %v245
  %v323 = vadd.f32 %v240, %v250
  %v324 = vadd.f32 %v240, %v255
  %v325 = vadd.f32 %v240, %v260
  %v326 = vadd.f32 %v240, %v265
  %v327 = vadd.f32 %v240, %v270
  %v328 = vadd.f32 %v240, %v275
  %v329 = vadd.f32 %v240, %v280
  %v330 = vadd.f32 %v240, %v285
  %v331 = vadd.f32 %v240, %v290
  %v332 = vadd.f32 %v240, %v295
  %v333 = vadd.f32 %v240, %v300
  %v334 = vadd.f32 %v240, %v305
  %v335 = vadd.f32 %v240, %v310
  %v336 = vadd.f32 %v240, %v315
  %v337 = vadd.f32 %v240, %v320
  %v338 = vadd.f32 %v322, %v161
  %v339 = vadd.f32 %v323, %v163
  %v340 = vadd.f32 %v324, %v166
  %v341 = vadd.f32 %v325, %v168
  %v342 = vadd.f32 %v326, %v171
  %v343 = vadd.f32 %v327, %v173
  %v344 = vadd.f32 %v328, %v176
  %v345 = vadd.f32 %v329, %v178
  %v346 = vadd.f32 %v330, %v181
  %v347 = vadd.f32 %v331, %v183
  %v348 = vadd.f32 %v332, %v186
  %v349 = vadd.f32 %v333, %v188
  %v350 = vadd.f32 %v334, %v191
  %v351 = vadd.f32 %v335, %v193
  %v352 = vadd.f32 %v336, %v196
  %v353 = vadd.f32 %v337, %v198
  %vm354 = vcmp.eq.s32.totalorder %v201, %v221
  %vm355 = vcmp.eq.s32.totalorder %v202, %v221
  %vm356 = vcmp.eq.s32.totalorder %v203, %v221
  %vm357 = vcmp.eq.s32.totalorder %v204, %v221
  %vm358 = vcmp.eq.s32.totalorder %v205, %v221
  %vm359 = vcmp.eq.s32.totalorder %v206, %v221
  %vm360 = vcmp.eq.s32.totalorder %v207, %v221
  %vm361 = vcmp.eq.s32.totalorder %v208, %v221
  %vm362 = vcmp.eq.s32.totalorder %v209, %v221
  %vm363 = vcmp.eq.s32.totalorder %v210, %v221
  %vm364 = vcmp.eq.s32.totalorder %v211, %v221
  %vm365 = vcmp.eq.s32.totalorder %v212, %v221
  %vm366 = vcmp.eq.s32.totalorder %v213, %v221
  %vm367 = vcmp.eq.s32.totalorder %v214, %v221
  %vm368 = vcmp.eq.s32.totalorder %v215, %v221
  %vm369 = vcmp.eq.s32.totalorder %v216, %v221
  %v370 = vsel %vm354, 1e-05, %v338
  %v371 = vsel %vm355, 1e-05, %v339
  %v372 = vsel %vm356, 1e-05, %v340
  %v373 = vsel %vm357, 1e-05, %v341
  %v374 = vsel %vm358, 1e-05, %v342
  %v375 = vsel %vm359, 1e-05, %v343
  %v376 = vsel %vm360, 1e-05, %v344
  %v377 = vsel %vm361, 1e-05, %v345
  %v378 = vsel %vm362, 1e-05, %v346
  %v379 = vsel %vm363, 1e-05, %v347
  %v380 = vsel %vm364, 1e-05, %v348
  %v381 = vsel %vm365, 1e-05, %v349
  %v382 = vsel %vm366, 1e-05, %v350
  %v383 = vsel %vm367, 1e-05, %v351
  %v384 = vsel %vm368, 1e-05, %v352
  %v385 = vsel %vm369, 1e-05, %v353
  %v386 = vmax.f32 %v370, 1e-12
  %v387 = vmax.f32 %v371, 1e-12
  %v388 = vmax.f32 %v372, 1e-12
  %v389 = vmax.f32 %v373, 1e-12
  %v390 = vmax.f32 %v374, 1e-12
  %v391 = vmax.f32 %v375, 1e-12
  %v392 = vmax.f32 %v376, 1e-12
  %v393 = vmax.f32 %v377, 1e-12
  %v394 = vmax.f32 %v378, 1e-12
  %v395 = vmax.f32 %v379, 1e-12
  %v396 = vmax.f32 %v380, 1e-12
  %v397 = vmax.f32 %v381, 1e-12
  %v398 = vmax.f32 %v382, 1e-12
  %v399 = vmax.f32 %v383, 1e-12
  %v400 = vmax.f32 %v384, 1e-12
  %v401 = vmax.f32 %v385, 1e-12
  %v402 = vrsqrt.pop %v386
  %v403 = vmul.f32 %v402, %v386
  %v404 = vmul.f32 %v403, %v402
  %v405 = vmul.f32 0.5, %v404
  %v406 = vsub.f32 1.5, %v405
  %v407 = vmul.f32 %v402, %v406
  %v408 = vmul.f32 %v386, %v407
  %vm409 = vcmp.eq.f32.partialorder %v386, inf
  %v410 = vsel %vm409, %v386, %v408
  %vm411 = vcmp.eq.f32.partialorder %v386, 0.0
  %v412 = vand.u32 %v386, 2147483648
  %v413 = vsel %vm411, %v412, %v410
  %v414 = vrsqrt.pop %v387
  %v415 = vmul.f32 %v414, %v387
  %v416 = vmul.f32 %v415, %v414
  %v417 = vmul.f32 0.5, %v416
  %v418 = vsub.f32 1.5, %v417
  %v419 = vmul.f32 %v414, %v418
  %v420 = vmul.f32 %v387, %v419
  %vm421 = vcmp.eq.f32.partialorder %v387, inf
  %v422 = vsel %vm421, %v387, %v420
  %vm423 = vcmp.eq.f32.partialorder %v387, 0.0
  %v424 = vand.u32 %v387, 2147483648
  %v425 = vsel %vm423, %v424, %v422
  %v426 = vrsqrt.pop %v388
  %v427 = vmul.f32 %v426, %v388
  %v428 = vmul.f32 %v427, %v426
  %v429 = vmul.f32 0.5, %v428
  %v430 = vsub.f32 1.5, %v429
  %v431 = vmul.f32 %v426, %v430
  %v432 = vmul.f32 %v388, %v431
  %vm433 = vcmp.eq.f32.partialorder %v388, inf
  %v434 = vsel %vm433, %v388, %v432
  %vm435 = vcmp.eq.f32.partialorder %v388, 0.0
  %v436 = vand.u32 %v388, 2147483648
  %v437 = vsel %vm435, %v436, %v434
  %v438 = vrsqrt.pop %v389
  %v439 = vmul.f32 %v438, %v389
  %v440 = vmul.f32 %v439, %v438
  %v441 = vmul.f32 0.5, %v440
  %v442 = vsub.f32 1.5, %v441
  %v443 = vmul.f32 %v438, %v442
  %v444 = vmul.f32 %v389, %v443
  %vm445 = vcmp.eq.f32.partialorder %v389, inf
  %v446 = vsel %vm445, %v389, %v444
  %vm447 = vcmp.eq.f32.partialorder %v389, 0.0
  %v448 = vand.u32 %v389, 2147483648
  %v449 = vsel %vm447, %v448, %v446
  %v450 = vrsqrt.pop %v390
  %v451 = vmul.f32 %v450, %v390
  %v452 = vmul.f32 %v451, %v450
  %v453 = vmul.f32 0.5, %v452
  %v454 = vsub.f32 1.5, %v453
  %v455 = vmul.f32 %v450, %v454
  %v456 = vmul.f32 %v390, %v455
  %vm457 = vcmp.eq.f32.partialorder %v390, inf
  %v458 = vsel %vm457, %v390, %v456
  %vm459 = vcmp.eq.f32.partialorder %v390, 0.0
  %v460 = vand.u32 %v390, 2147483648
  %v461 = vsel %vm459, %v460, %v458
  %v462 = vrsqrt.pop %v391
  %v463 = vmul.f32 %v462, %v391
  %v464 = vmul.f32 %v463, %v462
  %v465 = vmul.f32 0.5, %v464
  %v466 = vsub.f32 1.5, %v465
  %v467 = vmul.f32 %v462, %v466
  %v468 = vmul.f32 %v391, %v467
  %vm469 = vcmp.eq.f32.partialorder %v391, inf
  %v470 = vsel %vm469, %v391, %v468
  %vm471 = vcmp.eq.f32.partialorder %v391, 0.0
  %v472 = vand.u32 %v391, 2147483648
  %v473 = vsel %vm471, %v472, %v470
  %v474 = vrsqrt.pop %v392
  %v475 = vmul.f32 %v474, %v392
  %v476 = vmul.f32 %v475, %v474
  %v477 = vmul.f32 0.5, %v476
  %v478 = vsub.f32 1.5, %v477
  %v479 = vmul.f32 %v474, %v478
  %v480 = vmul.f32 %v392, %v479
  %vm481 = vcmp.eq.f32.partialorder %v392, inf
  %v482 = vsel %vm481, %v392, %v480
  %vm483 = vcmp.eq.f32.partialorder %v392, 0.0
  %v484 = vand.u32 %v392, 2147483648
  %v485 = vsel %vm483, %v484, %v482
  %v486 = vrsqrt.pop %v393
  %v487 = vmul.f32 %v486, %v393
  %v488 = vmul.f32 %v487, %v486
  %v489 = vmul.f32 0.5, %v488
  %v490 = vsub.f32 1.5, %v489
  %v491 = vmul.f32 %v486, %v490
  %v492 = vmul.f32 %v393, %v491
  %vm493 = vcmp.eq.f32.partialorder %v393, inf
  %v494 = vsel %vm493, %v393, %v492
  %vm495 = vcmp.eq.f32.partialorder %v393, 0.0
  %v496 = vand.u32 %v393, 2147483648
  %v497 = vsel %vm495, %v496, %v494
  %v498 = vrsqrt.pop %v394
  %v499 = vmul.f32 %v498, %v394
  %v500 = vmul.f32 %v499, %v498
  %v501 = vmul.f32 0.5, %v500
  %v502 = vsub.f32 1.5, %v501
  %v503 = vmul.f32 %v498, %v502
  %v504 = vmul.f32 %v394, %v503
  %vm505 = vcmp.eq.f32.partialorder %v394, inf
  %v506 = vsel %vm505, %v394, %v504
  %vm507 = vcmp.eq.f32.partialorder %v394, 0.0
  %v508 = vand.u32 %v394, 2147483648
  %v509 = vsel %vm507, %v508, %v506
  %v510 = vrsqrt.pop %v395
  %v511 = vmul.f32 %v510, %v395
  %v512 = vmul.f32 %v511, %v510
  %v513 = vmul.f32 0.5, %v512
  %v514 = vsub.f32 1.5, %v513
  %v515 = vmul.f32 %v510, %v514
  %v516 = vmul.f32 %v395, %v515
  %vm517 = vcmp.eq.f32.partialorder %v395, inf
  %v518 = vsel %vm517, %v395, %v516
  %vm519 = vcmp.eq.f32.partialorder %v395, 0.0
  %v520 = vand.u32 %v395, 2147483648
  %v521 = vsel %vm519, %v520, %v518
  %v522 = vrsqrt.pop %v396
  %v523 = vmul.f32 %v522, %v396
  %v524 = vmul.f32 %v523, %v522
  %v525 = vmul.f32 0.5, %v524
  %v526 = vsub.f32 1.5, %v525
  %v527 = vmul.f32 %v522, %v526
  %v528 = vmul.f32 %v396, %v527
  %vm529 = vcmp.eq.f32.partialorder %v396, inf
  %v530 = vsel %vm529, %v396, %v528
  %vm531 = vcmp.eq.f32.partialorder %v396, 0.0
  %v532 = vand.u32 %v396, 2147483648
  %v533 = vsel %vm531, %v532, %v530
  %v534 = vrsqrt.pop %v397
  %v535 = vmul.f32 %v534, %v397
  %v536 = vmul.f32 %v535, %v534
  %v537 = vmul.f32 0.5, %v536
  %v538 = vsub.f32 1.5, %v537
  %v539 = vmul.f32 %v534, %v538
  %v540 = vmul.f32 %v397, %v539
  %vm541 = vcmp.eq.f32.partialorder %v397, inf
  %v542 = vsel %vm541, %v397, %v540
  %vm543 = vcmp.eq.f32.partialorder %v397, 0.0
  %v544 = vand.u32 %v397, 2147483648
  %v545 = vsel %vm543, %v544, %v542
  %v546 = vrsqrt.pop %v398
  %v547 = vmul.f32 %v546, %v398
  %v548 = vmul.f32 %v547, %v546
  %v549 = vmul.f32 0.5, %v548
  %v550 = vsub.f32 1.5, %v549
  %v551 = vmul.f32 %v546, %v550
  %v552 = vmul.f32 %v398, %v551
  %vm553 = vcmp.eq.f32.partialorder %v398, inf
  %v554 = vsel %vm553, %v398, %v552
  %vm555 = vcmp.eq.f32.partialorder %v398, 0.0
  %v556 = vand.u32 %v398, 2147483648
  %v557 = vsel %vm555, %v556, %v554
  %v558 = vrsqrt.pop %v399
  %v559 = vmul.f32 %v558, %v399
  %v560 = vmul.f32 %v559, %v558
  %v561 = vmul.f32 0.5, %v560
  %v562 = vsub.f32 1.5, %v561
  %v563 = vmul.f32 %v558, %v562
  %v564 = vmul.f32 %v399, %v563
  %vm565 = vcmp.eq.f32.partialorder %v399, inf
  %v566 = vsel %vm565, %v399, %v564
  %vm567 = vcmp.eq.f32.partialorder %v399, 0.0
  %v568 = vand.u32 %v399, 2147483648
  %v569 = vsel %vm567, %v568, %v566
  %v570 = vrsqrt.pop %v400
  %v571 = vmul.f32 %v570, %v400
  %v572 = vmul.f32 %v571, %v570
  %v573 = vmul.f32 0.5, %v572
  %v574 = vsub.f32 1.5, %v573
  %v575 = vmul.f32 %v570, %v574
  %v576 = vmul.f32 %v400, %v575
  %vm577 = vcmp.eq.f32.partialorder %v400, inf
  %v578 = vsel %vm577, %v400, %v576
  %vm579 = vcmp.eq.f32.partialorder %v400, 0.0
  %v580 = vand.u32 %v400, 2147483648
  %v581 = vsel %vm579, %v580, %v578
  %v582 = vrsqrt.pop %v401
  %v583 = vmul.f32 %v582, %v401
  %v584 = vmul.f32 %v583, %v582
  %v585 = vmul.f32 0.5, %v584
  %v586 = vsub.f32 1.5, %v585
  %v587 = vmul.f32 %v582, %v586
  %v588 = vmul.f32 %v401, %v587
  %vm589 = vcmp.eq.f32.partialorder %v401, inf
  %v590 = vsel %vm589, %v401, %v588
  %vm591 = vcmp.eq.f32.partialorder %v401, 0.0
  %v592 = vand.u32 %v401, 2147483648
  %v593 = vsel %vm591, %v592, %v590
  %v594 = vmul.f32 %v413, -10.0
  %v595 = vmul.f32 %v425, -10.0
  %v596 = vmul.f32 %v437, -10.0
  %v597 = vmul.f32 %v449, -10.0
  %v598 = vmul.f32 %v461, -10.0
  %v599 = vmul.f32 %v473, -10.0
  %v600 = vmul.f32 %v485, -10.0
  %v601 = vmul.f32 %v497, -10.0
  %v602 = vmul.f32 %v509, -10.0
  %v603 = vmul.f32 %v521, -10.0
  %v604 = vmul.f32 %v533, -10.0
  %v605 = vmul.f32 %v545, -10.0
  %v606 = vmul.f32 %v557, -10.0
  %v607 = vmul.f32 %v569, -10.0
  %v608 = vmul.f32 %v581, -10.0
  %v609 = vmul.f32 %v593, -10.0
  %v610 = vmul.f32 %v594, 1.442695
  %v611 = vpow.pop %v610
  %v612 = vmul.f32 %v595, 1.442695
  %v613 = vpow.pop %v612
  %v614 = vmul.f32 %v596, 1.442695
  %v615 = vpow.pop %v614
  %v616 = vmul.f32 %v597, 1.442695
  %v617 = vpow.pop %v616
  %v618 = vmul.f32 %v598, 1.442695
  %v619 = vpow.pop %v618
  %v620 = vmul.f32 %v599, 1.442695
  %v621 = vpow.pop %v620
  %v622 = vmul.f32 %v600, 1.442695
  %v623 = vpow.pop %v622
  %v624 = vmul.f32 %v601, 1.442695
  %v625 = vpow.pop %v624
  %v626 = vmul.f32 %v602, 1.442695
  %v627 = vpow.pop %v626
  %v628 = vmul.f32 %v603, 1.442695
  %v629 = vpow.pop %v628
  %v630 = vmul.f32 %v604, 1.442695
  %v631 = vpow.pop %v630
  %v632 = vmul.f32 %v605, 1.442695
  %v633 = vpow.pop %v632
  %v634 = vmul.f32 %v606, 1.442695
  %v635 = vpow.pop %v634
  %v636 = vmul.f32 %v607, 1.442695
  %v637 = vpow.pop %v636
  %v638 = vmul.f32 %v608, 1.442695
  %v639 = vpow.pop %v638
  %v640 = vmul.f32 %v609, 1.442695
  %v641 = vpow.pop %v640
  %v658 = vand.u32 %v611, 4294967168
  %v659 = vand.u32 %v613, 4294967168
  %v660 = vand.u32 %v615, 4294967168
  %v661 = vand.u32 %v617, 4294967168
  %v662 = vand.u32 %v619, 4294967168
  %v663 = vand.u32 %v621, 4294967168
  %v664 = vand.u32 %v623, 4294967168
  %v665 = vand.u32 %v625, 4294967168
  %v666 = vand.u32 %v627, 4294967168
  %v667 = vand.u32 %v629, 4294967168
  %v668 = vand.u32 %v631, 4294967168
  %v669 = vand.u32 %v633, 4294967168
  %v670 = vand.u32 %v635, 4294967168
  %v671 = vand.u32 %v637, 4294967168
  %v672 = vand.u32 %v639, 4294967168
  %v673 = vand.u32 %v641, 4294967168
  %v674 = vor.u32 %v658, %v201
  %v675 = vor.u32 %v659, %v202
  %v676 = vor.u32 %v660, %v203
  %v677 = vor.u32 %v661, %v204
  %v678 = vor.u32 %v662, %v205
  %v679 = vor.u32 %v663, %v206
  %v680 = vor.u32 %v664, %v207
  %v681 = vor.u32 %v665, %v208
  %v682 = vor.u32 %v666, %v209
  %v683 = vor.u32 %v667, %v210
  %v684 = vor.u32 %v668, %v211
  %v685 = vor.u32 %v669, %v212
  %v686 = vor.u32 %v670, %v213
  %v687 = vor.u32 %v671, %v214
  %v688 = vor.u32 %v672, %v215
  %v689 = vor.u32 %v673, %v216
  %vm690 = vcmp.lt.s32.totalorder %v201, 16
  %vm691 = vcmp.lt.s32.totalorder %v202, 16
  %vm692 = vcmp.lt.s32.totalorder %v203, 16
  %vm693 = vcmp.lt.s32.totalorder %v204, 16
  %vm694 = vcmp.lt.s32.totalorder %v205, 16
  %vm695 = vcmp.lt.s32.totalorder %v206, 16
  %vm696 = vcmp.lt.s32.totalorder %v207, 16
  %vm697 = vcmp.lt.s32.totalorder %v208, 16
  %vm698 = vcmp.lt.s32.totalorder %v209, 16
  %vm699 = vcmp.lt.s32.totalorder %v210, 16
  %vm700 = vcmp.lt.s32.totalorder %v211, 16
  %vm701 = vcmp.lt.s32.totalorder %v212, 16
  %vm702 = vcmp.lt.s32.totalorder %v213, 16
  %vm703 = vcmp.lt.s32.totalorder %v214, 16
  %vm704 = vcmp.lt.s32.totalorder %v215, 16
  %vm705 = vcmp.lt.s32.totalorder %v216, 16
  %v706 = vsel %vm690, %v674, 4294967295
  %v707 = vsel %vm691, %v675, 4294967295
  %v708 = vsel %vm692, %v676, 4294967295
  %v709 = vsel %vm693, %v677, 4294967295
  %v710 = vsel %vm694, %v678, 4294967295
  %v711 = vsel %vm695, %v679, 4294967295
  %v712 = vsel %vm696, %v680, 4294967295
  %v713 = vsel %vm697, %v681, 4294967295
  %v714 = vsel %vm698, %v682, 4294967295
  %v715 = vsel %vm699, %v683, 4294967295
  %v716 = vsel %vm700, %v684, 4294967295
  %v717 = vsel %vm701, %v685, 4294967295
  %v718 = vsel %vm702, %v686, 4294967295
  %v719 = vsel %vm703, %v687, 4294967295
  %v720 = vsel %vm704, %v688, 4294967295
  %v721 = vsel %vm705, %v689, 4294967295
  %v722 = vld [vmem:[%s3] sm:$0xff]
  %v723 = vld [vmem:[%s3 + $0x8] sm:$0xff]
  %v724 = vld [vmem:[%s3 + $0x10] sm:$0xff]
  %v725 = vld [vmem:[%s3 + $0x18] sm:$0xff]
  %v726 = vld [vmem:[%s3 + $0x20] sm:$0xff]
  %v727 = vld [vmem:[%s3 + $0x28] sm:$0xff]
  %v728 = vld [vmem:[%s3 + $0x30] sm:$0xff]
  %v729 = vld [vmem:[%s3 + $0x38] sm:$0xff]
  %v730 = vld [vmem:[%s3 + $0x40] sm:$0xff]
  %v731 = vld [vmem:[%s3 + $0x48] sm:$0xff]
  %v732 = vld [vmem:[%s3 + $0x50] sm:$0xff]
  %v733 = vld [vmem:[%s3 + $0x58] sm:$0xff]
  %v734 = vld [vmem:[%s3 + $0x60] sm:$0xff]
  %v735 = vld [vmem:[%s3 + $0x68] sm:$0xff]
  %v736 = vld [vmem:[%s3 + $0x70] sm:$0xff]
  %v737 = vld [vmem:[%s3 + $0x78] sm:$0xff]
  %v738 = vld [vmem:[%s5] sm:$0x1]
  %739 = vset.pattern.permute.xlu0 0
  %740 = vperm.xlu0 %739, %v722
  %v741 = vpop.permute.xlu0 %740
  %742 = vset.pattern.permute.xlu0 0
  %743 = vperm.xlu0 %742, %v723
  %v744 = vpop.permute.xlu0 %743
  %745 = vset.pattern.permute.xlu0 0
  %746 = vperm.xlu0 %745, %v724
  %v747 = vpop.permute.xlu0 %746
  %748 = vset.pattern.permute.xlu0 0
  %749 = vperm.xlu0 %748, %v725
  %v750 = vpop.permute.xlu0 %749
  %751 = vset.pattern.permute.xlu0 0
  %752 = vperm.xlu0 %751, %v726
  %v753 = vpop.permute.xlu0 %752
  %754 = vset.pattern.permute.xlu0 0
  %755 = vperm.xlu0 %754, %v727
  %v756 = vpop.permute.xlu0 %755
  %757 = vset.pattern.permute.xlu0 0
  %758 = vperm.xlu0 %757, %v728
  %v759 = vpop.permute.xlu0 %758
  %760 = vset.pattern.permute.xlu0 0
  %761 = vperm.xlu0 %760, %v729
  %v762 = vpop.permute.xlu0 %761
  %763 = vset.pattern.permute.xlu0 0
  %764 = vperm.xlu0 %763, %v730
  %v765 = vpop.permute.xlu0 %764
  %766 = vset.pattern.permute.xlu0 0
  %767 = vperm.xlu0 %766, %v731
  %v768 = vpop.permute.xlu0 %767
  %769 = vset.pattern.permute.xlu0 0
  %770 = vperm.xlu0 %769, %v732
  %v771 = vpop.permute.xlu0 %770
  %772 = vset.pattern.permute.xlu0 0
  %773 = vperm.xlu0 %772, %v733
  %v774 = vpop.permute.xlu0 %773
  %775 = vset.pattern.permute.xlu0 0
  %776 = vperm.xlu0 %775, %v734
  %v777 = vpop.permute.xlu0 %776
  %778 = vset.pattern.permute.xlu0 0
  %779 = vperm.xlu0 %778, %v735
  %v780 = vpop.permute.xlu0 %779
  %781 = vset.pattern.permute.xlu0 0
  %782 = vperm.xlu0 %781, %v736
  %v783 = vpop.permute.xlu0 %782
  %784 = vset.pattern.permute.xlu0 0
  %785 = vperm.xlu0 %784, %v737
  %v786 = vpop.permute.xlu0 %785
  %v787 = vperm.slane %v738, 0
  %vm788 = vcmp.eq.s32.totalorder %v741, %v787
  %vm789 = vcmp.eq.s32.totalorder %v744, %v787
  %vm790 = vcmp.eq.s32.totalorder %v747, %v787
  %vm791 = vcmp.eq.s32.totalorder %v750, %v787
  %vm792 = vcmp.eq.s32.totalorder %v753, %v787
  %vm793 = vcmp.eq.s32.totalorder %v756, %v787
  %vm794 = vcmp.eq.s32.totalorder %v759, %v787
  %vm795 = vcmp.eq.s32.totalorder %v762, %v787
  %vm796 = vcmp.eq.s32.totalorder %v765, %v787
  %vm797 = vcmp.eq.s32.totalorder %v768, %v787
  %vm798 = vcmp.eq.s32.totalorder %v771, %v787
  %vm799 = vcmp.eq.s32.totalorder %v774, %v787
  %vm800 = vcmp.eq.s32.totalorder %v777, %v787
  %vm801 = vcmp.eq.s32.totalorder %v780, %v787
  %vm802 = vcmp.eq.s32.totalorder %v783, %v787
  %vm803 = vcmp.eq.s32.totalorder %v786, %v787
  %v804 = vsel %vm788, %v706, 4294967295
  %v805 = vsel %vm789, %v707, 4294967295
  %v806 = vsel %vm790, %v708, 4294967295
  %v807 = vsel %vm791, %v709, 4294967295
  %v808 = vsel %vm792, %v710, 4294967295
  %v809 = vsel %vm793, %v711, 4294967295
  %v810 = vsel %vm794, %v712, 4294967295
  %v811 = vsel %vm795, %v713, 4294967295
  %v812 = vsel %vm796, %v714, 4294967295
  %v813 = vsel %vm797, %v715, 4294967295
  %v814 = vsel %vm798, %v716, 4294967295
  %v815 = vsel %vm799, %v717, 4294967295
  %v816 = vsel %vm800, %v718, 4294967295
  %v817 = vsel %vm801, %v719, 4294967295
  %v818 = vsel %vm802, %v720, 4294967295
  %v819 = vsel %vm803, %v721, 4294967295
  %v820 = vsel %vm788, 4294967295, %v706
  %v821 = vsel %vm789, 4294967295, %v707
  %v822 = vsel %vm790, 4294967295, %v708
  %v823 = vsel %vm791, 4294967295, %v709
  %v824 = vsel %vm792, 4294967295, %v710
  %v825 = vsel %vm793, 4294967295, %v711
  %v826 = vsel %vm794, 4294967295, %v712
  %v827 = vsel %vm795, 4294967295, %v713
  %v828 = vsel %vm796, 4294967295, %v714
  %v829 = vsel %vm797, 4294967295, %v715
  %v830 = vsel %vm798, 4294967295, %v716
  %v831 = vsel %vm799, 4294967295, %v717
  %v832 = vsel %vm800, 4294967295, %v718
  %v833 = vsel %vm801, 4294967295, %v719
  %v834 = vsel %vm802, 4294967295, %v720
  %v835 = vsel %vm803, 4294967295, %v721
  %vm836 = vcmp.gt.s32.totalorder %v804, %v808
  %v837 = vsel %vm836, %v804, %v808
  %vm838 = vcmp.gt.s32.totalorder %v805, %v809
  %v839 = vsel %vm838, %v805, %v809
  %vm840 = vcmp.gt.s32.totalorder %v806, %v810
  %v841 = vsel %vm840, %v806, %v810
  %vm842 = vcmp.gt.s32.totalorder %v807, %v811
  %v843 = vsel %vm842, %v807, %v811
  %vm844 = vcmp.gt.s32.totalorder %v837, %v812
  %v845 = vsel %vm844, %v837, %v812
  %vm846 = vcmp.gt.s32.totalorder %v839, %v813
  %v847 = vsel %vm846, %v839, %v813
  %vm848 = vcmp.gt.s32.totalorder %v841, %v814
  %v849 = vsel %vm848, %v841, %v814
  %vm850 = vcmp.gt.s32.totalorder %v843, %v815
  %v851 = vsel %vm850, %v843, %v815
  %vm852 = vcmp.gt.s32.totalorder %v845, %v816
  %v853 = vsel %vm852, %v845, %v816
  %vm854 = vcmp.gt.s32.totalorder %v847, %v817
  %v855 = vsel %vm854, %v847, %v817
  %vm856 = vcmp.gt.s32.totalorder %v849, %v818
  %v857 = vsel %vm856, %v849, %v818
  %vm858 = vcmp.gt.s32.totalorder %v851, %v819
  %v859 = vsel %vm858, %v851, %v819
  %vm860 = vcmp.gt.s32.totalorder %v853, %v855
  %v861 = vsel %vm860, %v853, %v855
  %vm862 = vcmp.gt.s32.totalorder %v857, %v859
  %v863 = vsel %vm862, %v857, %v859
  %vm864 = vcmp.gt.s32.totalorder %v861, %v863
  %v865 = vsel %vm864, %v861, %v863
  %v866 = vrot.slane %v865, 4
  %vm867 = vcmp.gt.s32.totalorder %v865, %v866
  %v868 = vsel %vm867, %v865, %v866
  %v869 = vrot.slane %v868, 2
  %vm870 = vcmp.gt.s32.totalorder %v868, %v869
  %v871 = vsel %vm870, %v868, %v869
  %v872 = vrot.slane %v871, 1
  %vm873 = vcmp.gt.s32.totalorder %v871, %v872
  %v874 = vsel %vm873, %v871, %v872
  %vm875 = vcmp.ge.s32.totalorder %v874, 0
  %v876 = vand.u32 %v874, 4294967168
  %v878 = vlog2.pop %v876
  %v879 = vmul.f32 %v878, 0.6931472
  %v880 = vsel %vm875, %v879, -inf
  %vm881 = vcmp.eq.s32.totalorder %v804, %v874
  %vm882 = vcmp.eq.s32.totalorder %v805, %v874
  %vm883 = vcmp.eq.s32.totalorder %v806, %v874
  %vm884 = vcmp.eq.s32.totalorder %v807, %v874
  %vm885 = vcmp.eq.s32.totalorder %v808, %v874
  %vm886 = vcmp.eq.s32.totalorder %v809, %v874
  %vm887 = vcmp.eq.s32.totalorder %v810, %v874
  %vm888 = vcmp.eq.s32.totalorder %v811, %v874
  %vm889 = vcmp.eq.s32.totalorder %v812, %v874
  %vm890 = vcmp.eq.s32.totalorder %v813, %v874
  %vm891 = vcmp.eq.s32.totalorder %v814, %v874
  %vm892 = vcmp.eq.s32.totalorder %v815, %v874
  %vm893 = vcmp.eq.s32.totalorder %v816, %v874
  %vm894 = vcmp.eq.s32.totalorder %v817, %v874
  %vm895 = vcmp.eq.s32.totalorder %v818, %v874
  %vm896 = vcmp.eq.s32.totalorder %v819, %v874
  %v897 = vsel %vm881, 4294967295, %v804
  %v898 = vsel %vm882, 4294967295, %v805
  %v899 = vsel %vm883, 4294967295, %v806
  %v900 = vsel %vm884, 4294967295, %v807
  %v901 = vsel %vm885, 4294967295, %v808
  %v902 = vsel %vm886, 4294967295, %v809
  %v903 = vsel %vm887, 4294967295, %v810
  %v904 = vsel %vm888, 4294967295, %v811
  %v905 = vsel %vm889, 4294967295, %v812
  %v906 = vsel %vm890, 4294967295, %v813
  %v907 = vsel %vm891, 4294967295, %v814
  %v908 = vsel %vm892, 4294967295, %v815
  %v909 = vsel %vm893, 4294967295, %v816
  %v910 = vsel %vm894, 4294967295, %v817
  %v911 = vsel %vm895, 4294967295, %v818
  %v912 = vsel %vm896, 4294967295, %v819
  %vm913 = vcmp.gt.s32.totalorder %v897, %v901
  %v914 = vsel %vm913, %v897, %v901
  %vm915 = vcmp.gt.s32.totalorder %v898, %v902
  %v916 = vsel %vm915, %v898, %v902
  %vm917 = vcmp.gt.s32.totalorder %v899, %v903
  %v918 = vsel %vm917, %v899, %v903
  %vm919 = vcmp.gt.s32.totalorder %v900, %v904
  %v920 = vsel %vm919, %v900, %v904
  %vm921 = vcmp.gt.s32.totalorder %v914, %v905
  %v922 = vsel %vm921, %v914, %v905
  %vm923 = vcmp.gt.s32.totalorder %v916, %v906
  %v924 = vsel %vm923, %v916, %v906
  %vm925 = vcmp.gt.s32.totalorder %v918, %v907
  %v926 = vsel %vm925, %v918, %v907
  %vm927 = vcmp.gt.s32.totalorder %v920, %v908
  %v928 = vsel %vm927, %v920, %v908
  %vm929 = vcmp.gt.s32.totalorder %v922, %v909
  %v930 = vsel %vm929, %v922, %v909
  %vm931 = vcmp.gt.s32.totalorder %v924, %v910
  %v932 = vsel %vm931, %v924, %v910
  %vm933 = vcmp.gt.s32.totalorder %v926, %v911
  %v934 = vsel %vm933, %v926, %v911
  %vm935 = vcmp.gt.s32.totalorder %v928, %v912
  %v936 = vsel %vm935, %v928, %v912
  %vm937 = vcmp.gt.s32.totalorder %v930, %v932
  %v938 = vsel %vm937, %v930, %v932
  %vm939 = vcmp.gt.s32.totalorder %v934, %v936
  %v940 = vsel %vm939, %v934, %v936
  %vm941 = vcmp.gt.s32.totalorder %v938, %v940
  %v942 = vsel %vm941, %v938, %v940
  %v943 = vrot.slane %v942, 4
  %vm944 = vcmp.gt.s32.totalorder %v942, %v943
  %v945 = vsel %vm944, %v942, %v943
  %v946 = vrot.slane %v945, 2
  %vm947 = vcmp.gt.s32.totalorder %v945, %v946
  %v948 = vsel %vm947, %v945, %v946
  %v949 = vrot.slane %v948, 1
  %vm950 = vcmp.gt.s32.totalorder %v948, %v949
  %v951 = vsel %vm950, %v948, %v949
  %vm952 = vcmp.eq.s32.totalorder %v897, %v951
  %vm953 = vcmp.eq.s32.totalorder %v898, %v951
  %vm954 = vcmp.eq.s32.totalorder %v899, %v951
  %vm955 = vcmp.eq.s32.totalorder %v900, %v951
  %vm956 = vcmp.eq.s32.totalorder %v901, %v951
  %vm957 = vcmp.eq.s32.totalorder %v902, %v951
  %vm958 = vcmp.eq.s32.totalorder %v903, %v951
  %vm959 = vcmp.eq.s32.totalorder %v904, %v951
  %vm960 = vcmp.eq.s32.totalorder %v905, %v951
  %vm961 = vcmp.eq.s32.totalorder %v906, %v951
  %vm962 = vcmp.eq.s32.totalorder %v907, %v951
  %vm963 = vcmp.eq.s32.totalorder %v908, %v951
  %vm964 = vcmp.eq.s32.totalorder %v909, %v951
  %vm965 = vcmp.eq.s32.totalorder %v910, %v951
  %vm966 = vcmp.eq.s32.totalorder %v911, %v951
  %vm967 = vcmp.eq.s32.totalorder %v912, %v951
  %v968 = vsel %vm952, 4294967295, %v897
  %v969 = vsel %vm953, 4294967295, %v898
  %v970 = vsel %vm954, 4294967295, %v899
  %v971 = vsel %vm955, 4294967295, %v900
  %v972 = vsel %vm956, 4294967295, %v901
  %v973 = vsel %vm957, 4294967295, %v902
  %v974 = vsel %vm958, 4294967295, %v903
  %v975 = vsel %vm959, 4294967295, %v904
  %v976 = vsel %vm960, 4294967295, %v905
  %v977 = vsel %vm961, 4294967295, %v906
  %v978 = vsel %vm962, 4294967295, %v907
  %v979 = vsel %vm963, 4294967295, %v908
  %v980 = vsel %vm964, 4294967295, %v909
  %v981 = vsel %vm965, 4294967295, %v910
  %v982 = vsel %vm966, 4294967295, %v911
  %v983 = vsel %vm967, 4294967295, %v912
  %vm984 = vcmp.gt.s32.totalorder %v968, %v972
  %v985 = vsel %vm984, %v968, %v972
  %vm986 = vcmp.gt.s32.totalorder %v969, %v973
  %v987 = vsel %vm986, %v969, %v973
  %vm988 = vcmp.gt.s32.totalorder %v970, %v974
  %v989 = vsel %vm988, %v970, %v974
  %vm990 = vcmp.gt.s32.totalorder %v971, %v975
  %v991 = vsel %vm990, %v971, %v975
  %vm992 = vcmp.gt.s32.totalorder %v985, %v976
  %v993 = vsel %vm992, %v985, %v976
  %vm994 = vcmp.gt.s32.totalorder %v987, %v977
  %v995 = vsel %vm994, %v987, %v977
  %vm996 = vcmp.gt.s32.totalorder %v989, %v978
  %v997 = vsel %vm996, %v989, %v978
  %vm998 = vcmp.gt.s32.totalorder %v991, %v979
  %v999 = vsel %vm998, %v991, %v979
  %vm1000 = vcmp.gt.s32.totalorder %v993, %v980
  %v1001 = vsel %vm1000, %v993, %v980
  %vm1002 = vcmp.gt.s32.totalorder %v995, %v981
  %v1003 = vsel %vm1002, %v995, %v981
  %vm1004 = vcmp.gt.s32.totalorder %v997, %v982
  %v1005 = vsel %vm1004, %v997, %v982
  %vm1006 = vcmp.gt.s32.totalorder %v999, %v983
  %v1007 = vsel %vm1006, %v999, %v983
  %vm1008 = vcmp.gt.s32.totalorder %v1001, %v1003
  %v1009 = vsel %vm1008, %v1001, %v1003
  %vm1010 = vcmp.gt.s32.totalorder %v1005, %v1007
  %v1011 = vsel %vm1010, %v1005, %v1007
  %vm1012 = vcmp.gt.s32.totalorder %v1009, %v1011
  %v1013 = vsel %vm1012, %v1009, %v1011
  %v1014 = vrot.slane %v1013, 4
  %vm1015 = vcmp.gt.s32.totalorder %v1013, %v1014
  %v1016 = vsel %vm1015, %v1013, %v1014
  %v1017 = vrot.slane %v1016, 2
  %vm1018 = vcmp.gt.s32.totalorder %v1016, %v1017
  %v1019 = vsel %vm1018, %v1016, %v1017
  %v1020 = vrot.slane %v1019, 1
  %vm1021 = vcmp.gt.s32.totalorder %v1019, %v1020
  %v1022 = vsel %vm1021, %v1019, %v1020
  %vm1023 = vcmp.eq.s32.totalorder %v968, %v1022
  %vm1024 = vcmp.eq.s32.totalorder %v969, %v1022
  %vm1025 = vcmp.eq.s32.totalorder %v970, %v1022
  %vm1026 = vcmp.eq.s32.totalorder %v971, %v1022
  %vm1027 = vcmp.eq.s32.totalorder %v972, %v1022
  %vm1028 = vcmp.eq.s32.totalorder %v973, %v1022
  %vm1029 = vcmp.eq.s32.totalorder %v974, %v1022
  %vm1030 = vcmp.eq.s32.totalorder %v975, %v1022
  %vm1031 = vcmp.eq.s32.totalorder %v976, %v1022
  %vm1032 = vcmp.eq.s32.totalorder %v977, %v1022
  %vm1033 = vcmp.eq.s32.totalorder %v978, %v1022
  %vm1034 = vcmp.eq.s32.totalorder %v979, %v1022
  %vm1035 = vcmp.eq.s32.totalorder %v980, %v1022
  %vm1036 = vcmp.eq.s32.totalorder %v981, %v1022
  %vm1037 = vcmp.eq.s32.totalorder %v982, %v1022
  %vm1038 = vcmp.eq.s32.totalorder %v983, %v1022
  %v1039 = vsel %vm1023, 4294967295, %v968
  %v1040 = vsel %vm1024, 4294967295, %v969
  %v1041 = vsel %vm1025, 4294967295, %v970
  %v1042 = vsel %vm1026, 4294967295, %v971
  %v1043 = vsel %vm1027, 4294967295, %v972
  %v1044 = vsel %vm1028, 4294967295, %v973
  %v1045 = vsel %vm1029, 4294967295, %v974
  %v1046 = vsel %vm1030, 4294967295, %v975
  %v1047 = vsel %vm1031, 4294967295, %v976
  %v1048 = vsel %vm1032, 4294967295, %v977
  %v1049 = vsel %vm1033, 4294967295, %v978
  %v1050 = vsel %vm1034, 4294967295, %v979
  %v1051 = vsel %vm1035, 4294967295, %v980
  %v1052 = vsel %vm1036, 4294967295, %v981
  %v1053 = vsel %vm1037, 4294967295, %v982
  %v1054 = vsel %vm1038, 4294967295, %v983
  %vm1055 = vcmp.gt.s32.totalorder %v1039, %v1043
  %v1056 = vsel %vm1055, %v1039, %v1043
  %vm1057 = vcmp.gt.s32.totalorder %v1040, %v1044
  %v1058 = vsel %vm1057, %v1040, %v1044
  %vm1059 = vcmp.gt.s32.totalorder %v1041, %v1045
  %v1060 = vsel %vm1059, %v1041, %v1045
  %vm1061 = vcmp.gt.s32.totalorder %v1042, %v1046
  %v1062 = vsel %vm1061, %v1042, %v1046
  %vm1063 = vcmp.gt.s32.totalorder %v1056, %v1047
  %v1064 = vsel %vm1063, %v1056, %v1047
  %vm1065 = vcmp.gt.s32.totalorder %v1058, %v1048
  %v1066 = vsel %vm1065, %v1058, %v1048
  %vm1067 = vcmp.gt.s32.totalorder %v1060, %v1049
  %v1068 = vsel %vm1067, %v1060, %v1049
  %vm1069 = vcmp.gt.s32.totalorder %v1062, %v1050
  %v1070 = vsel %vm1069, %v1062, %v1050
  %vm1071 = vcmp.gt.s32.totalorder %v1064, %v1051
  %v1072 = vsel %vm1071, %v1064, %v1051
  %vm1073 = vcmp.gt.s32.totalorder %v1066, %v1052
  %v1074 = vsel %vm1073, %v1066, %v1052
  %vm1075 = vcmp.gt.s32.totalorder %v1068, %v1053
  %v1076 = vsel %vm1075, %v1068, %v1053
  %vm1077 = vcmp.gt.s32.totalorder %v1070, %v1054
  %v1078 = vsel %vm1077, %v1070, %v1054
  %vm1079 = vcmp.gt.s32.totalorder %v1072, %v1074
  %v1080 = vsel %vm1079, %v1072, %v1074
  %vm1081 = vcmp.gt.s32.totalorder %v1076, %v1078
  %v1082 = vsel %vm1081, %v1076, %v1078
  %vm1083 = vcmp.gt.s32.totalorder %v1080, %v1082
  %v1084 = vsel %vm1083, %v1080, %v1082
  %v1085 = vrot.slane %v1084, 4
  %vm1086 = vcmp.gt.s32.totalorder %v1084, %v1085
  %v1087 = vsel %vm1086, %v1084, %v1085
  %v1088 = vrot.slane %v1087, 2
  %vm1089 = vcmp.gt.s32.totalorder %v1087, %v1088
  %v1090 = vsel %vm1089, %v1087, %v1088
  %v1091 = vrot.slane %v1090, 1
  %vm1092 = vcmp.gt.s32.totalorder %v1090, %v1091
  %v1093 = vsel %vm1092, %v1090, %v1091
  %vm1094 = vcmp.eq.s32.totalorder %v1039, %v1093
  %vm1095 = vcmp.eq.s32.totalorder %v1040, %v1093
  %vm1096 = vcmp.eq.s32.totalorder %v1041, %v1093
  %vm1097 = vcmp.eq.s32.totalorder %v1042, %v1093
  %vm1098 = vcmp.eq.s32.totalorder %v1043, %v1093
  %vm1099 = vcmp.eq.s32.totalorder %v1044, %v1093
  %vm1100 = vcmp.eq.s32.totalorder %v1045, %v1093
  %vm1101 = vcmp.eq.s32.totalorder %v1046, %v1093
  %vm1102 = vcmp.eq.s32.totalorder %v1047, %v1093
  %vm1103 = vcmp.eq.s32.totalorder %v1048, %v1093
  %vm1104 = vcmp.eq.s32.totalorder %v1049, %v1093
  %vm1105 = vcmp.eq.s32.totalorder %v1050, %v1093
  %vm1106 = vcmp.eq.s32.totalorder %v1051, %v1093
  %vm1107 = vcmp.eq.s32.totalorder %v1052, %v1093
  %vm1108 = vcmp.eq.s32.totalorder %v1053, %v1093
  %vm1109 = vcmp.eq.s32.totalorder %v1054, %v1093
  %v1110 = vsel %vm1094, 4294967295, %v1039
  %v1111 = vsel %vm1095, 4294967295, %v1040
  %v1112 = vsel %vm1096, 4294967295, %v1041
  %v1113 = vsel %vm1097, 4294967295, %v1042
  %v1114 = vsel %vm1098, 4294967295, %v1043
  %v1115 = vsel %vm1099, 4294967295, %v1044
  %v1116 = vsel %vm1100, 4294967295, %v1045
  %v1117 = vsel %vm1101, 4294967295, %v1046
  %v1118 = vsel %vm1102, 4294967295, %v1047
  %v1119 = vsel %vm1103, 4294967295, %v1048
  %v1120 = vsel %vm1104, 4294967295, %v1049
  %v1121 = vsel %vm1105, 4294967295, %v1050
  %v1122 = vsel %vm1106, 4294967295, %v1051
  %v1123 = vsel %vm1107, 4294967295, %v1052
  %v1124 = vsel %vm1108, 4294967295, %v1053
  %v1125 = vsel %vm1109, 4294967295, %v1054
  %vm1126 = vcmp.ge.s32.totalorder %v1110, 0
  %vm1127 = vcmp.ge.s32.totalorder %v1111, 0
  %vm1128 = vcmp.ge.s32.totalorder %v1112, 0
  %vm1129 = vcmp.ge.s32.totalorder %v1113, 0
  %vm1130 = vcmp.ge.s32.totalorder %v1114, 0
  %vm1131 = vcmp.ge.s32.totalorder %v1115, 0
  %vm1132 = vcmp.ge.s32.totalorder %v1116, 0
  %vm1133 = vcmp.ge.s32.totalorder %v1117, 0
  %vm1134 = vcmp.ge.s32.totalorder %v1118, 0
  %vm1135 = vcmp.ge.s32.totalorder %v1119, 0
  %vm1136 = vcmp.ge.s32.totalorder %v1120, 0
  %vm1137 = vcmp.ge.s32.totalorder %v1121, 0
  %vm1138 = vcmp.ge.s32.totalorder %v1122, 0
  %vm1139 = vcmp.ge.s32.totalorder %v1123, 0
  %vm1140 = vcmp.ge.s32.totalorder %v1124, 0
  %vm1141 = vcmp.ge.s32.totalorder %v1125, 0
  %v1142 = vsel %vm1126, %v611, 0.0
  %v1143 = vsel %vm1127, %v613, 0.0
  %v1144 = vsel %vm1128, %v615, 0.0
  %v1145 = vsel %vm1129, %v617, 0.0
  %v1146 = vsel %vm1130, %v619, 0.0
  %v1147 = vsel %vm1131, %v621, 0.0
  %v1148 = vsel %vm1132, %v623, 0.0
  %v1149 = vsel %vm1133, %v625, 0.0
  %v1150 = vsel %vm1134, %v627, 0.0
  %v1151 = vsel %vm1135, %v629, 0.0
  %v1152 = vsel %vm1136, %v631, 0.0
  %v1153 = vsel %vm1137, %v633, 0.0
  %v1154 = vsel %vm1138, %v635, 0.0
  %v1155 = vsel %vm1139, %v637, 0.0
  %v1156 = vsel %vm1140, %v639, 0.0
  %v1157 = vsel %vm1141, %v641, 0.0
  %v1158 = vadd.f32 %v1142, %v1143
  %v1159 = vadd.f32 %v1158, %v1144
  %v1160 = vadd.f32 %v1159, %v1145
  %v1161 = vadd.f32 %v1160, %v1146
  %v1162 = vadd.f32 %v1161, %v1147
  %v1163 = vadd.f32 %v1162, %v1148
  %v1164 = vadd.f32 %v1163, %v1149
  %v1165 = vadd.f32 %v1164, %v1150
  %v1166 = vadd.f32 %v1165, %v1151
  %v1167 = vadd.f32 %v1166, %v1152
  %v1168 = vadd.f32 %v1167, %v1153
  %v1169 = vadd.f32 %v1168, %v1154
  %v1170 = vadd.f32 %v1169, %v1155
  %v1171 = vadd.f32 %v1170, %v1156
  %v1172 = vadd.f32 %v1171, %v1157
  %v1173 = vrot.slane %v1172, 4
  %v1174 = vadd.f32 %v1172, %v1173
  %v1175 = vrot.slane %v1174, 2
  %v1176 = vadd.f32 %v1174, %v1175
  %v1177 = vrot.slane %v1176, 1
  %v1178 = vadd.f32 %v1176, %v1177
  %v1179 = vlog2.pop %v1178
  %v1180 = vmul.f32 %v1179, 0.6931472
  %v1181 = vsub.f32 0.0, %v880
  %v1182 = vadd.f32 %v1181, %v1180
  %v1183 = vadd.f32 %v1182, 40.0
  %v1184 = vmax.f32 %v1183, 0.0
  %vm1185 = vcmp.gt.s32.totalorder %v820, %v824
  %v1186 = vsel %vm1185, %v820, %v824
  %vm1187 = vcmp.gt.s32.totalorder %v821, %v825
  %v1188 = vsel %vm1187, %v821, %v825
  %vm1189 = vcmp.gt.s32.totalorder %v822, %v826
  %v1190 = vsel %vm1189, %v822, %v826
  %vm1191 = vcmp.gt.s32.totalorder %v823, %v827
  %v1192 = vsel %vm1191, %v823, %v827
  %vm1193 = vcmp.gt.s32.totalorder %v1186, %v828
  %v1194 = vsel %vm1193, %v1186, %v828
  %vm1195 = vcmp.gt.s32.totalorder %v1188, %v829
  %v1196 = vsel %vm1195, %v1188, %v829
  %vm1197 = vcmp.gt.s32.totalorder %v1190, %v830
  %v1198 = vsel %vm1197, %v1190, %v830
  %vm1199 = vcmp.gt.s32.totalorder %v1192, %v831
  %v1200 = vsel %vm1199, %v1192, %v831
  %vm1201 = vcmp.gt.s32.totalorder %v1194, %v832
  %v1202 = vsel %vm1201, %v1194, %v832
  %vm1203 = vcmp.gt.s32.totalorder %v1196, %v833
  %v1204 = vsel %vm1203, %v1196, %v833
  %vm1205 = vcmp.gt.s32.totalorder %v1198, %v834
  %v1206 = vsel %vm1205, %v1198, %v834
  %vm1207 = vcmp.gt.s32.totalorder %v1200, %v835
  %v1208 = vsel %vm1207, %v1200, %v835
  %vm1209 = vcmp.gt.s32.totalorder %v1202, %v1204
  %v1210 = vsel %vm1209, %v1202, %v1204
  %vm1211 = vcmp.gt.s32.totalorder %v1206, %v1208
  %v1212 = vsel %vm1211, %v1206, %v1208
  %vm1213 = vcmp.gt.s32.totalorder %v1210, %v1212
  %v1214 = vsel %vm1213, %v1210, %v1212
  %v1215 = vrot.slane %v1214, 4
  %vm1216 = vcmp.gt.s32.totalorder %v1214, %v1215
  %v1217 = vsel %vm1216, %v1214, %v1215
  %v1218 = vrot.slane %v1217, 2
  %vm1219 = vcmp.gt.s32.totalorder %v1217, %v1218
  %v1220 = vsel %vm1219, %v1217, %v1218
  %v1221 = vrot.slane %v1220, 1
  %vm1222 = vcmp.gt.s32.totalorder %v1220, %v1221
  %v1223 = vsel %vm1222, %v1220, %v1221
  %vm1224 = vcmp.ge.s32.totalorder %v1223, 0
  %v1225 = vand.u32 %v1223, 4294967168
  %v1227 = vlog2.pop %v1225
  %v1228 = vmul.f32 %v1227, 0.6931472
  %v1229 = vsel %vm1224, %v1228, -inf
  %vm1230 = vcmp.eq.s32.totalorder %v820, %v1223
  %vm1231 = vcmp.eq.s32.totalorder %v821, %v1223
  %vm1232 = vcmp.eq.s32.totalorder %v822, %v1223
  %vm1233 = vcmp.eq.s32.totalorder %v823, %v1223
  %vm1234 = vcmp.eq.s32.totalorder %v824, %v1223
  %vm1235 = vcmp.eq.s32.totalorder %v825, %v1223
  %vm1236 = vcmp.eq.s32.totalorder %v826, %v1223
  %vm1237 = vcmp.eq.s32.totalorder %v827, %v1223
  %vm1238 = vcmp.eq.s32.totalorder %v828, %v1223
  %vm1239 = vcmp.eq.s32.totalorder %v829, %v1223
  %vm1240 = vcmp.eq.s32.totalorder %v830, %v1223
  %vm1241 = vcmp.eq.s32.totalorder %v831, %v1223
  %vm1242 = vcmp.eq.s32.totalorder %v832, %v1223
  %vm1243 = vcmp.eq.s32.totalorder %v833, %v1223
  %vm1244 = vcmp.eq.s32.totalorder %v834, %v1223
  %vm1245 = vcmp.eq.s32.totalorder %v835, %v1223
  %v1246 = vsel %vm1230, 4294967295, %v820
  %v1247 = vsel %vm1231, 4294967295, %v821
  %v1248 = vsel %vm1232, 4294967295, %v822
  %v1249 = vsel %vm1233, 4294967295, %v823
  %v1250 = vsel %vm1234, 4294967295, %v824
  %v1251 = vsel %vm1235, 4294967295, %v825
  %v1252 = vsel %vm1236, 4294967295, %v826
  %v1253 = vsel %vm1237, 4294967295, %v827
  %v1254 = vsel %vm1238, 4294967295, %v828
  %v1255 = vsel %vm1239, 4294967295, %v829
  %v1256 = vsel %vm1240, 4294967295, %v830
  %v1257 = vsel %vm1241, 4294967295, %v831
  %v1258 = vsel %vm1242, 4294967295, %v832
  %v1259 = vsel %vm1243, 4294967295, %v833
  %v1260 = vsel %vm1244, 4294967295, %v834
  %v1261 = vsel %vm1245, 4294967295, %v835
  %vm1262 = vcmp.gt.s32.totalorder %v1246, %v1250
  %v1263 = vsel %vm1262, %v1246, %v1250
  %vm1264 = vcmp.gt.s32.totalorder %v1247, %v1251
  %v1265 = vsel %vm1264, %v1247, %v1251
  %vm1266 = vcmp.gt.s32.totalorder %v1248, %v1252
  %v1267 = vsel %vm1266, %v1248, %v1252
  %vm1268 = vcmp.gt.s32.totalorder %v1249, %v1253
  %v1269 = vsel %vm1268, %v1249, %v1253
  %vm1270 = vcmp.gt.s32.totalorder %v1263, %v1254
  %v1271 = vsel %vm1270, %v1263, %v1254
  %vm1272 = vcmp.gt.s32.totalorder %v1265, %v1255
  %v1273 = vsel %vm1272, %v1265, %v1255
  %vm1274 = vcmp.gt.s32.totalorder %v1267, %v1256
  %v1275 = vsel %vm1274, %v1267, %v1256
  %vm1276 = vcmp.gt.s32.totalorder %v1269, %v1257
  %v1277 = vsel %vm1276, %v1269, %v1257
  %vm1278 = vcmp.gt.s32.totalorder %v1271, %v1258
  %v1279 = vsel %vm1278, %v1271, %v1258
  %vm1280 = vcmp.gt.s32.totalorder %v1273, %v1259
  %v1281 = vsel %vm1280, %v1273, %v1259
  %vm1282 = vcmp.gt.s32.totalorder %v1275, %v1260
  %v1283 = vsel %vm1282, %v1275, %v1260
  %vm1284 = vcmp.gt.s32.totalorder %v1277, %v1261
  %v1285 = vsel %vm1284, %v1277, %v1261
  %vm1286 = vcmp.gt.s32.totalorder %v1279, %v1281
  %v1287 = vsel %vm1286, %v1279, %v1281
  %vm1288 = vcmp.gt.s32.totalorder %v1283, %v1285
  %v1289 = vsel %vm1288, %v1283, %v1285
  %vm1290 = vcmp.gt.s32.totalorder %v1287, %v1289
  %v1291 = vsel %vm1290, %v1287, %v1289
  %v1292 = vrot.slane %v1291, 4
  %vm1293 = vcmp.gt.s32.totalorder %v1291, %v1292
  %v1294 = vsel %vm1293, %v1291, %v1292
  %v1295 = vrot.slane %v1294, 2
  %vm1296 = vcmp.gt.s32.totalorder %v1294, %v1295
  %v1297 = vsel %vm1296, %v1294, %v1295
  %v1298 = vrot.slane %v1297, 1
  %vm1299 = vcmp.gt.s32.totalorder %v1297, %v1298
  %v1300 = vsel %vm1299, %v1297, %v1298
  %vm1301 = vcmp.eq.s32.totalorder %v1246, %v1300
  %vm1302 = vcmp.eq.s32.totalorder %v1247, %v1300
  %vm1303 = vcmp.eq.s32.totalorder %v1248, %v1300
  %vm1304 = vcmp.eq.s32.totalorder %v1249, %v1300
  %vm1305 = vcmp.eq.s32.totalorder %v1250, %v1300
  %vm1306 = vcmp.eq.s32.totalorder %v1251, %v1300
  %vm1307 = vcmp.eq.s32.totalorder %v1252, %v1300
  %vm1308 = vcmp.eq.s32.totalorder %v1253, %v1300
  %vm1309 = vcmp.eq.s32.totalorder %v1254, %v1300
  %vm1310 = vcmp.eq.s32.totalorder %v1255, %v1300
  %vm1311 = vcmp.eq.s32.totalorder %v1256, %v1300
  %vm1312 = vcmp.eq.s32.totalorder %v1257, %v1300
  %vm1313 = vcmp.eq.s32.totalorder %v1258, %v1300
  %vm1314 = vcmp.eq.s32.totalorder %v1259, %v1300
  %vm1315 = vcmp.eq.s32.totalorder %v1260, %v1300
  %vm1316 = vcmp.eq.s32.totalorder %v1261, %v1300
  %v1317 = vsel %vm1301, 4294967295, %v1246
  %v1318 = vsel %vm1302, 4294967295, %v1247
  %v1319 = vsel %vm1303, 4294967295, %v1248
  %v1320 = vsel %vm1304, 4294967295, %v1249
  %v1321 = vsel %vm1305, 4294967295, %v1250
  %v1322 = vsel %vm1306, 4294967295, %v1251
  %v1323 = vsel %vm1307, 4294967295, %v1252
  %v1324 = vsel %vm1308, 4294967295, %v1253
  %v1325 = vsel %vm1309, 4294967295, %v1254
  %v1326 = vsel %vm1310, 4294967295, %v1255
  %v1327 = vsel %vm1311, 4294967295, %v1256
  %v1328 = vsel %vm1312, 4294967295, %v1257
  %v1329 = vsel %vm1313, 4294967295, %v1258
  %v1330 = vsel %vm1314, 4294967295, %v1259
  %v1331 = vsel %vm1315, 4294967295, %v1260
  %v1332 = vsel %vm1316, 4294967295, %v1261
  %vm1333 = vcmp.gt.s32.totalorder %v1317, %v1321
  %v1334 = vsel %vm1333, %v1317, %v1321
  %vm1335 = vcmp.gt.s32.totalorder %v1318, %v1322
  %v1336 = vsel %vm1335, %v1318, %v1322
  %vm1337 = vcmp.gt.s32.totalorder %v1319, %v1323
  %v1338 = vsel %vm1337, %v1319, %v1323
  %vm1339 = vcmp.gt.s32.totalorder %v1320, %v1324
  %v1340 = vsel %vm1339, %v1320, %v1324
  %vm1341 = vcmp.gt.s32.totalorder %v1334, %v1325
  %v1342 = vsel %vm1341, %v1334, %v1325
  %vm1343 = vcmp.gt.s32.totalorder %v1336, %v1326
  %v1344 = vsel %vm1343, %v1336, %v1326
  %vm1345 = vcmp.gt.s32.totalorder %v1338, %v1327
  %v1346 = vsel %vm1345, %v1338, %v1327
  %vm1347 = vcmp.gt.s32.totalorder %v1340, %v1328
  %v1348 = vsel %vm1347, %v1340, %v1328
  %vm1349 = vcmp.gt.s32.totalorder %v1342, %v1329
  %v1350 = vsel %vm1349, %v1342, %v1329
  %vm1351 = vcmp.gt.s32.totalorder %v1344, %v1330
  %v1352 = vsel %vm1351, %v1344, %v1330
  %vm1353 = vcmp.gt.s32.totalorder %v1346, %v1331
  %v1354 = vsel %vm1353, %v1346, %v1331
  %vm1355 = vcmp.gt.s32.totalorder %v1348, %v1332
  %v1356 = vsel %vm1355, %v1348, %v1332
  %vm1357 = vcmp.gt.s32.totalorder %v1350, %v1352
  %v1358 = vsel %vm1357, %v1350, %v1352
  %vm1359 = vcmp.gt.s32.totalorder %v1354, %v1356
  %v1360 = vsel %vm1359, %v1354, %v1356
  %vm1361 = vcmp.gt.s32.totalorder %v1358, %v1360
  %v1362 = vsel %vm1361, %v1358, %v1360
  %v1363 = vrot.slane %v1362, 4
  %vm1364 = vcmp.gt.s32.totalorder %v1362, %v1363
  %v1365 = vsel %vm1364, %v1362, %v1363
  %v1366 = vrot.slane %v1365, 2
  %vm1367 = vcmp.gt.s32.totalorder %v1365, %v1366
  %v1368 = vsel %vm1367, %v1365, %v1366
  %v1369 = vrot.slane %v1368, 1
  %vm1370 = vcmp.gt.s32.totalorder %v1368, %v1369
  %v1371 = vsel %vm1370, %v1368, %v1369
  %vm1372 = vcmp.eq.s32.totalorder %v1317, %v1371
  %vm1373 = vcmp.eq.s32.totalorder %v1318, %v1371
  %vm1374 = vcmp.eq.s32.totalorder %v1319, %v1371
  %vm1375 = vcmp.eq.s32.totalorder %v1320, %v1371
  %vm1376 = vcmp.eq.s32.totalorder %v1321, %v1371
  %vm1377 = vcmp.eq.s32.totalorder %v1322, %v1371
  %vm1378 = vcmp.eq.s32.totalorder %v1323, %v1371
  %vm1379 = vcmp.eq.s32.totalorder %v1324, %v1371
  %vm1380 = vcmp.eq.s32.totalorder %v1325, %v1371
  %vm1381 = vcmp.eq.s32.totalorder %v1326, %v1371
  %vm1382 = vcmp.eq.s32.totalorder %v1327, %v1371
  %vm1383 = vcmp.eq.s32.totalorder %v1328, %v1371
  %vm1384 = vcmp.eq.s32.totalorder %v1329, %v1371
  %vm1385 = vcmp.eq.s32.totalorder %v1330, %v1371
  %vm1386 = vcmp.eq.s32.totalorder %v1331, %v1371
  %vm1387 = vcmp.eq.s32.totalorder %v1332, %v1371
  %v1388 = vsel %vm1372, 4294967295, %v1317
  %v1389 = vsel %vm1373, 4294967295, %v1318
  %v1390 = vsel %vm1374, 4294967295, %v1319
  %v1391 = vsel %vm1375, 4294967295, %v1320
  %v1392 = vsel %vm1376, 4294967295, %v1321
  %v1393 = vsel %vm1377, 4294967295, %v1322
  %v1394 = vsel %vm1378, 4294967295, %v1323
  %v1395 = vsel %vm1379, 4294967295, %v1324
  %v1396 = vsel %vm1380, 4294967295, %v1325
  %v1397 = vsel %vm1381, 4294967295, %v1326
  %v1398 = vsel %vm1382, 4294967295, %v1327
  %v1399 = vsel %vm1383, 4294967295, %v1328
  %v1400 = vsel %vm1384, 4294967295, %v1329
  %v1401 = vsel %vm1385, 4294967295, %v1330
  %v1402 = vsel %vm1386, 4294967295, %v1331
  %v1403 = vsel %vm1387, 4294967295, %v1332
  %vm1404 = vcmp.gt.s32.totalorder %v1388, %v1392
  %v1405 = vsel %vm1404, %v1388, %v1392
  %vm1406 = vcmp.gt.s32.totalorder %v1389, %v1393
  %v1407 = vsel %vm1406, %v1389, %v1393
  %vm1408 = vcmp.gt.s32.totalorder %v1390, %v1394
  %v1409 = vsel %vm1408, %v1390, %v1394
  %vm1410 = vcmp.gt.s32.totalorder %v1391, %v1395
  %v1411 = vsel %vm1410, %v1391, %v1395
  %vm1412 = vcmp.gt.s32.totalorder %v1405, %v1396
  %v1413 = vsel %vm1412, %v1405, %v1396
  %vm1414 = vcmp.gt.s32.totalorder %v1407, %v1397
  %v1415 = vsel %vm1414, %v1407, %v1397
  %vm1416 = vcmp.gt.s32.totalorder %v1409, %v1398
  %v1417 = vsel %vm1416, %v1409, %v1398
  %vm1418 = vcmp.gt.s32.totalorder %v1411, %v1399
  %v1419 = vsel %vm1418, %v1411, %v1399
  %vm1420 = vcmp.gt.s32.totalorder %v1413, %v1400
  %v1421 = vsel %vm1420, %v1413, %v1400
  %vm1422 = vcmp.gt.s32.totalorder %v1415, %v1401
  %v1423 = vsel %vm1422, %v1415, %v1401
  %vm1424 = vcmp.gt.s32.totalorder %v1417, %v1402
  %v1425 = vsel %vm1424, %v1417, %v1402
  %vm1426 = vcmp.gt.s32.totalorder %v1419, %v1403
  %v1427 = vsel %vm1426, %v1419, %v1403
  %vm1428 = vcmp.gt.s32.totalorder %v1421, %v1423
  %v1429 = vsel %vm1428, %v1421, %v1423
  %vm1430 = vcmp.gt.s32.totalorder %v1425, %v1427
  %v1431 = vsel %vm1430, %v1425, %v1427
  %vm1432 = vcmp.gt.s32.totalorder %v1429, %v1431
  %v1433 = vsel %vm1432, %v1429, %v1431
  %v1434 = vrot.slane %v1433, 4
  %vm1435 = vcmp.gt.s32.totalorder %v1433, %v1434
  %v1436 = vsel %vm1435, %v1433, %v1434
  %v1437 = vrot.slane %v1436, 2
  %vm1438 = vcmp.gt.s32.totalorder %v1436, %v1437
  %v1439 = vsel %vm1438, %v1436, %v1437
  %v1440 = vrot.slane %v1439, 1
  %vm1441 = vcmp.gt.s32.totalorder %v1439, %v1440
  %v1442 = vsel %vm1441, %v1439, %v1440
  %vm1443 = vcmp.eq.s32.totalorder %v1388, %v1442
  %vm1444 = vcmp.eq.s32.totalorder %v1389, %v1442
  %vm1445 = vcmp.eq.s32.totalorder %v1390, %v1442
  %vm1446 = vcmp.eq.s32.totalorder %v1391, %v1442
  %vm1447 = vcmp.eq.s32.totalorder %v1392, %v1442
  %vm1448 = vcmp.eq.s32.totalorder %v1393, %v1442
  %vm1449 = vcmp.eq.s32.totalorder %v1394, %v1442
  %vm1450 = vcmp.eq.s32.totalorder %v1395, %v1442
  %vm1451 = vcmp.eq.s32.totalorder %v1396, %v1442
  %vm1452 = vcmp.eq.s32.totalorder %v1397, %v1442
  %vm1453 = vcmp.eq.s32.totalorder %v1398, %v1442
  %vm1454 = vcmp.eq.s32.totalorder %v1399, %v1442
  %vm1455 = vcmp.eq.s32.totalorder %v1400, %v1442
  %vm1456 = vcmp.eq.s32.totalorder %v1401, %v1442
  %vm1457 = vcmp.eq.s32.totalorder %v1402, %v1442
  %vm1458 = vcmp.eq.s32.totalorder %v1403, %v1442
  %v1459 = vsel %vm1443, 4294967295, %v1388
  %v1460 = vsel %vm1444, 4294967295, %v1389
  %v1461 = vsel %vm1445, 4294967295, %v1390
  %v1462 = vsel %vm1446, 4294967295, %v1391
  %v1463 = vsel %vm1447, 4294967295, %v1392
  %v1464 = vsel %vm1448, 4294967295, %v1393
  %v1465 = vsel %vm1449, 4294967295, %v1394
  %v1466 = vsel %vm1450, 4294967295, %v1395
  %v1467 = vsel %vm1451, 4294967295, %v1396
  %v1468 = vsel %vm1452, 4294967295, %v1397
  %v1469 = vsel %vm1453, 4294967295, %v1398
  %v1470 = vsel %vm1454, 4294967295, %v1399
  %v1471 = vsel %vm1455, 4294967295, %v1400
  %v1472 = vsel %vm1456, 4294967295, %v1401
  %v1473 = vsel %vm1457, 4294967295, %v1402
  %v1474 = vsel %vm1458, 4294967295, %v1403
  %vm1475 = vcmp.gt.s32.totalorder %v1459, %v1463
  %v1476 = vsel %vm1475, %v1459, %v1463
  %vm1477 = vcmp.gt.s32.totalorder %v1460, %v1464
  %v1478 = vsel %vm1477, %v1460, %v1464
  %vm1479 = vcmp.gt.s32.totalorder %v1461, %v1465
  %v1480 = vsel %vm1479, %v1461, %v1465
  %vm1481 = vcmp.gt.s32.totalorder %v1462, %v1466
  %v1482 = vsel %vm1481, %v1462, %v1466
  %vm1483 = vcmp.gt.s32.totalorder %v1476, %v1467
  %v1484 = vsel %vm1483, %v1476, %v1467
  %vm1485 = vcmp.gt.s32.totalorder %v1478, %v1468
  %v1486 = vsel %vm1485, %v1478, %v1468
  %vm1487 = vcmp.gt.s32.totalorder %v1480, %v1469
  %v1488 = vsel %vm1487, %v1480, %v1469
  %vm1489 = vcmp.gt.s32.totalorder %v1482, %v1470
  %v1490 = vsel %vm1489, %v1482, %v1470
  %vm1491 = vcmp.gt.s32.totalorder %v1484, %v1471
  %v1492 = vsel %vm1491, %v1484, %v1471
  %vm1493 = vcmp.gt.s32.totalorder %v1486, %v1472
  %v1494 = vsel %vm1493, %v1486, %v1472
  %vm1495 = vcmp.gt.s32.totalorder %v1488, %v1473
  %v1496 = vsel %vm1495, %v1488, %v1473
  %vm1497 = vcmp.gt.s32.totalorder %v1490, %v1474
  %v1498 = vsel %vm1497, %v1490, %v1474
  %vm1499 = vcmp.gt.s32.totalorder %v1492, %v1494
  %v1500 = vsel %vm1499, %v1492, %v1494
  %vm1501 = vcmp.gt.s32.totalorder %v1496, %v1498
  %v1502 = vsel %vm1501, %v1496, %v1498
  %vm1503 = vcmp.gt.s32.totalorder %v1500, %v1502
  %v1504 = vsel %vm1503, %v1500, %v1502
  %v1505 = vrot.slane %v1504, 4
  %vm1506 = vcmp.gt.s32.totalorder %v1504, %v1505
  %v1507 = vsel %vm1506, %v1504, %v1505
  %v1508 = vrot.slane %v1507, 2
  %vm1509 = vcmp.gt.s32.totalorder %v1507, %v1508
  %v1510 = vsel %vm1509, %v1507, %v1508
  %v1511 = vrot.slane %v1510, 1
  %vm1512 = vcmp.gt.s32.totalorder %v1510, %v1511
  %v1513 = vsel %vm1512, %v1510, %v1511
  %vm1514 = vcmp.eq.s32.totalorder %v1459, %v1513
  %vm1515 = vcmp.eq.s32.totalorder %v1460, %v1513
  %vm1516 = vcmp.eq.s32.totalorder %v1461, %v1513
  %vm1517 = vcmp.eq.s32.totalorder %v1462, %v1513
  %vm1518 = vcmp.eq.s32.totalorder %v1463, %v1513
  %vm1519 = vcmp.eq.s32.totalorder %v1464, %v1513
  %vm1520 = vcmp.eq.s32.totalorder %v1465, %v1513
  %vm1521 = vcmp.eq.s32.totalorder %v1466, %v1513
  %vm1522 = vcmp.eq.s32.totalorder %v1467, %v1513
  %vm1523 = vcmp.eq.s32.totalorder %v1468, %v1513
  %vm1524 = vcmp.eq.s32.totalorder %v1469, %v1513
  %vm1525 = vcmp.eq.s32.totalorder %v1470, %v1513
  %vm1526 = vcmp.eq.s32.totalorder %v1471, %v1513
  %vm1527 = vcmp.eq.s32.totalorder %v1472, %v1513
  %vm1528 = vcmp.eq.s32.totalorder %v1473, %v1513
  %vm1529 = vcmp.eq.s32.totalorder %v1474, %v1513
  %v1530 = vsel %vm1514, 4294967295, %v1459
  %v1531 = vsel %vm1515, 4294967295, %v1460
  %v1532 = vsel %vm1516, 4294967295, %v1461
  %v1533 = vsel %vm1517, 4294967295, %v1462
  %v1534 = vsel %vm1518, 4294967295, %v1463
  %v1535 = vsel %vm1519, 4294967295, %v1464
  %v1536 = vsel %vm1520, 4294967295, %v1465
  %v1537 = vsel %vm1521, 4294967295, %v1466
  %v1538 = vsel %vm1522, 4294967295, %v1467
  %v1539 = vsel %vm1523, 4294967295, %v1468
  %v1540 = vsel %vm1524, 4294967295, %v1469
  %v1541 = vsel %vm1525, 4294967295, %v1470
  %v1542 = vsel %vm1526, 4294967295, %v1471
  %v1543 = vsel %vm1527, 4294967295, %v1472
  %v1544 = vsel %vm1528, 4294967295, %v1473
  %v1545 = vsel %vm1529, 4294967295, %v1474
  %vm1546 = vcmp.gt.s32.totalorder %v1530, %v1534
  %v1547 = vsel %vm1546, %v1530, %v1534
  %vm1548 = vcmp.gt.s32.totalorder %v1531, %v1535
  %v1549 = vsel %vm1548, %v1531, %v1535
  %vm1550 = vcmp.gt.s32.totalorder %v1532, %v1536
  %v1551 = vsel %vm1550, %v1532, %v1536
  %vm1552 = vcmp.gt.s32.totalorder %v1533, %v1537
  %v1553 = vsel %vm1552, %v1533, %v1537
  %vm1554 = vcmp.gt.s32.totalorder %v1547, %v1538
  %v1555 = vsel %vm1554, %v1547, %v1538
  %vm1556 = vcmp.gt.s32.totalorder %v1549, %v1539
  %v1557 = vsel %vm1556, %v1549, %v1539
  %vm1558 = vcmp.gt.s32.totalorder %v1551, %v1540
  %v1559 = vsel %vm1558, %v1551, %v1540
  %vm1560 = vcmp.gt.s32.totalorder %v1553, %v1541
  %v1561 = vsel %vm1560, %v1553, %v1541
  %vm1562 = vcmp.gt.s32.totalorder %v1555, %v1542
  %v1563 = vsel %vm1562, %v1555, %v1542
  %vm1564 = vcmp.gt.s32.totalorder %v1557, %v1543
  %v1565 = vsel %vm1564, %v1557, %v1543
  %vm1566 = vcmp.gt.s32.totalorder %v1559, %v1544
  %v1567 = vsel %vm1566, %v1559, %v1544
  %vm1568 = vcmp.gt.s32.totalorder %v1561, %v1545
  %v1569 = vsel %vm1568, %v1561, %v1545
  %vm1570 = vcmp.gt.s32.totalorder %v1563, %v1565
  %v1571 = vsel %vm1570, %v1563, %v1565
  %vm1572 = vcmp.gt.s32.totalorder %v1567, %v1569
  %v1573 = vsel %vm1572, %v1567, %v1569
  %vm1574 = vcmp.gt.s32.totalorder %v1571, %v1573
  %v1575 = vsel %vm1574, %v1571, %v1573
  %v1576 = vrot.slane %v1575, 4
  %vm1577 = vcmp.gt.s32.totalorder %v1575, %v1576
  %v1578 = vsel %vm1577, %v1575, %v1576
  %v1579 = vrot.slane %v1578, 2
  %vm1580 = vcmp.gt.s32.totalorder %v1578, %v1579
  %v1581 = vsel %vm1580, %v1578, %v1579
  %v1582 = vrot.slane %v1581, 1
  %vm1583 = vcmp.gt.s32.totalorder %v1581, %v1582
  %v1584 = vsel %vm1583, %v1581, %v1582
  %vm1585 = vcmp.eq.s32.totalorder %v1530, %v1584
  %vm1586 = vcmp.eq.s32.totalorder %v1531, %v1584
  %vm1587 = vcmp.eq.s32.totalorder %v1532, %v1584
  %vm1588 = vcmp.eq.s32.totalorder %v1533, %v1584
  %vm1589 = vcmp.eq.s32.totalorder %v1534, %v1584
  %vm1590 = vcmp.eq.s32.totalorder %v1535, %v1584
  %vm1591 = vcmp.eq.s32.totalorder %v1536, %v1584
  %vm1592 = vcmp.eq.s32.totalorder %v1537, %v1584
  %vm1593 = vcmp.eq.s32.totalorder %v1538, %v1584
  %vm1594 = vcmp.eq.s32.totalorder %v1539, %v1584
  %vm1595 = vcmp.eq.s32.totalorder %v1540, %v1584
  %vm1596 = vcmp.eq.s32.totalorder %v1541, %v1584
  %vm1597 = vcmp.eq.s32.totalorder %v1542, %v1584
  %vm1598 = vcmp.eq.s32.totalorder %v1543, %v1584
  %vm1599 = vcmp.eq.s32.totalorder %v1544, %v1584
  %vm1600 = vcmp.eq.s32.totalorder %v1545, %v1584
  %v1601 = vsel %vm1585, 4294967295, %v1530
  %v1602 = vsel %vm1586, 4294967295, %v1531
  %v1603 = vsel %vm1587, 4294967295, %v1532
  %v1604 = vsel %vm1588, 4294967295, %v1533
  %v1605 = vsel %vm1589, 4294967295, %v1534
  %v1606 = vsel %vm1590, 4294967295, %v1535
  %v1607 = vsel %vm1591, 4294967295, %v1536
  %v1608 = vsel %vm1592, 4294967295, %v1537
  %v1609 = vsel %vm1593, 4294967295, %v1538
  %v1610 = vsel %vm1594, 4294967295, %v1539
  %v1611 = vsel %vm1595, 4294967295, %v1540
  %v1612 = vsel %vm1596, 4294967295, %v1541
  %v1613 = vsel %vm1597, 4294967295, %v1542
  %v1614 = vsel %vm1598, 4294967295, %v1543
  %v1615 = vsel %vm1599, 4294967295, %v1544
  %v1616 = vsel %vm1600, 4294967295, %v1545
  %vm1617 = vcmp.ge.s32.totalorder %v1601, 0
  %vm1618 = vcmp.ge.s32.totalorder %v1602, 0
  %vm1619 = vcmp.ge.s32.totalorder %v1603, 0
  %vm1620 = vcmp.ge.s32.totalorder %v1604, 0
  %vm1621 = vcmp.ge.s32.totalorder %v1605, 0
  %vm1622 = vcmp.ge.s32.totalorder %v1606, 0
  %vm1623 = vcmp.ge.s32.totalorder %v1607, 0
  %vm1624 = vcmp.ge.s32.totalorder %v1608, 0
  %vm1625 = vcmp.ge.s32.totalorder %v1609, 0
  %vm1626 = vcmp.ge.s32.totalorder %v1610, 0
  %vm1627 = vcmp.ge.s32.totalorder %v1611, 0
  %vm1628 = vcmp.ge.s32.totalorder %v1612, 0
  %vm1629 = vcmp.ge.s32.totalorder %v1613, 0
  %vm1630 = vcmp.ge.s32.totalorder %v1614, 0
  %vm1631 = vcmp.ge.s32.totalorder %v1615, 0
  %vm1632 = vcmp.ge.s32.totalorder %v1616, 0
  %v1633 = vsel %vm1617, %v611, 0.0
  %v1634 = vsel %vm1618, %v613, 0.0
  %v1635 = vsel %vm1619, %v615, 0.0
  %v1636 = vsel %vm1620, %v617, 0.0
  %v1637 = vsel %vm1621, %v619, 0.0
  %v1638 = vsel %vm1622, %v621, 0.0
  %v1639 = vsel %vm1623, %v623, 0.0
  %v1640 = vsel %vm1624, %v625, 0.0
  %v1641 = vsel %vm1625, %v627, 0.0
  %v1642 = vsel %vm1626, %v629, 0.0
  %v1643 = vsel %vm1627, %v631, 0.0
  %v1644 = vsel %vm1628, %v633, 0.0
  %v1645 = vsel %vm1629, %v635, 0.0
  %v1646 = vsel %vm1630, %v637, 0.0
  %v1647 = vsel %vm1631, %v639, 0.0
  %v1648 = vsel %vm1632, %v641, 0.0
  %v1649 = vadd.f32 %v1633, %v1634
  %v1650 = vadd.f32 %v1649, %v1635
  %v1651 = vadd.f32 %v1650, %v1636
  %v1652 = vadd.f32 %v1651, %v1637
  %v1653 = vadd.f32 %v1652, %v1638
  %v1654 = vadd.f32 %v1653, %v1639
  %v1655 = vadd.f32 %v1654, %v1640
  %v1656 = vadd.f32 %v1655, %v1641
  %v1657 = vadd.f32 %v1656, %v1642
  %v1658 = vadd.f32 %v1657, %v1643
  %v1659 = vadd.f32 %v1658, %v1644
  %v1660 = vadd.f32 %v1659, %v1645
  %v1661 = vadd.f32 %v1660, %v1646
  %v1662 = vadd.f32 %v1661, %v1647
  %v1663 = vadd.f32 %v1662, %v1648
  %v1664 = vrot.slane %v1663, 4
  %v1665 = vadd.f32 %v1663, %v1664
  %v1666 = vrot.slane %v1665, 2
  %v1667 = vadd.f32 %v1665, %v1666
  %v1668 = vrot.slane %v1667, 1
  %v1669 = vadd.f32 %v1667, %v1668
  %v1670 = vlog2.pop %v1669
  %v1671 = vmul.f32 %v1670, 0.6931472
  %v1672 = vsub.f32 0.0, %v1229
  %v1673 = vadd.f32 %v1672, %v1671
  %v1674 = vadd.f32 %v1673, 6.0
  %v1675 = vmax.f32 %v1674, 0.0
  %vm1676 = vcmp.lt.s32.totalorder %v221, 16
  %v1677 = vmul.f32 %v1675, 0.5
  %v1678 = vadd.f32 %v1184, %v1677
  %v1679 = vsel %vm1676, %v1678, 0.0
  %1680 = vst [vmem:[%s6] sm:$0x1] %v1679
  // Predicated region
  $region26: #{_ipfl_impl.1} parent=0 // pred_check
    _
  $region27: #{_ipfl_impl.1} parent=0 // pred_check_branch
    %1682 = sbr.rel (0) target = $region29
  $region28: #{_ipfl_impl.1} parent=0 // pred_region
    _
  $region29: #{_ipfl_impl.1} parent=0 // pred_fallthru
    _
  // Predicated region
  $region30: #{_ipfl_impl.1} parent=0 // pred_check
    _
  $region31: #{_ipfl_impl.1} parent=0 // pred_check_branch
    %1684 = sbr.rel (0) target = $region33
  $region32: #{_ipfl_impl.1} parent=0 // pred_region
    _
  $region33: #{_ipfl_impl.1} parent=0 // pred_fallthru
    _

// kernel: _ipfl_impl.1
$region0: #{_ipfl_impl.1}
  #allocation0 [shape = 'u32[]', space=smem, size = 0x4, offset = 0x4, fixed_abs, tag = 'smem constant byte address 0x4 - core index']
  #allocation1 [shape = 'u32[72,128]{1,0:T(1,128)}', space=vmem, size = 0x9000, scoped, tag = 'internal scratch']
  %s0 = inlined_call_operand.vmem [shape: bf16[128,128], index: 0, kind: input, shape index: {}]
  %s1 = inlined_call_operand.vmem [shape: bf16[128,128], index: 1, kind: input, shape index: {}]
  %s2 = inlined_call_operand.vmem [shape: f32[128,1], index: 2, kind: input, shape index: {}]
  %s3 = inlined_call_operand.vmem [shape: s32[128,1], index: 3, kind: input, shape index: {}]
  %s4 = inlined_call_operand.vmem [shape: f32[1,128], index: 4, kind: input, shape index: {}]
  %s5 = inlined_call_operand.vmem [shape: s32[1,128], index: 5, kind: input, shape index: {}]
  %s6 = inlined_call_operand.vmem [shape: f32[1,128], index: 6, kind: output, shape index: {}]
  %s7 = sld [smem:[#allocation0]]
  $region34: #{_ipfl_impl.1} parent=0
    _
  %s9 = ssub.s32 1, %s7
  %s10 = scalar_select 0, %s9, %s7
  // Predicated region
  $region2: #{_ipfl_impl.1} parent=0 // pred_check
    _
  $region3: #{_ipfl_impl.1} parent=0 // pred_check_branch
    %12 = sbr.rel (0) target = $region5
  $region4: #{_ipfl_impl.1} parent=0 // pred_region
    _
  $region5: #{_ipfl_impl.1} parent=0 // pred_fallthru
    _
  // Predicated region
  $region6: #{_ipfl_impl.1} parent=0 // pred_check
    _
  $region7: #{_ipfl_impl.1} parent=0 // pred_check_branch
    %14 = sbr.rel (0) target = $region9
  $region8: #{_ipfl_impl.1} parent=0 // pred_region
    _
  $region9: #{_ipfl_impl.1} parent=0 // pred_fallthru
    _
  // Predicated region
  $region10: #{_ipfl_impl.1} parent=0 // pred_check
    _
  $region11: #{_ipfl_impl.1} parent=0 // pred_check_branch
    %16 = sbr.rel (0) target = $region13
  $region12: #{_ipfl_impl.1} parent=0 // pred_region
    _
  $region13: #{_ipfl_impl.1} parent=0 // pred_fallthru
    _
  // Predicated region
  $region14: #{_ipfl_impl.1} parent=0 // pred_check
    _
  $region15: #{_ipfl_impl.1} parent=0 // pred_check_branch
    %18 = sbr.rel (0) target = $region17
  $region16: #{_ipfl_impl.1} parent=0 // pred_region
    _
  $region17: #{_ipfl_impl.1} parent=0 // pred_fallthru
    _
  // Predicated region
  $region18: #{_ipfl_impl.1} parent=0 // pred_check
    _
  $region19: #{_ipfl_impl.1} parent=0 // pred_check_branch
    %20 = sbr.rel (0) target = $region21
  $region20: #{_ipfl_impl.1} parent=0 // pred_region
    _
  $region21: #{_ipfl_impl.1} parent=0 // pred_fallthru
    _
  // Predicated region
  $region22: #{_ipfl_impl.1} parent=0 // pred_check
    _
  $region23: #{_ipfl_impl.1} parent=0 // pred_check_branch
    %22 = sbr.rel (0) target = $region25
  $region24: #{_ipfl_impl.1} parent=0 // pred_region
    _
  $region25: #{_ipfl_impl.1} parent=0 // pred_fallthru
    _
  %v23 = vld [vmem:[%s1] sm:$0xf]
  %v24 = vld [vmem:[%s1 + $0x4] sm:$0xf]
  %v25 = vld [vmem:[%s1 + $0x8] sm:$0xf]
  %v26 = vld [vmem:[%s1 + $0xc] sm:$0xf]
  %v27 = vld [vmem:[%s1 + $0x10] sm:$0xf]
  %v28 = vld [vmem:[%s1 + $0x14] sm:$0xf]
  %v29 = vld [vmem:[%s1 + $0x18] sm:$0xf]
  %v30 = vld [vmem:[%s1 + $0x1c] sm:$0xf]
  %v31 = vld [vmem:[%s1 + $0x20] sm:$0xf]
  %v32 = vld [vmem:[%s1 + $0x24] sm:$0xf]
  %v33 = vld [vmem:[%s1 + $0x28] sm:$0xf]
  %v34 = vld [vmem:[%s1 + $0x2c] sm:$0xf]
  %v35 = vld [vmem:[%s1 + $0x30] sm:$0xf]
  %v36 = vld [vmem:[%s1 + $0x34] sm:$0xf]
  %v37 = vld [vmem:[%s1 + $0x38] sm:$0xf]
  %v38 = vld [vmem:[%s1 + $0x3c] sm:$0xf]
  %v39 = vld [vmem:[%s0] sm:$0xf]
  %v40 = vld [vmem:[%s0 + $0x4] sm:$0xf]
  %v41 = vld [vmem:[%s0 + $0x8] sm:$0xf]
  %v42 = vld [vmem:[%s0 + $0xc] sm:$0xf]
  %v43 = vld [vmem:[%s0 + $0x10] sm:$0xf]
  %v44 = vld [vmem:[%s0 + $0x14] sm:$0xf]
  %v45 = vld [vmem:[%s0 + $0x18] sm:$0xf]
  %v46 = vld [vmem:[%s0 + $0x1c] sm:$0xf]
  %v47 = vld [vmem:[%s0 + $0x20] sm:$0xf]
  %v48 = vld [vmem:[%s0 + $0x24] sm:$0xf]
  %v49 = vld [vmem:[%s0 + $0x28] sm:$0xf]
  %v50 = vld [vmem:[%s0 + $0x2c] sm:$0xf]
  %v51 = vld [vmem:[%s0 + $0x30] sm:$0xf]
  %v52 = vld [vmem:[%s0 + $0x34] sm:$0xf]
  %v53 = vld [vmem:[%s0 + $0x38] sm:$0xf]
  %v54 = vld [vmem:[%s0 + $0x3c] sm:$0xf]
  %v71 = vunpack.c.l.b16 %v23
  %v72 = vunpack.c.l.b16 %v24
  %v73 = vunpack.c.l.b16 %v25
  %v74 = vunpack.c.l.b16 %v26
  %v75 = vunpack.c.l.b16 %v27
  %v76 = vunpack.c.l.b16 %v28
  %v77 = vunpack.c.l.b16 %v29
  %v78 = vunpack.c.l.b16 %v30
  %v79 = vunpack.c.l.b16 %v31
  %v80 = vunpack.c.l.b16 %v32
  %v81 = vunpack.c.l.b16 %v33
  %v82 = vunpack.c.l.b16 %v34
  %v83 = vunpack.c.l.b16 %v35
  %v84 = vunpack.c.l.b16 %v36
  %v85 = vunpack.c.l.b16 %v37
  %v86 = vunpack.c.l.b16 %v38
  %v87 = vpack.c.b16 %v72, %v71
  %v88 = vpack.c.b16 %v74, %v73
  %v89 = vpack.c.b16 %v76, %v75
  %v90 = vpack.c.b16 %v78, %v77
  %v91 = vpack.c.b16 %v80, %v79
  %v92 = vpack.c.b16 %v82, %v81
  %v93 = vpack.c.b16 %v84, %v83
  %v94 = vpack.c.b16 %v86, %v85
  %v119 = vunpack.c.l.b16 %v39
  %v120 = vunpack.c.l.b16 %v40
  %v121 = vunpack.c.l.b16 %v41
  %v122 = vunpack.c.l.b16 %v42
  %v123 = vunpack.c.l.b16 %v43
  %v124 = vunpack.c.l.b16 %v44
  %v125 = vunpack.c.l.b16 %v45
  %v126 = vunpack.c.l.b16 %v46
  %v127 = vunpack.c.l.b16 %v47
  %v128 = vunpack.c.l.b16 %v48
  %v129 = vunpack.c.l.b16 %v49
  %v130 = vunpack.c.l.b16 %v50
  %v131 = vunpack.c.l.b16 %v51
  %v132 = vunpack.c.l.b16 %v52
  %v133 = vunpack.c.l.b16 %v53
  %v134 = vunpack.c.l.b16 %v54
  %v135 = vpack.c.b16 %v120, %v119
  %v136 = vpack.c.b16 %v122, %v121
  %v137 = vpack.c.b16 %v124, %v123
  %v138 = vpack.c.b16 %v126, %v125
  %v139 = vpack.c.b16 %v128, %v127
  %v140 = vpack.c.b16 %v130, %v129
  %v141 = vpack.c.b16 %v132, %v131
  %v142 = vpack.c.b16 %v134, %v133
  %151 = vmatpush.bf16.msra.mxu0 %v142
  %152 = vmatpush.bf16.msra.mxu0 %v141
  %153 = vmatpush.bf16.msra.mxu0 %v140
  %154 = vmatpush.bf16.msra.mxu0 %v139
  %155 = vmatpush.bf16.msra.mxu0 %v138
  %156 = vmatpush.bf16.msra.mxu0 %v137
  %157 = vmatpush.bf16.msra.mxu0 %v136
  %158 = vmatpush.bf16.msra.mxu0 %v135
  %159 = vmatmul.bf16.gmra.mxu0 %v87
  %v160 = vpop.f32.mrf.mxu0
  %v161 = vadd.f32 0.0, %v160
  %v162 = vpop.f32.mrf.mxu0
  %v163 = vadd.f32 0.0, %v162
  %164 = vmatmul.bf16.gmra.mxu0 %v88
  %v165 = vpop.f32.mrf.mxu0
  %v166 = vadd.f32 0.0, %v165
  %v167 = vpop.f32.mrf.mxu0
  %v168 = vadd.f32 0.0, %v167
  %169 = vmatmul.bf16.gmra.mxu0 %v89
  %v170 = vpop.f32.mrf.mxu0
  %v171 = vadd.f32 0.0, %v170
  %v172 = vpop.f32.mrf.mxu0
  %v173 = vadd.f32 0.0, %v172
  %174 = vmatmul.bf16.gmra.mxu0 %v90
  %v175 = vpop.f32.mrf.mxu0
  %v176 = vadd.f32 0.0, %v175
  %v177 = vpop.f32.mrf.mxu0
  %v178 = vadd.f32 0.0, %v177
  %179 = vmatmul.bf16.gmra.mxu0 %v91
  %v180 = vpop.f32.mrf.mxu0
  %v181 = vadd.f32 0.0, %v180
  %v182 = vpop.f32.mrf.mxu0
  %v183 = vadd.f32 0.0, %v182
  %184 = vmatmul.bf16.gmra.mxu0 %v92
  %v185 = vpop.f32.mrf.mxu0
  %v186 = vadd.f32 0.0, %v185
  %v187 = vpop.f32.mrf.mxu0
  %v188 = vadd.f32 0.0, %v187
  %189 = vmatmul.bf16.gmra.mxu0 %v93
  %v190 = vpop.f32.mrf.mxu0
  %v191 = vadd.f32 0.0, %v190
  %v192 = vpop.f32.mrf.mxu0
  %v193 = vadd.f32 0.0, %v192
  %194 = vmatmul.bf16.gmra.mxu0 %v94
  %v195 = vpop.f32.mrf.mxu0
  %v196 = vadd.f32 0.0, %v195
  %v197 = vpop.f32.mrf.mxu0
  %v198 = vadd.f32 0.0, %v197
  %199 = vdwg.mxu0
  %v200 = vlaneseq
  %v201 = vshrl.u32 %v200, 7
  %v202 = vadd.s32 %v201, 8
  %v203 = vadd.s32 %v201, 16
  %v204 = vadd.s32 %v201, 24
  %v205 = vadd.s32 %v201, 32
  %v206 = vadd.s32 %v201, 40
  %v207 = vadd.s32 %v201, 48
  %v208 = vadd.s32 %v201, 56
  %v209 = vadd.s32 %v201, 64
  %v210 = vadd.s32 %v201, 72
  %v211 = vadd.s32 %v201, 80
  %v212 = vadd.s32 %v201, 88
  %v213 = vadd.s32 %v201, 96
  %v214 = vadd.s32 %v201, 104
  %v215 = vadd.s32 %v201, 112
  %v216 = vadd.s32 %v201, 120
  %v217 = vlaneseq
  %v218 = vand.u32 %v217, 127
  %s219 = smul.u32 0, 128
  %v220 = vstv %s219
  %v221 = vadd.s32 %v218, %v220
  %v222 = vld [vmem:[%s4] sm:$0x1]
  %v223 = vld [vmem:[%s2] sm:$0xff]
  %v224 = vld [vmem:[%s2 + $0x8] sm:$0xff]
  %v225 = vld [vmem:[%s2 + $0x10] sm:$0xff]
  %v226 = vld [vmem:[%s2 + $0x18] sm:$0xff]
  %v227 = vld [vmem:[%s2 + $0x20] sm:$0xff]
  %v228 = vld [vmem:[%s2 + $0x28] sm:$0xff]
  %v229 = vld [vmem:[%s2 + $0x30] sm:$0xff]
  %v230 = vld [vmem:[%s2 + $0x38] sm:$0xff]
  %v231 = vld [vmem:[%s2 + $0x40] sm:$0xff]
  %v232 = vld [vmem:[%s2 + $0x48] sm:$0xff]
  %v233 = vld [vmem:[%s2 + $0x50] sm:$0xff]
  %v234 = vld [vmem:[%s2 + $0x58] sm:$0xff]
  %v235 = vld [vmem:[%s2 + $0x60] sm:$0xff]
  %v236 = vld [vmem:[%s2 + $0x68] sm:$0xff]
  %v237 = vld [vmem:[%s2 + $0x70] sm:$0xff]
  %v238 = vld [vmem:[%s2 + $0x78] sm:$0xff]
  %v240 = vperm.slane %v222, 0
  %243 = vset.pattern.permute.xlu0 0
  %244 = vperm.xlu0 %243, %v223
  %v245 = vpop.permute.xlu0 %244
  %248 = vset.pattern.permute.xlu0 0
  %249 = vperm.xlu0 %248, %v224
  %v250 = vpop.permute.xlu0 %249
  %253 = vset.pattern.permute.xlu0 0
  %254 = vperm.xlu0 %253, %v225
  %v255 = vpop.permute.xlu0 %254
  %258 = vset.pattern.permute.xlu0 0
  %259 = vperm.xlu0 %258, %v226
  %v260 = vpop.permute.xlu0 %259
  %263 = vset.pattern.permute.xlu0 0
  %264 = vperm.xlu0 %263, %v227
  %v265 = vpop.permute.xlu0 %264
  %268 = vset.pattern.permute.xlu0 0
  %269 = vperm.xlu0 %268, %v228
  %v270 = vpop.permute.xlu0 %269
  %273 = vset.pattern.permute.xlu0 0
  %274 = vperm.xlu0 %273, %v229
  %v275 = vpop.permute.xlu0 %274
  %278 = vset.pattern.permute.xlu0 0
  %279 = vperm.xlu0 %278, %v230
  %v280 = vpop.permute.xlu0 %279
  %283 = vset.pattern.permute.xlu0 0
  %284 = vperm.xlu0 %283, %v231
  %v285 = vpop.permute.xlu0 %284
  %288 = vset.pattern.permute.xlu0 0
  %289 = vperm.xlu0 %288, %v232
  %v290 = vpop.permute.xlu0 %289
  %293 = vset.pattern.permute.xlu0 0
  %294 = vperm.xlu0 %293, %v233
  %v295 = vpop.permute.xlu0 %294
  %298 = vset.pattern.permute.xlu0 0
  %299 = vperm.xlu0 %298, %v234
  %v300 = vpop.permute.xlu0 %299
  %303 = vset.pattern.permute.xlu0 0
  %304 = vperm.xlu0 %303, %v235
  %v305 = vpop.permute.xlu0 %304
  %308 = vset.pattern.permute.xlu0 0
  %309 = vperm.xlu0 %308, %v236
  %v310 = vpop.permute.xlu0 %309
  %313 = vset.pattern.permute.xlu0 0
  %314 = vperm.xlu0 %313, %v237
  %v315 = vpop.permute.xlu0 %314
  %318 = vset.pattern.permute.xlu0 0
  %319 = vperm.xlu0 %318, %v238
  %v320 = vpop.permute.xlu0 %319
  %v322 = vadd.f32 %v240, %v245
  %v323 = vadd.f32 %v240, %v250
  %v324 = vadd.f32 %v240, %v255
  %v325 = vadd.f32 %v240, %v260
  %v326 = vadd.f32 %v240, %v265
  %v327 = vadd.f32 %v240, %v270
  %v328 = vadd.f32 %v240, %v275
  %v329 = vadd.f32 %v240, %v280
  %v330 = vadd.f32 %v240, %v285
  %v331 = vadd.f32 %v240, %v290
  %v332 = vadd.f32 %v240, %v295
  %v333 = vadd.f32 %v240, %v300
  %v334 = vadd.f32 %v240, %v305
  %v335 = vadd.f32 %v240, %v310
  %v336 = vadd.f32 %v240, %v315
  %v337 = vadd.f32 %v240, %v320
  %v338 = vadd.f32 %v322, %v161
  %v339 = vadd.f32 %v323, %v163
  %v340 = vadd.f32 %v324, %v166
  %v341 = vadd.f32 %v325, %v168
  %v342 = vadd.f32 %v326, %v171
  %v343 = vadd.f32 %v327, %v173
  %v344 = vadd.f32 %v328, %v176
  %v345 = vadd.f32 %v329, %v178
  %v346 = vadd.f32 %v330, %v181
  %v347 = vadd.f32 %v331, %v183
  %v348 = vadd.f32 %v332, %v186
  %v349 = vadd.f32 %v333, %v188
  %v350 = vadd.f32 %v334, %v191
  %v351 = vadd.f32 %v335, %v193
  %v352 = vadd.f32 %v336, %v196
  %v353 = vadd.f32 %v337, %v198
  %vm354 = vcmp.eq.s32.totalorder %v201, %v221
  %vm355 = vcmp.eq.s32.totalorder %v202, %v221
  %vm356 = vcmp.eq.s32.totalorder %v203, %v221
  %vm357 = vcmp.eq.s32.totalorder %v204, %v221
  %vm358 = vcmp.eq.s32.totalorder %v205, %v221
  %vm359 = vcmp.eq.s32.totalorder %v206, %v221
  %vm360 = vcmp.eq.s32.totalorder %v207, %v221
  %vm361 = vcmp.eq.s32.totalorder %v208, %v221
  %vm362 = vcmp.eq.s32.totalorder %v209, %v221
  %vm363 = vcmp.eq.s32.totalorder %v210, %v221
  %vm364 = vcmp.eq.s32.totalorder %v211, %v221
  %vm365 = vcmp.eq.s32.totalorder %v212, %v221
  %vm366 = vcmp.eq.s32.totalorder %v213, %v221
  %vm367 = vcmp.eq.s32.totalorder %v214, %v221
  %vm368 = vcmp.eq.s32.totalorder %v215, %v221
  %vm369 = vcmp.eq.s32.totalorder %v216, %v221
  %v370 = vsel %vm354, 1e-05, %v338
  %v371 = vsel %vm355, 1e-05, %v339
  %v372 = vsel %vm356, 1e-05, %v340
  %v373 = vsel %vm357, 1e-05, %v341
  %v374 = vsel %vm358, 1e-05, %v342
  %v375 = vsel %vm359, 1e-05, %v343
  %v376 = vsel %vm360, 1e-05, %v344
  %v377 = vsel %vm361, 1e-05, %v345
  %v378 = vsel %vm362, 1e-05, %v346
  %v379 = vsel %vm363, 1e-05, %v347
  %v380 = vsel %vm364, 1e-05, %v348
  %v381 = vsel %vm365, 1e-05, %v349
  %v382 = vsel %vm366, 1e-05, %v350
  %v383 = vsel %vm367, 1e-05, %v351
  %v384 = vsel %vm368, 1e-05, %v352
  %v385 = vsel %vm369, 1e-05, %v353
  %v386 = vmax.f32 %v370, 1e-12
  %v387 = vmax.f32 %v371, 1e-12
  %v388 = vmax.f32 %v372, 1e-12
  %v389 = vmax.f32 %v373, 1e-12
  %v390 = vmax.f32 %v374, 1e-12
  %v391 = vmax.f32 %v375, 1e-12
  %v392 = vmax.f32 %v376, 1e-12
  %v393 = vmax.f32 %v377, 1e-12
  %v394 = vmax.f32 %v378, 1e-12
  %v395 = vmax.f32 %v379, 1e-12
  %v396 = vmax.f32 %v380, 1e-12
  %v397 = vmax.f32 %v381, 1e-12
  %v398 = vmax.f32 %v382, 1e-12
  %v399 = vmax.f32 %v383, 1e-12
  %v400 = vmax.f32 %v384, 1e-12
  %v401 = vmax.f32 %v385, 1e-12
  %v402 = vrsqrt.pop %v386
  %v403 = vmul.f32 %v402, %v386
  %v404 = vmul.f32 %v403, %v402
  %v405 = vmul.f32 0.5, %v404
  %v406 = vsub.f32 1.5, %v405
  %v407 = vmul.f32 %v402, %v406
  %v408 = vmul.f32 %v386, %v407
  %vm409 = vcmp.eq.f32.partialorder %v386, inf
  %v410 = vsel %vm409, %v386, %v408
  %vm411 = vcmp.eq.f32.partialorder %v386, 0.0
  %v412 = vand.u32 %v386, 2147483648
  %v413 = vsel %vm411, %v412, %v410
  %v414 = vrsqrt.pop %v387
  %v415 = vmul.f32 %v414, %v387
  %v416 = vmul.f32 %v415, %v414
  %v417 = vmul.f32 0.5, %v416
  %v418 = vsub.f32 1.5, %v417
  %v419 = vmul.f32 %v414, %v418
  %v420 = vmul.f32 %v387, %v419
  %vm421 = vcmp.eq.f32.partialorder %v387, inf
  %v422 = vsel %vm421, %v387, %v420
  %vm423 = vcmp.eq.f32.partialorder %v387, 0.0
  %v424 = vand.u32 %v387, 2147483648
  %v425 = vsel %vm423, %v424, %v422
  %v426 = vrsqrt.pop %v388
  %v427 = vmul.f32 %v426, %v388
  %v428 = vmul.f32 %v427, %v426
  %v429 = vmul.f32 0.5, %v428
  %v430 = vsub.f32 1.5, %v429
  %v431 = vmul.f32 %v426, %v430
  %v432 = vmul.f32 %v388, %v431
  %vm433 = vcmp.eq.f32.partialorder %v388, inf
  %v434 = vsel %vm433, %v388, %v432
  %vm435 = vcmp.eq.f32.partialorder %v388, 0.0
  %v436 = vand.u32 %v388, 2147483648
  %v437 = vsel %vm435, %v436, %v434
  %v438 = vrsqrt.pop %v389
  %v439 = vmul.f32 %v438, %v389
  %v440 = vmul.f32 %v439, %v438
  %v441 = vmul.f32 0.5, %v440
  %v442 = vsub.f32 1.5, %v441
  %v443 = vmul.f32 %v438, %v442
  %v444 = vmul.f32 %v389, %v443
  %vm445 = vcmp.eq.f32.partialorder %v389, inf
  %v446 = vsel %vm445, %v389, %v444
  %vm447 = vcmp.eq.f32.partialorder %v389, 0.0
  %v448 = vand.u32 %v389, 2147483648
  %v449 = vsel %vm447, %v448, %v446
  %v450 = vrsqrt.pop %v390
  %v451 = vmul.f32 %v450, %v390
  %v452 = vmul.f32 %v451, %v450
  %v453 = vmul.f32 0.5, %v452
  %v454 = vsub.f32 1.5, %v453
  %v455 = vmul.f32 %v450, %v454
  %v456 = vmul.f32 %v390, %v455
  %vm457 = vcmp.eq.f32.partialorder %v390, inf
  %v458 = vsel %vm457, %v390, %v456
  %vm459 = vcmp.eq.f32.partialorder %v390, 0.0
  %v460 = vand.u32 %v390, 2147483648
  %v461 = vsel %vm459, %v460, %v458
  %v462 = vrsqrt.pop %v391
  %v463 = vmul.f32 %v462, %v391
  %v464 = vmul.f32 %v463, %v462
  %v465 = vmul.f32 0.5, %v464
  %v466 = vsub.f32 1.5, %v465
  %v467 = vmul.f32 %v462, %v466
  %v468 = vmul.f32 %v391, %v467
  %vm469 = vcmp.eq.f32.partialorder %v391, inf
  %v470 = vsel %vm469, %v391, %v468
  %vm471 = vcmp.eq.f32.partialorder %v391, 0.0
  %v472 = vand.u32 %v391, 2147483648
  %v473 = vsel %vm471, %v472, %v470
  %v474 = vrsqrt.pop %v392
  %v475 = vmul.f32 %v474, %v392
  %v476 = vmul.f32 %v475, %v474
  %v477 = vmul.f32 0.5, %v476
  %v478 = vsub.f32 1.5, %v477
  %v479 = vmul.f32 %v474, %v478
  %v480 = vmul.f32 %v392, %v479
  %vm481 = vcmp.eq.f32.partialorder %v392, inf
  %v482 = vsel %vm481, %v392, %v480
  %vm483 = vcmp.eq.f32.partialorder %v392, 0.0
  %v484 = vand.u32 %v392, 2147483648
  %v485 = vsel %vm483, %v484, %v482
  %v486 = vrsqrt.pop %v393
  %v487 = vmul.f32 %v486, %v393
  %v488 = vmul.f32 %v487, %v486
  %v489 = vmul.f32 0.5, %v488
  %v490 = vsub.f32 1.5, %v489
  %v491 = vmul.f32 %v486, %v490
  %v492 = vmul.f32 %v393, %v491
  %vm493 = vcmp.eq.f32.partialorder %v393, inf
  %v494 = vsel %vm493, %v393, %v492
  %vm495 = vcmp.eq.f32.partialorder %v393, 0.0
  %v496 = vand.u32 %v393, 2147483648
  %v497 = vsel %vm495, %v496, %v494
  %v498 = vrsqrt.pop %v394
  %v499 = vmul.f32 %v498, %v394
  %v500 = vmul.f32 %v499, %v498
  %v501 = vmul.f32 0.5, %v500
  %v502 = vsub.f32 1.5, %v501
  %v503 = vmul.f32 %v498, %v502
  %v504 = vmul.f32 %v394, %v503
  %vm505 = vcmp.eq.f32.partialorder %v394, inf
  %v506 = vsel %vm505, %v394, %v504
  %vm507 = vcmp.eq.f32.partialorder %v394, 0.0
  %v508 = vand.u32 %v394, 2147483648
  %v509 = vsel %vm507, %v508, %v506
  %v510 = vrsqrt.pop %v395
  %v511 = vmul.f32 %v510, %v395
  %v512 = vmul.f32 %v511, %v510
  %v513 = vmul.f32 0.5, %v512
  %v514 = vsub.f32 1.5, %v513
  %v515 = vmul.f32 %v510, %v514
  %v516 = vmul.f32 %v395, %v515
  %vm517 = vcmp.eq.f32.partialorder %v395, inf
  %v518 = vsel %vm517, %v395, %v516
  %vm519 = vcmp.eq.f32.partialorder %v395, 0.0
  %v520 = vand.u32 %v395, 2147483648
  %v521 = vsel %vm519, %v520, %v518
  %v522 = vrsqrt.pop %v396
  %v523 = vmul.f32 %v522, %v396
  %v524 = vmul.f32 %v523, %v522
  %v525 = vmul.f32 0.5, %v524
  %v526 = vsub.f32 1.5, %v525
  %v527 = vmul.f32 %v522, %v526
  %v528 = vmul.f32 %v396, %v527
  %vm529 = vcmp.eq.f32.partialorder %v396, inf
  %v530 = vsel %vm529, %v396, %v528
  %vm531 = vcmp.eq.f32.partialorder %v396, 0.0
  %v532 = vand.u32 %v396, 2147483648
  %v533 = vsel %vm531, %v532, %v530
  %v534 = vrsqrt.pop %v397
  %v535 = vmul.f32 %v534, %v397
  %v536 = vmul.f32 %v535, %v534
  %v537 = vmul.f32 0.5, %v536
  %v538 = vsub.f32 1.5, %v537
  %v539 = vmul.f32 %v534, %v538
  %v540 = vmul.f32 %v397, %v539
  %vm541 = vcmp.eq.f32.partialorder %v397, inf
  %v542 = vsel %vm541, %v397, %v540
  %vm543 = vcmp.eq.f32.partialorder %v397, 0.0
  %v544 = vand.u32 %v397, 2147483648
  %v545 = vsel %vm543, %v544, %v542
  %v546 = vrsqrt.pop %v398
  %v547 = vmul.f32 %v546, %v398
  %v548 = vmul.f32 %v547, %v546
  %v549 = vmul.f32 0.5, %v548
  %v550 = vsub.f32 1.5, %v549
  %v551 = vmul.f32 %v546, %v550
  %v552 = vmul.f32 %v398, %v551
  %vm553 = vcmp.eq.f32.partialorder %v398, inf
  %v554 = vsel %vm553, %v398, %v552
  %vm555 = vcmp.eq.f32.partialorder %v398, 0.0
  %v556 = vand.u32 %v398, 2147483648
  %v557 = vsel %vm555, %v556, %v554
  %v558 = vrsqrt.pop %v399
  %v559 = vmul.f32 %v558, %v399
  %v560 = vmul.f32 %v559, %v558
  %v561 = vmul.f32 0.5, %v560
  %v562 = vsub.f32 1.5, %v561
  %v563 = vmul.f32 %v558, %v562
  %v564 = vmul.f32 %v399, %v563
  %vm565 = vcmp.eq.f32.partialorder %v399, inf
  %v566 = vsel %vm565, %v399, %v564
  %vm567 = vcmp.eq.f32.partialorder %v399, 0.0
  %v568 = vand.u32 %v399, 2147483648
  %v569 = vsel %vm567, %v568, %v566
  %v570 = vrsqrt.pop %v400
  %v571 = vmul.f32 %v570, %v400
  %v572 = vmul.f32 %v571, %v570
  %v573 = vmul.f32 0.5, %v572
  %v574 = vsub.f32 1.5, %v573
  %v575 = vmul.f32 %v570, %v574
  %v576 = vmul.f32 %v400, %v575
  %vm577 = vcmp.eq.f32.partialorder %v400, inf
  %v578 = vsel %vm577, %v400, %v576
  %vm579 = vcmp.eq.f32.partialorder %v400, 0.0
  %v580 = vand.u32 %v400, 2147483648
  %v581 = vsel %vm579, %v580, %v578
  %v582 = vrsqrt.pop %v401
  %v583 = vmul.f32 %v582, %v401
  %v584 = vmul.f32 %v583, %v582
  %v585 = vmul.f32 0.5, %v584
  %v586 = vsub.f32 1.5, %v585
  %v587 = vmul.f32 %v582, %v586
  %v588 = vmul.f32 %v401, %v587
  %vm589 = vcmp.eq.f32.partialorder %v401, inf
  %v590 = vsel %vm589, %v401, %v588
  %vm591 = vcmp.eq.f32.partialorder %v401, 0.0
  %v592 = vand.u32 %v401, 2147483648
  %v593 = vsel %vm591, %v592, %v590
  %v594 = vmul.f32 %v413, -10.0
  %v595 = vmul.f32 %v425, -10.0
  %v596 = vmul.f32 %v437, -10.0
  %v597 = vmul.f32 %v449, -10.0
  %v598 = vmul.f32 %v461, -10.0
  %v599 = vmul.f32 %v473, -10.0
  %v600 = vmul.f32 %v485, -10.0
  %v601 = vmul.f32 %v497, -10.0
  %v602 = vmul.f32 %v509, -10.0
  %v603 = vmul.f32 %v521, -10.0
  %v604 = vmul.f32 %v533, -10.0
  %v605 = vmul.f32 %v545, -10.0
  %v606 = vmul.f32 %v557, -10.0
  %v607 = vmul.f32 %v569, -10.0
  %v608 = vmul.f32 %v581, -10.0
  %v609 = vmul.f32 %v593, -10.0
  %v610 = vmul.f32 %v594, 1.442695
  %v611 = vpow.pop %v610
  %v612 = vmul.f32 %v595, 1.442695
  %v613 = vpow.pop %v612
  %v614 = vmul.f32 %v596, 1.442695
  %v615 = vpow.pop %v614
  %v616 = vmul.f32 %v597, 1.442695
  %v617 = vpow.pop %v616
  %v618 = vmul.f32 %v598, 1.442695
  %v619 = vpow.pop %v618
  %v620 = vmul.f32 %v599, 1.442695
  %v621 = vpow.pop %v620
  %v622 = vmul.f32 %v600, 1.442695
  %v623 = vpow.pop %v622
  %v624 = vmul.f32 %v601, 1.442695
  %v625 = vpow.pop %v624
  %v626 = vmul.f32 %v602, 1.442695
  %v627 = vpow.pop %v626
  %v628 = vmul.f32 %v603, 1.442695
  %v629 = vpow.pop %v628
  %v630 = vmul.f32 %v604, 1.442695
  %v631 = vpow.pop %v630
  %v632 = vmul.f32 %v605, 1.442695
  %v633 = vpow.pop %v632
  %v634 = vmul.f32 %v606, 1.442695
  %v635 = vpow.pop %v634
  %v636 = vmul.f32 %v607, 1.442695
  %v637 = vpow.pop %v636
  %v638 = vmul.f32 %v608, 1.442695
  %v639 = vpow.pop %v638
  %v640 = vmul.f32 %v609, 1.442695
  %v641 = vpow.pop %v640
  %v658 = vand.u32 %v611, 4294967168
  %v659 = vand.u32 %v613, 4294967168
  %v660 = vand.u32 %v615, 4294967168
  %v661 = vand.u32 %v617, 4294967168
  %v662 = vand.u32 %v619, 4294967168
  %v663 = vand.u32 %v621, 4294967168
  %v664 = vand.u32 %v623, 4294967168
  %v665 = vand.u32 %v625, 4294967168
  %v666 = vand.u32 %v627, 4294967168
  %v667 = vand.u32 %v629, 4294967168
  %v668 = vand.u32 %v631, 4294967168
  %v669 = vand.u32 %v633, 4294967168
  %v670 = vand.u32 %v635, 4294967168
  %v671 = vand.u32 %v637, 4294967168
  %v672 = vand.u32 %v639, 4294967168
  %v673 = vand.u32 %v641, 4294967168
  %v674 = vor.u32 %v658, %v201
  %v675 = vor.u32 %v659, %v202
  %v676 = vor.u32 %v660, %v203
  %v677 = vor.u32 %v661, %v204
  %v678 = vor.u32 %v662, %v205
  %v679 = vor.u32 %v663, %v206
  %v680 = vor.u32 %v664, %v207
  %v681 = vor.u32 %v665, %v208
  %v682 = vor.u32 %v666, %v209
  %v683 = vor.u32 %v667, %v210
  %v684 = vor.u32 %v668, %v211
  %v685 = vor.u32 %v669, %v212
  %v686 = vor.u32 %v670, %v213
  %v687 = vor.u32 %v671, %v214
  %v688 = vor.u32 %v672, %v215
  %v689 = vor.u32 %v673, %v216
  %vm690 = vcmp.lt.s32.totalorder %v201, 16
  %vm691 = vcmp.lt.s32.totalorder %v202, 16
  %vm692 = vcmp.lt.s32.totalorder %v203, 16
  %vm693 = vcmp.lt.s32.totalorder %v204, 16
  %vm694 = vcmp.lt.s32.totalorder %v205, 16
  %vm695 = vcmp.lt.s32.totalorder %v206, 16
  %vm696 = vcmp.lt.s32.totalorder %v207, 16
  %vm697 = vcmp.lt.s32.totalorder %v208, 16
  %vm698 = vcmp.lt.s32.totalorder %v209, 16
  %vm699 = vcmp.lt.s32.totalorder %v210, 16
  %vm700 = vcmp.lt.s32.totalorder %v211, 16
  %vm701 = vcmp.lt.s32.totalorder %v212, 16
  %vm702 = vcmp.lt.s32.totalorder %v213, 16
  %vm703 = vcmp.lt.s32.totalorder %v214, 16
  %vm704 = vcmp.lt.s32.totalorder %v215, 16
  %vm705 = vcmp.lt.s32.totalorder %v216, 16
  %v706 = vsel %vm690, %v674, 4294967295
  %v707 = vsel %vm691, %v675, 4294967295
  %v708 = vsel %vm692, %v676, 4294967295
  %v709 = vsel %vm693, %v677, 4294967295
  %v710 = vsel %vm694, %v678, 4294967295
  %v711 = vsel %vm695, %v679, 4294967295
  %v712 = vsel %vm696, %v680, 4294967295
  %v713 = vsel %vm697, %v681, 4294967295
  %v714 = vsel %vm698, %v682, 4294967295
  %v715 = vsel %vm699, %v683, 4294967295
  %v716 = vsel %vm700, %v684, 4294967295
  %v717 = vsel %vm701, %v685, 4294967295
  %v718 = vsel %vm702, %v686, 4294967295
  %v719 = vsel %vm703, %v687, 4294967295
  %v720 = vsel %vm704, %v688, 4294967295
  %v721 = vsel %vm705, %v689, 4294967295
  %v722 = vld [vmem:[%s3] sm:$0xff]
  %v723 = vld [vmem:[%s3 + $0x8] sm:$0xff]
  %v724 = vld [vmem:[%s3 + $0x10] sm:$0xff]
  %v725 = vld [vmem:[%s3 + $0x18] sm:$0xff]
  %v726 = vld [vmem:[%s3 + $0x20] sm:$0xff]
  %v727 = vld [vmem:[%s3 + $0x28] sm:$0xff]
  %v728 = vld [vmem:[%s3 + $0x30] sm:$0xff]
  %v729 = vld [vmem:[%s3 + $0x38] sm:$0xff]
  %v730 = vld [vmem:[%s3 + $0x40] sm:$0xff]
  %v731 = vld [vmem:[%s3 + $0x48] sm:$0xff]
  %v732 = vld [vmem:[%s3 + $0x50] sm:$0xff]
  %v733 = vld [vmem:[%s3 + $0x58] sm:$0xff]
  %v734 = vld [vmem:[%s3 + $0x60] sm:$0xff]
  %v735 = vld [vmem:[%s3 + $0x68] sm:$0xff]
  %v736 = vld [vmem:[%s3 + $0x70] sm:$0xff]
  %v737 = vld [vmem:[%s3 + $0x78] sm:$0xff]
  %v738 = vld [vmem:[%s5] sm:$0x1]
  %739 = vset.pattern.permute.xlu0 0
  %740 = vperm.xlu0 %739, %v722
  %v741 = vpop.permute.xlu0 %740
  %742 = vset.pattern.permute.xlu0 0
  %743 = vperm.xlu0 %742, %v723
  %v744 = vpop.permute.xlu0 %743
  %745 = vset.pattern.permute.xlu0 0
  %746 = vperm.xlu0 %745, %v724
  %v747 = vpop.permute.xlu0 %746
  %748 = vset.pattern.permute.xlu0 0
  %749 = vperm.xlu0 %748, %v725
  %v750 = vpop.permute.xlu0 %749
  %751 = vset.pattern.permute.xlu0 0
  %752 = vperm.xlu0 %751, %v726
  %v753 = vpop.permute.xlu0 %752
  %754 = vset.pattern.permute.xlu0 0
  %755 = vperm.xlu0 %754, %v727
  %v756 = vpop.permute.xlu0 %755
  %757 = vset.pattern.permute.xlu0 0
  %758 = vperm.xlu0 %757, %v728
  %v759 = vpop.permute.xlu0 %758
  %760 = vset.pattern.permute.xlu0 0
  %761 = vperm.xlu0 %760, %v729
  %v762 = vpop.permute.xlu0 %761
  %763 = vset.pattern.permute.xlu0 0
  %764 = vperm.xlu0 %763, %v730
  %v765 = vpop.permute.xlu0 %764
  %766 = vset.pattern.permute.xlu0 0
  %767 = vperm.xlu0 %766, %v731
  %v768 = vpop.permute.xlu0 %767
  %769 = vset.pattern.permute.xlu0 0
  %770 = vperm.xlu0 %769, %v732
  %v771 = vpop.permute.xlu0 %770
  %772 = vset.pattern.permute.xlu0 0
  %773 = vperm.xlu0 %772, %v733
  %v774 = vpop.permute.xlu0 %773
  %775 = vset.pattern.permute.xlu0 0
  %776 = vperm.xlu0 %775, %v734
  %v777 = vpop.permute.xlu0 %776
  %778 = vset.pattern.permute.xlu0 0
  %779 = vperm.xlu0 %778, %v735
  %v780 = vpop.permute.xlu0 %779
  %781 = vset.pattern.permute.xlu0 0
  %782 = vperm.xlu0 %781, %v736
  %v783 = vpop.permute.xlu0 %782
  %784 = vset.pattern.permute.xlu0 0
  %785 = vperm.xlu0 %784, %v737
  %v786 = vpop.permute.xlu0 %785
  %v787 = vperm.slane %v738, 0
  %vm788 = vcmp.eq.s32.totalorder %v741, %v787
  %vm789 = vcmp.eq.s32.totalorder %v744, %v787
  %vm790 = vcmp.eq.s32.totalorder %v747, %v787
  %vm791 = vcmp.eq.s32.totalorder %v750, %v787
  %vm792 = vcmp.eq.s32.totalorder %v753, %v787
  %vm793 = vcmp.eq.s32.totalorder %v756, %v787
  %vm794 = vcmp.eq.s32.totalorder %v759, %v787
  %vm795 = vcmp.eq.s32.totalorder %v762, %v787
  %vm796 = vcmp.eq.s32.totalorder %v765, %v787
  %vm797 = vcmp.eq.s32.totalorder %v768, %v787
  %vm798 = vcmp.eq.s32.totalorder %v771, %v787
  %vm799 = vcmp.eq.s32.totalorder %v774, %v787
  %vm800 = vcmp.eq.s32.totalorder %v777, %v787
  %vm801 = vcmp.eq.s32.totalorder %v780, %v787
  %vm802 = vcmp.eq.s32.totalorder %v783, %v787
  %vm803 = vcmp.eq.s32.totalorder %v786, %v787
  %v804 = vsel %vm788, %v706, 4294967295
  %v805 = vsel %vm789, %v707, 4294967295
  %v806 = vsel %vm790, %v708, 4294967295
  %v807 = vsel %vm791, %v709, 4294967295
  %v808 = vsel %vm792, %v710, 4294967295
  %v809 = vsel %vm793, %v711, 4294967295
  %v810 = vsel %vm794, %v712, 4294967295
  %v811 = vsel %vm795, %v713, 4294967295
  %v812 = vsel %vm796, %v714, 4294967295
  %v813 = vsel %vm797, %v715, 4294967295
  %v814 = vsel %vm798, %v716, 4294967295
  %v815 = vsel %vm799, %v717, 4294967295
  %v816 = vsel %vm800, %v718, 4294967295
  %v817 = vsel %vm801, %v719, 4294967295
  %v818 = vsel %vm802, %v720, 4294967295
  %v819 = vsel %vm803, %v721, 4294967295
  %v820 = vsel %vm788, 4294967295, %v706
  %v821 = vsel %vm789, 4294967295, %v707
  %v822 = vsel %vm790, 4294967295, %v708
  %v823 = vsel %vm791, 4294967295, %v709
  %v824 = vsel %vm792, 4294967295, %v710
  %v825 = vsel %vm793, 4294967295, %v711
  %v826 = vsel %vm794, 4294967295, %v712
  %v827 = vsel %vm795, 4294967295, %v713
  %v828 = vsel %vm796, 4294967295, %v714
  %v829 = vsel %vm797, 4294967295, %v715
  %v830 = vsel %vm798, 4294967295, %v716
  %v831 = vsel %vm799, 4294967295, %v717
  %v832 = vsel %vm800, 4294967295, %v718
  %v833 = vsel %vm801, 4294967295, %v719
  %v834 = vsel %vm802, 4294967295, %v720
  %v835 = vsel %vm803, 4294967295, %v721
  %vm836 = vcmp.gt.s32.totalorder %v804, %v808
  %v837 = vsel %vm836, %v804, %v808
  %vm838 = vcmp.gt.s32.totalorder %v805, %v809
  %v839 = vsel %vm838, %v805, %v809
  %vm840 = vcmp.gt.s32.totalorder %v806, %v810
  %v841 = vsel %vm840, %v806, %v810
  %vm842 = vcmp.gt.s32.totalorder %v807, %v811
  %v843 = vsel %vm842, %v807, %v811
  %vm844 = vcmp.gt.s32.totalorder %v837, %v812
  %v845 = vsel %vm844, %v837, %v812
  %vm846 = vcmp.gt.s32.totalorder %v839, %v813
  %v847 = vsel %vm846, %v839, %v813
  %vm848 = vcmp.gt.s32.totalorder %v841, %v814
  %v849 = vsel %vm848, %v841, %v814
  %vm850 = vcmp.gt.s32.totalorder %v843, %v815
  %v851 = vsel %vm850, %v843, %v815
  %vm852 = vcmp.gt.s32.totalorder %v845, %v816
  %v853 = vsel %vm852, %v845, %v816
  %vm854 = vcmp.gt.s32.totalorder %v847, %v817
  %v855 = vsel %vm854, %v847, %v817
  %vm856 = vcmp.gt.s32.totalorder %v849, %v818
  %v857 = vsel %vm856, %v849, %v818
  %vm858 = vcmp.gt.s32.totalorder %v851, %v819
  %v859 = vsel %vm858, %v851, %v819
  %vm860 = vcmp.gt.s32.totalorder %v853, %v855
  %v861 = vsel %vm860, %v853, %v855
  %vm862 = vcmp.gt.s32.totalorder %v857, %v859
  %v863 = vsel %vm862, %v857, %v859
  %vm864 = vcmp.gt.s32.totalorder %v861, %v863
  %v865 = vsel %vm864, %v861, %v863
  %v866 = vrot.slane %v865, 4
  %vm867 = vcmp.gt.s32.totalorder %v865, %v866
  %v868 = vsel %vm867, %v865, %v866
  %v869 = vrot.slane %v868, 2
  %vm870 = vcmp.gt.s32.totalorder %v868, %v869
  %v871 = vsel %vm870, %v868, %v869
  %v872 = vrot.slane %v871, 1
  %vm873 = vcmp.gt.s32.totalorder %v871, %v872
  %v874 = vsel %vm873, %v871, %v872
  %vm875 = vcmp.ge.s32.totalorder %v874, 0
  %v876 = vand.u32 %v874, 4294967168
  %v878 = vlog2.pop %v876
  %v879 = vmul.f32 %v878, 0.6931472
  %v880 = vsel %vm875, %v879, -inf
  %vm881 = vcmp.eq.s32.totalorder %v804, %v874
  %vm882 = vcmp.eq.s32.totalorder %v805, %v874
  %vm883 = vcmp.eq.s32.totalorder %v806, %v874
  %vm884 = vcmp.eq.s32.totalorder %v807, %v874
  %vm885 = vcmp.eq.s32.totalorder %v808, %v874
  %vm886 = vcmp.eq.s32.totalorder %v809, %v874
  %vm887 = vcmp.eq.s32.totalorder %v810, %v874
  %vm888 = vcmp.eq.s32.totalorder %v811, %v874
  %vm889 = vcmp.eq.s32.totalorder %v812, %v874
  %vm890 = vcmp.eq.s32.totalorder %v813, %v874
  %vm891 = vcmp.eq.s32.totalorder %v814, %v874
  %vm892 = vcmp.eq.s32.totalorder %v815, %v874
  %vm893 = vcmp.eq.s32.totalorder %v816, %v874
  %vm894 = vcmp.eq.s32.totalorder %v817, %v874
  %vm895 = vcmp.eq.s32.totalorder %v818, %v874
  %vm896 = vcmp.eq.s32.totalorder %v819, %v874
  %v897 = vsel %vm881, 4294967295, %v804
  %v898 = vsel %vm882, 4294967295, %v805
  %v899 = vsel %vm883, 4294967295, %v806
  %v900 = vsel %vm884, 4294967295, %v807
  %v901 = vsel %vm885, 4294967295, %v808
  %v902 = vsel %vm886, 4294967295, %v809
  %v903 = vsel %vm887, 4294967295, %v810
  %v904 = vsel %vm888, 4294967295, %v811
  %v905 = vsel %vm889, 4294967295, %v812
  %v906 = vsel %vm890, 4294967295, %v813
  %v907 = vsel %vm891, 4294967295, %v814
  %v908 = vsel %vm892, 4294967295, %v815
  %v909 = vsel %vm893, 4294967295, %v816
  %v910 = vsel %vm894, 4294967295, %v817
  %v911 = vsel %vm895, 4294967295, %v818
  %v912 = vsel %vm896, 4294967295, %v819
  %vm913 = vcmp.gt.s32.totalorder %v897, %v901
  %v914 = vsel %vm913, %v897, %v901
  %vm915 = vcmp.gt.s32.totalorder %v898, %v902
  %v916 = vsel %vm915, %v898, %v902
  %vm917 = vcmp.gt.s32.totalorder %v899, %v903
  %v918 = vsel %vm917, %v899, %v903
  %vm919 = vcmp.gt.s32.totalorder %v900, %v904
  %v920 = vsel %vm919, %v900, %v904
  %vm921 = vcmp.gt.s32.totalorder %v914, %v905
  %v922 = vsel %vm921, %v914, %v905
  %vm923 = vcmp.gt.s32.totalorder %v916, %v906
  %v924 = vsel %vm923, %v916, %v906
  %vm925 = vcmp.gt.s32.totalorder %v918, %v907
  %v926 = vsel %vm925, %v918, %v907
  %vm927 = vcmp.gt.s32.totalorder %v920, %v908
  %v928 = vsel %vm927, %v920, %v908
  %vm929 = vcmp.gt.s32.totalorder %v922, %v909
  %v930 = vsel %vm929, %v922, %v909
  %vm931 = vcmp.gt.s32.totalorder %v924, %v910
  %v932 = vsel %vm931, %v924, %v910
  %vm933 = vcmp.gt.s32.totalorder %v926, %v911
  %v934 = vsel %vm933, %v926, %v911
  %vm935 = vcmp.gt.s32.totalorder %v928, %v912
  %v936 = vsel %vm935, %v928, %v912
  %vm937 = vcmp.gt.s32.totalorder %v930, %v932
  %v938 = vsel %vm937, %v930, %v932
  %vm939 = vcmp.gt.s32.totalorder %v934, %v936
  %v940 = vsel %vm939, %v934, %v936
  %vm941 = vcmp.gt.s32.totalorder %v938, %v940
  %v942 = vsel %vm941, %v938, %v940
  %v943 = vrot.slane %v942, 4
  %vm944 = vcmp.gt.s32.totalorder %v942, %v943
  %v945 = vsel %vm944, %v942, %v943
  %v946 = vrot.slane %v945, 2
  %vm947 = vcmp.gt.s32.totalorder %v945, %v946
  %v948 = vsel %vm947, %v945, %v946
  %v949 = vrot.slane %v948, 1
  %vm950 = vcmp.gt.s32.totalorder %v948, %v949
  %v951 = vsel %vm950, %v948, %v949
  %vm952 = vcmp.eq.s32.totalorder %v897, %v951
  %vm953 = vcmp.eq.s32.totalorder %v898, %v951
  %vm954 = vcmp.eq.s32.totalorder %v899, %v951
  %vm955 = vcmp.eq.s32.totalorder %v900, %v951
  %vm956 = vcmp.eq.s32.totalorder %v901, %v951
  %vm957 = vcmp.eq.s32.totalorder %v902, %v951
  %vm958 = vcmp.eq.s32.totalorder %v903, %v951
  %vm959 = vcmp.eq.s32.totalorder %v904, %v951
  %vm960 = vcmp.eq.s32.totalorder %v905, %v951
  %vm961 = vcmp.eq.s32.totalorder %v906, %v951
  %vm962 = vcmp.eq.s32.totalorder %v907, %v951
  %vm963 = vcmp.eq.s32.totalorder %v908, %v951
  %vm964 = vcmp.eq.s32.totalorder %v909, %v951
  %vm965 = vcmp.eq.s32.totalorder %v910, %v951
  %vm966 = vcmp.eq.s32.totalorder %v911, %v951
  %vm967 = vcmp.eq.s32.totalorder %v912, %v951
  %v968 = vsel %vm952, 4294967295, %v897
  %v969 = vsel %vm953, 4294967295, %v898
  %v970 = vsel %vm954, 4294967295, %v899
  %v971 = vsel %vm955, 4294967295, %v900
  %v972 = vsel %vm956, 4294967295, %v901
  %v973 = vsel %vm957, 4294967295, %v902
  %v974 = vsel %vm958, 4294967295, %v903
  %v975 = vsel %vm959, 4294967295, %v904
  %v976 = vsel %vm960, 4294967295, %v905
  %v977 = vsel %vm961, 4294967295, %v906
  %v978 = vsel %vm962, 4294967295, %v907
  %v979 = vsel %vm963, 4294967295, %v908
  %v980 = vsel %vm964, 4294967295, %v909
  %v981 = vsel %vm965, 4294967295, %v910
  %v982 = vsel %vm966, 4294967295, %v911
  %v983 = vsel %vm967, 4294967295, %v912
  %vm984 = vcmp.gt.s32.totalorder %v968, %v972
  %v985 = vsel %vm984, %v968, %v972
  %vm986 = vcmp.gt.s32.totalorder %v969, %v973
  %v987 = vsel %vm986, %v969, %v973
  %vm988 = vcmp.gt.s32.totalorder %v970, %v974
  %v989 = vsel %vm988, %v970, %v974
  %vm990 = vcmp.gt.s32.totalorder %v971, %v975
  %v991 = vsel %vm990, %v971, %v975
  %vm992 = vcmp.gt.s32.totalorder %v985, %v976
  %v993 = vsel %vm992, %v985, %v976
  %vm994 = vcmp.gt.s32.totalorder %v987, %v977
  %v995 = vsel %vm994, %v987, %v977
  %vm996 = vcmp.gt.s32.totalorder %v989, %v978
  %v997 = vsel %vm996, %v989, %v978
  %vm998 = vcmp.gt.s32.totalorder %v991, %v979
  %v999 = vsel %vm998, %v991, %v979
  %vm1000 = vcmp.gt.s32.totalorder %v993, %v980
  %v1001 = vsel %vm1000, %v993, %v980
  %vm1002 = vcmp.gt.s32.totalorder %v995, %v981
  %v1003 = vsel %vm1002, %v995, %v981
  %vm1004 = vcmp.gt.s32.totalorder %v997, %v982
  %v1005 = vsel %vm1004, %v997, %v982
  %vm1006 = vcmp.gt.s32.totalorder %v999, %v983
  %v1007 = vsel %vm1006, %v999, %v983
  %vm1008 = vcmp.gt.s32.totalorder %v1001, %v1003
  %v1009 = vsel %vm1008, %v1001, %v1003
  %vm1010 = vcmp.gt.s32.totalorder %v1005, %v1007
  %v1011 = vsel %vm1010, %v1005, %v1007
  %vm1012 = vcmp.gt.s32.totalorder %v1009, %v1011
  %v1013 = vsel %vm1012, %v1009, %v1011
  %v1014 = vrot.slane %v1013, 4
  %vm1015 = vcmp.gt.s32.totalorder %v1013, %v1014
  %v1016 = vsel %vm1015, %v1013, %v1014
  %v1017 = vrot.slane %v1016, 2
  %vm1018 = vcmp.gt.s32.totalorder %v1016, %v1017
  %v1019 = vsel %vm1018, %v1016, %v1017
  %v1020 = vrot.slane %v1019, 1
  %vm1021 = vcmp.gt.s32.totalorder %v1019, %v1020
  %v1022 = vsel %vm1021, %v1019, %v1020
  %vm1023 = vcmp.eq.s32.totalorder %v968, %v1022
  %vm1024 = vcmp.eq.s32.totalorder %v969, %v1022
  %vm1025 = vcmp.eq.s32.totalorder %v970, %v1022
  %vm1026 = vcmp.eq.s32.totalorder %v971, %v1022
  %vm1027 = vcmp.eq.s32.totalorder %v972, %v1022
  %vm1028 = vcmp.eq.s32.totalorder %v973, %v1022
  %vm1029 = vcmp.eq.s32.totalorder %v974, %v1022
  %vm1030 = vcmp.eq.s32.totalorder %v975, %v1022
  %vm1031 = vcmp.eq.s32.totalorder %v976, %v1022
  %vm1032 = vcmp.eq.s32.totalorder %v977, %v1022
  %vm1033 = vcmp.eq.s32.totalorder %v978, %v1022
  %vm1034 = vcmp.eq.s32.totalorder %v979, %v1022
  %vm1035 = vcmp.eq.s32.totalorder %v980, %v1022
  %vm1036 = vcmp.eq.s32.totalorder %v981, %v1022
  %vm1037 = vcmp.eq.s32.totalorder %v982, %v1022
  %vm1038 = vcmp.eq.s32.totalorder %v983, %v1022
  %v1039 = vsel %vm1023, 4294967295, %v968
  %v1040 = vsel %vm1024, 4294967295, %v969
  %v1041 = vsel %vm1025, 4294967295, %v970
  %v1042 = vsel %vm1026, 4294967295, %v971
  %v1043 = vsel %vm1027, 4294967295, %v972
  %v1044 = vsel %vm1028, 4294967295, %v973
  %v1045 = vsel %vm1029, 4294967295, %v974
  %v1046 = vsel %vm1030, 4294967295, %v975
  %v1047 = vsel %vm1031, 4294967295, %v976
  %v1048 = vsel %vm1032, 4294967295, %v977
  %v1049 = vsel %vm1033, 4294967295, %v978
  %v1050 = vsel %vm1034, 4294967295, %v979
  %v1051 = vsel %vm1035, 4294967295, %v980
  %v1052 = vsel %vm1036, 4294967295, %v981
  %v1053 = vsel %vm1037, 4294967295, %v982
  %v1054 = vsel %vm1038, 4294967295, %v983
  %vm1055 = vcmp.gt.s32.totalorder %v1039, %v1043
  %v1056 = vsel %vm1055, %v1039, %v1043
  %vm1057 = vcmp.gt.s32.totalorder %v1040, %v1044
  %v1058 = vsel %vm1057, %v1040, %v1044
  %vm1059 = vcmp.gt.s32.totalorder %v1041, %v1045
  %v1060 = vsel %vm1059, %v1041, %v1045
  %vm1061 = vcmp.gt.s32.totalorder %v1042, %v1046
  %v1062 = vsel %vm1061, %v1042, %v1046
  %vm1063 = vcmp.gt.s32.totalorder %v1056, %v1047
  %v1064 = vsel %vm1063, %v1056, %v1047
  %vm1065 = vcmp.gt.s32.totalorder %v1058, %v1048
  %v1066 = vsel %vm1065, %v1058, %v1048
  %vm1067 = vcmp.gt.s32.totalorder %v1060, %v1049
  %v1068 = vsel %vm1067, %v1060, %v1049
  %vm1069 = vcmp.gt.s32.totalorder %v1062, %v1050
  %v1070 = vsel %vm1069, %v1062, %v1050
  %vm1071 = vcmp.gt.s32.totalorder %v1064, %v1051
  %v1072 = vsel %vm1071, %v1064, %v1051
  %vm1073 = vcmp.gt.s32.totalorder %v1066, %v1052
  %v1074 = vsel %vm1073, %v1066, %v1052
  %vm1075 = vcmp.gt.s32.totalorder %v1068, %v1053
  %v1076 = vsel %vm1075, %v1068, %v1053
  %vm1077 = vcmp.gt.s32.totalorder %v1070, %v1054
  %v1078 = vsel %vm1077, %v1070, %v1054
  %vm1079 = vcmp.gt.s32.totalorder %v1072, %v1074
  %v1080 = vsel %vm1079, %v1072, %v1074
  %vm1081 = vcmp.gt.s32.totalorder %v1076, %v1078
  %v1082 = vsel %vm1081, %v1076, %v1078
  %vm1083 = vcmp.gt.s32.totalorder %v1080, %v1082
  %v1084 = vsel %vm1083, %v1080, %v1082
  %v1085 = vrot.slane %v1084, 4
  %vm1086 = vcmp.gt.s32.totalorder %v1084, %v1085
  %v1087 = vsel %vm1086, %v1084, %v1085
  %v1088 = vrot.slane %v1087, 2
  %vm1089 = vcmp.gt.s32.totalorder %v1087, %v1088
  %v1090 = vsel %vm1089, %v1087, %v1088
  %v1091 = vrot.slane %v1090, 1
  %vm1092 = vcmp.gt.s32.totalorder %v1090, %v1091
  %v1093 = vsel %vm1092, %v1090, %v1091
  %vm1094 = vcmp.eq.s32.totalorder %v1039, %v1093
  %vm1095 = vcmp.eq.s32.totalorder %v1040, %v1093
  %vm1096 = vcmp.eq.s32.totalorder %v1041, %v1093
  %vm1097 = vcmp.eq.s32.totalorder %v1042, %v1093
  %vm1098 = vcmp.eq.s32.totalorder %v1043, %v1093
  %vm1099 = vcmp.eq.s32.totalorder %v1044, %v1093
  %vm1100 = vcmp.eq.s32.totalorder %v1045, %v1093
  %vm1101 = vcmp.eq.s32.totalorder %v1046, %v1093
  %vm1102 = vcmp.eq.s32.totalorder %v1047, %v1093
  %vm1103 = vcmp.eq.s32.totalorder %v1048, %v1093
  %vm1104 = vcmp.eq.s32.totalorder %v1049, %v1093
  %vm1105 = vcmp.eq.s32.totalorder %v1050, %v1093
  %vm1106 = vcmp.eq.s32.totalorder %v1051, %v1093
  %vm1107 = vcmp.eq.s32.totalorder %v1052, %v1093
  %vm1108 = vcmp.eq.s32.totalorder %v1053, %v1093
  %vm1109 = vcmp.eq.s32.totalorder %v1054, %v1093
  %v1110 = vsel %vm1094, 4294967295, %v1039
  %v1111 = vsel %vm1095, 4294967295, %v1040
  %v1112 = vsel %vm1096, 4294967295, %v1041
  %v1113 = vsel %vm1097, 4294967295, %v1042
  %v1114 = vsel %vm1098, 4294967295, %v1043
  %v1115 = vsel %vm1099, 4294967295, %v1044
  %v1116 = vsel %vm1100, 4294967295, %v1045
  %v1117 = vsel %vm1101, 4294967295, %v1046
  %v1118 = vsel %vm1102, 4294967295, %v1047
  %v1119 = vsel %vm1103, 4294967295, %v1048
  %v1120 = vsel %vm1104, 4294967295, %v1049
  %v1121 = vsel %vm1105, 4294967295, %v1050
  %v1122 = vsel %vm1106, 4294967295, %v1051
  %v1123 = vsel %vm1107, 4294967295, %v1052
  %v1124 = vsel %vm1108, 4294967295, %v1053
  %v1125 = vsel %vm1109, 4294967295, %v1054
  %vm1126 = vcmp.ge.s32.totalorder %v1110, 0
  %vm1127 = vcmp.ge.s32.totalorder %v1111, 0
  %vm1128 = vcmp.ge.s32.totalorder %v1112, 0
  %vm1129 = vcmp.ge.s32.totalorder %v1113, 0
  %vm1130 = vcmp.ge.s32.totalorder %v1114, 0
  %vm1131 = vcmp.ge.s32.totalorder %v1115, 0
  %vm1132 = vcmp.ge.s32.totalorder %v1116, 0
  %vm1133 = vcmp.ge.s32.totalorder %v1117, 0
  %vm1134 = vcmp.ge.s32.totalorder %v1118, 0
  %vm1135 = vcmp.ge.s32.totalorder %v1119, 0
  %vm1136 = vcmp.ge.s32.totalorder %v1120, 0
  %vm1137 = vcmp.ge.s32.totalorder %v1121, 0
  %vm1138 = vcmp.ge.s32.totalorder %v1122, 0
  %vm1139 = vcmp.ge.s32.totalorder %v1123, 0
  %vm1140 = vcmp.ge.s32.totalorder %v1124, 0
  %vm1141 = vcmp.ge.s32.totalorder %v1125, 0
  %v1142 = vsel %vm1126, %v611, 0.0
  %v1143 = vsel %vm1127, %v613, 0.0
  %v1144 = vsel %vm1128, %v615, 0.0
  %v1145 = vsel %vm1129, %v617, 0.0
  %v1146 = vsel %vm1130, %v619, 0.0
  %v1147 = vsel %vm1131, %v621, 0.0
  %v1148 = vsel %vm1132, %v623, 0.0
  %v1149 = vsel %vm1133, %v625, 0.0
  %v1150 = vsel %vm1134, %v627, 0.0
  %v1151 = vsel %vm1135, %v629, 0.0
  %v1152 = vsel %vm1136, %v631, 0.0
  %v1153 = vsel %vm1137, %v633, 0.0
  %v1154 = vsel %vm1138, %v635, 0.0
  %v1155 = vsel %vm1139, %v637, 0.0
  %v1156 = vsel %vm1140, %v639, 0.0
  %v1157 = vsel %vm1141, %v641, 0.0
  %v1158 = vadd.f32 %v1142, %v1143
  %v1159 = vadd.f32 %v1158, %v1144
  %v1160 = vadd.f32 %v1159, %v1145
  %v1161 = vadd.f32 %v1160, %v1146
  %v1162 = vadd.f32 %v1161, %v1147
  %v1163 = vadd.f32 %v1162, %v1148
  %v1164 = vadd.f32 %v1163, %v1149
  %v1165 = vadd.f32 %v1164, %v1150
  %v1166 = vadd.f32 %v1165, %v1151
  %v1167 = vadd.f32 %v1166, %v1152
  %v1168 = vadd.f32 %v1167, %v1153
  %v1169 = vadd.f32 %v1168, %v1154
  %v1170 = vadd.f32 %v1169, %v1155
  %v1171 = vadd.f32 %v1170, %v1156
  %v1172 = vadd.f32 %v1171, %v1157
  %v1173 = vrot.slane %v1172, 4
  %v1174 = vadd.f32 %v1172, %v1173
  %v1175 = vrot.slane %v1174, 2
  %v1176 = vadd.f32 %v1174, %v1175
  %v1177 = vrot.slane %v1176, 1
  %v1178 = vadd.f32 %v1176, %v1177
  %v1179 = vlog2.pop %v1178
  %v1180 = vmul.f32 %v1179, 0.6931472
  %v1181 = vsub.f32 0.0, %v880
  %v1182 = vadd.f32 %v1181, %v1180
  %v1183 = vadd.f32 %v1182, 40.0
  %v1184 = vmax.f32 %v1183, 0.0
  %vm1185 = vcmp.gt.s32.totalorder %v820, %v824
  %v1186 = vsel %vm1185, %v820, %v824
  %vm1187 = vcmp.gt.s32.totalorder %v821, %v825
  %v1188 = vsel %vm1187, %v821, %v825
  %vm1189 = vcmp.gt.s32.totalorder %v822, %v826
  %v1190 = vsel %vm1189, %v822, %v826
  %vm1191 = vcmp.gt.s32.totalorder %v823, %v827
  %v1192 = vsel %vm1191, %v823, %v827
  %vm1193 = vcmp.gt.s32.totalorder %v1186, %v828
  %v1194 = vsel %vm1193, %v1186, %v828
  %vm1195 = vcmp.gt.s32.totalorder %v1188, %v829
  %v1196 = vsel %vm1195, %v1188, %v829
  %vm1197 = vcmp.gt.s32.totalorder %v1190, %v830
  %v1198 = vsel %vm1197, %v1190, %v830
  %vm1199 = vcmp.gt.s32.totalorder %v1192, %v831
  %v1200 = vsel %vm1199, %v1192, %v831
  %vm1201 = vcmp.gt.s32.totalorder %v1194, %v832
  %v1202 = vsel %vm1201, %v1194, %v832
  %vm1203 = vcmp.gt.s32.totalorder %v1196, %v833
  %v1204 = vsel %vm1203, %v1196, %v833
  %vm1205 = vcmp.gt.s32.totalorder %v1198, %v834
  %v1206 = vsel %vm1205, %v1198, %v834
  %vm1207 = vcmp.gt.s32.totalorder %v1200, %v835
  %v1208 = vsel %vm1207, %v1200, %v835
  %vm1209 = vcmp.gt.s32.totalorder %v1202, %v1204
  %v1210 = vsel %vm1209, %v1202, %v1204
  %vm1211 = vcmp.gt.s32.totalorder %v1206, %v1208
  %v1212 = vsel %vm1211, %v1206, %v1208
  %vm1213 = vcmp.gt.s32.totalorder %v1210, %v1212
  %v1214 = vsel %vm1213, %v1210, %v1212
  %v1215 = vrot.slane %v1214, 4
  %vm1216 = vcmp.gt.s32.totalorder %v1214, %v1215
  %v1217 = vsel %vm1216, %v1214, %v1215
  %v1218 = vrot.slane %v1217, 2
  %vm1219 = vcmp.gt.s32.totalorder %v1217, %v1218
  %v1220 = vsel %vm1219, %v1217, %v1218
  %v1221 = vrot.slane %v1220, 1
  %vm1222 = vcmp.gt.s32.totalorder %v1220, %v1221
  %v1223 = vsel %vm1222, %v1220, %v1221
  %vm1224 = vcmp.ge.s32.totalorder %v1223, 0
  %v1225 = vand.u32 %v1223, 4294967168
  %v1227 = vlog2.pop %v1225
  %v1228 = vmul.f32 %v1227, 0.6931472
  %v1229 = vsel %vm1224, %v1228, -inf
  %vm1230 = vcmp.eq.s32.totalorder %v820, %v1223
  %vm1231 = vcmp.eq.s32.totalorder %v821, %v1223
  %vm1232 = vcmp.eq.s32.totalorder %v822, %v1223
  %vm1233 = vcmp.eq.s32.totalorder %v823, %v1223
  %vm1234 = vcmp.eq.s32.totalorder %v824, %v1223
  %vm1235 = vcmp.eq.s32.totalorder %v825, %v1223
  %vm1236 = vcmp.eq.s32.totalorder %v826, %v1223
  %vm1237 = vcmp.eq.s32.totalorder %v827, %v1223
  %vm1238 = vcmp.eq.s32.totalorder %v828, %v1223
  %vm1239 = vcmp.eq.s32.totalorder %v829, %v1223
  %vm1240 = vcmp.eq.s32.totalorder %v830, %v1223
  %vm1241 = vcmp.eq.s32.totalorder %v831, %v1223
  %vm1242 = vcmp.eq.s32.totalorder %v832, %v1223
  %vm1243 = vcmp.eq.s32.totalorder %v833, %v1223
  %vm1244 = vcmp.eq.s32.totalorder %v834, %v1223
  %vm1245 = vcmp.eq.s32.totalorder %v835, %v1223
  %v1246 = vsel %vm1230, 4294967295, %v820
  %v1247 = vsel %vm1231, 4294967295, %v821
  %v1248 = vsel %vm1232, 4294967295, %v822
  %v1249 = vsel %vm1233, 4294967295, %v823
  %v1250 = vsel %vm1234, 4294967295, %v824
  %v1251 = vsel %vm1235, 4294967295, %v825
  %v1252 = vsel %vm1236, 4294967295, %v826
  %v1253 = vsel %vm1237, 4294967295, %v827
  %v1254 = vsel %vm1238, 4294967295, %v828
  %v1255 = vsel %vm1239, 4294967295, %v829
  %v1256 = vsel %vm1240, 4294967295, %v830
  %v1257 = vsel %vm1241, 4294967295, %v831
  %v1258 = vsel %vm1242, 4294967295, %v832
  %v1259 = vsel %vm1243, 4294967295, %v833
  %v1260 = vsel %vm1244, 4294967295, %v834
  %v1261 = vsel %vm1245, 4294967295, %v835
  %vm1262 = vcmp.gt.s32.totalorder %v1246, %v1250
  %v1263 = vsel %vm1262, %v1246, %v1250
  %vm1264 = vcmp.gt.s32.totalorder %v1247, %v1251
  %v1265 = vsel %vm1264, %v1247, %v1251
  %vm1266 = vcmp.gt.s32.totalorder %v1248, %v1252
  %v1267 = vsel %vm1266, %v1248, %v1252
  %vm1268 = vcmp.gt.s32.totalorder %v1249, %v1253
  %v1269 = vsel %vm1268, %v1249, %v1253
  %vm1270 = vcmp.gt.s32.totalorder %v1263, %v1254
  %v1271 = vsel %vm1270, %v1263, %v1254
  %vm1272 = vcmp.gt.s32.totalorder %v1265, %v1255
  %v1273 = vsel %vm1272, %v1265, %v1255
  %vm1274 = vcmp.gt.s32.totalorder %v1267, %v1256
  %v1275 = vsel %vm1274, %v1267, %v1256
  %vm1276 = vcmp.gt.s32.totalorder %v1269, %v1257
  %v1277 = vsel %vm1276, %v1269, %v1257
  %vm1278 = vcmp.gt.s32.totalorder %v1271, %v1258
  %v1279 = vsel %vm1278, %v1271, %v1258
  %vm1280 = vcmp.gt.s32.totalorder %v1273, %v1259
  %v1281 = vsel %vm1280, %v1273, %v1259
  %vm1282 = vcmp.gt.s32.totalorder %v1275, %v1260
  %v1283 = vsel %vm1282, %v1275, %v1260
  %vm1284 = vcmp.gt.s32.totalorder %v1277, %v1261
  %v1285 = vsel %vm1284, %v1277, %v1261
  %vm1286 = vcmp.gt.s32.totalorder %v1279, %v1281
  %v1287 = vsel %vm1286, %v1279, %v1281
  %vm1288 = vcmp.gt.s32.totalorder %v1283, %v1285
  %v1289 = vsel %vm1288, %v1283, %v1285
  %vm1290 = vcmp.gt.s32.totalorder %v1287, %v1289
  %v1291 = vsel %vm1290, %v1287, %v1289
  %v1292 = vrot.slane %v1291, 4
  %vm1293 = vcmp.gt.s32.totalorder %v1291, %v1292
  %v1294 = vsel %vm1293, %v1291, %v1292
  %v1295 = vrot.slane %v1294, 2
  %vm1296 = vcmp.gt.s32.totalorder %v1294, %v1295
  %v1297 = vsel %vm1296, %v1294, %v1295
  %v1298 = vrot.slane %v1297, 1
  %vm1299 = vcmp.gt.s32.totalorder %v1297, %v1298
  %v1300 = vsel %vm1299, %v1297, %v1298
  %vm1301 = vcmp.eq.s32.totalorder %v1246, %v1300
  %vm1302 = vcmp.eq.s32.totalorder %v1247, %v1300
  %vm1303 = vcmp.eq.s32.totalorder %v1248, %v1300
  %vm1304 = vcmp.eq.s32.totalorder %v1249, %v1300
  %vm1305 = vcmp.eq.s32.totalorder %v1250, %v1300
  %vm1306 = vcmp.eq.s32.totalorder %v1251, %v1300
  %vm1307 = vcmp.eq.s32.totalorder %v1252, %v1300
  %vm1308 = vcmp.eq.s32.totalorder %v1253, %v1300
  %vm1309 = vcmp.eq.s32.totalorder %v1254, %v1300
  %vm1310 = vcmp.eq.s32.totalorder %v1255, %v1300
  %vm1311 = vcmp.eq.s32.totalorder %v1256, %v1300
  %vm1312 = vcmp.eq.s32.totalorder %v1257, %v1300
  %vm1313 = vcmp.eq.s32.totalorder %v1258, %v1300
  %vm1314 = vcmp.eq.s32.totalorder %v1259, %v1300
  %vm1315 = vcmp.eq.s32.totalorder %v1260, %v1300
  %vm1316 = vcmp.eq.s32.totalorder %v1261, %v1300
  %v1317 = vsel %vm1301, 4294967295, %v1246
  %v1318 = vsel %vm1302, 4294967295, %v1247
  %v1319 = vsel %vm1303, 4294967295, %v1248
  %v1320 = vsel %vm1304, 4294967295, %v1249
  %v1321 = vsel %vm1305, 4294967295, %v1250
  %v1322 = vsel %vm1306, 4294967295, %v1251
  %v1323 = vsel %vm1307, 4294967295, %v1252
  %v1324 = vsel %vm1308, 4294967295, %v1253
  %v1325 = vsel %vm1309, 4294967295, %v1254
  %v1326 = vsel %vm1310, 4294967295, %v1255
  %v1327 = vsel %vm1311, 4294967295, %v1256
  %v1328 = vsel %vm1312, 4294967295, %v1257
  %v1329 = vsel %vm1313, 4294967295, %v1258
  %v1330 = vsel %vm1314, 4294967295, %v1259
  %v1331 = vsel %vm1315, 4294967295, %v1260
  %v1332 = vsel %vm1316, 4294967295, %v1261
  %vm1333 = vcmp.gt.s32.totalorder %v1317, %v1321
  %v1334 = vsel %vm1333, %v1317, %v1321
  %vm1335 = vcmp.gt.s32.totalorder %v1318, %v1322
  %v1336 = vsel %vm1335, %v1318, %v1322
  %vm1337 = vcmp.gt.s32.totalorder %v1319, %v1323
  %v1338 = vsel %vm1337, %v1319, %v1323
  %vm1339 = vcmp.gt.s32.totalorder %v1320, %v1324
  %v1340 = vsel %vm1339, %v1320, %v1324
  %vm1341 = vcmp.gt.s32.totalorder %v1334, %v1325
  %v1342 = vsel %vm1341, %v1334, %v1325
  %vm1343 = vcmp.gt.s32.totalorder %v1336, %v1326
  %v1344 = vsel %vm1343, %v1336, %v1326
  %vm1345 = vcmp.gt.s32.totalorder %v1338, %v1327
  %v1346 = vsel %vm1345, %v1338, %v1327
  %vm1347 = vcmp.gt.s32.totalorder %v1340, %v1328
  %v1348 = vsel %vm1347, %v1340, %v1328
  %vm1349 = vcmp.gt.s32.totalorder %v1342, %v1329
  %v1350 = vsel %vm1349, %v1342, %v1329
  %vm1351 = vcmp.gt.s32.totalorder %v1344, %v1330
  %v1352 = vsel %vm1351, %v1344, %v1330
  %vm1353 = vcmp.gt.s32.totalorder %v1346, %v1331
  %v1354 = vsel %vm1353, %v1346, %v1331
  %vm1355 = vcmp.gt.s32.totalorder %v1348, %v1332
  %v1356 = vsel %vm1355, %v1348, %v1332
  %vm1357 = vcmp.gt.s32.totalorder %v1350, %v1352
  %v1358 = vsel %vm1357, %v1350, %v1352
  %vm1359 = vcmp.gt.s32.totalorder %v1354, %v1356
  %v1360 = vsel %vm1359, %v1354, %v1356
  %vm1361 = vcmp.gt.s32.totalorder %v1358, %v1360
  %v1362 = vsel %vm1361, %v1358, %v1360
  %v1363 = vrot.slane %v1362, 4
  %vm1364 = vcmp.gt.s32.totalorder %v1362, %v1363
  %v1365 = vsel %vm1364, %v1362, %v1363
  %v1366 = vrot.slane %v1365, 2
  %vm1367 = vcmp.gt.s32.totalorder %v1365, %v1366
  %v1368 = vsel %vm1367, %v1365, %v1366
  %v1369 = vrot.slane %v1368, 1
  %vm1370 = vcmp.gt.s32.totalorder %v1368, %v1369
  %v1371 = vsel %vm1370, %v1368, %v1369
  %vm1372 = vcmp.eq.s32.totalorder %v1317, %v1371
  %vm1373 = vcmp.eq.s32.totalorder %v1318, %v1371
  %vm1374 = vcmp.eq.s32.totalorder %v1319, %v1371
  %vm1375 = vcmp.eq.s32.totalorder %v1320, %v1371
  %vm1376 = vcmp.eq.s32.totalorder %v1321, %v1371
  %vm1377 = vcmp.eq.s32.totalorder %v1322, %v1371
  %vm1378 = vcmp.eq.s32.totalorder %v1323, %v1371
  %vm1379 = vcmp.eq.s32.totalorder %v1324, %v1371
  %vm1380 = vcmp.eq.s32.totalorder %v1325, %v1371
  %vm1381 = vcmp.eq.s32.totalorder %v1326, %v1371
  %vm1382 = vcmp.eq.s32.totalorder %v1327, %v1371
  %vm1383 = vcmp.eq.s32.totalorder %v1328, %v1371
  %vm1384 = vcmp.eq.s32.totalorder %v1329, %v1371
  %vm1385 = vcmp.eq.s32.totalorder %v1330, %v1371
  %vm1386 = vcmp.eq.s32.totalorder %v1331, %v1371
  %vm1387 = vcmp.eq.s32.totalorder %v1332, %v1371
  %v1388 = vsel %vm1372, 4294967295, %v1317
  %v1389 = vsel %vm1373, 4294967295, %v1318
  %v1390 = vsel %vm1374, 4294967295, %v1319
  %v1391 = vsel %vm1375, 4294967295, %v1320
  %v1392 = vsel %vm1376, 4294967295, %v1321
  %v1393 = vsel %vm1377, 4294967295, %v1322
  %v1394 = vsel %vm1378, 4294967295, %v1323
  %v1395 = vsel %vm1379, 4294967295, %v1324
  %v1396 = vsel %vm1380, 4294967295, %v1325
  %v1397 = vsel %vm1381, 4294967295, %v1326
  %v1398 = vsel %vm1382, 4294967295, %v1327
  %v1399 = vsel %vm1383, 4294967295, %v1328
  %v1400 = vsel %vm1384, 4294967295, %v1329
  %v1401 = vsel %vm1385, 4294967295, %v1330
  %v1402 = vsel %vm1386, 4294967295, %v1331
  %v1403 = vsel %vm1387, 4294967295, %v1332
  %vm1404 = vcmp.gt.s32.totalorder %v1388, %v1392
  %v1405 = vsel %vm1404, %v1388, %v1392
  %vm1406 = vcmp.gt.s32.totalorder %v1389, %v1393
  %v1407 = vsel %vm1406, %v1389, %v1393
  %vm1408 = vcmp.gt.s32.totalorder %v1390, %v1394
  %v1409 = vsel %vm1408, %v1390, %v1394
  %vm1410 = vcmp.gt.s32.totalorder %v1391, %v1395
  %v1411 = vsel %vm1410, %v1391, %v1395
  %vm1412 = vcmp.gt.s32.totalorder %v1405, %v1396
  %v1413 = vsel %vm1412, %v1405, %v1396
  %vm1414 = vcmp.gt.s32.totalorder %v1407, %v1397
  %v1415 = vsel %vm1414, %v1407, %v1397
  %vm1416 = vcmp.gt.s32.totalorder %v1409, %v1398
  %v1417 = vsel %vm1416, %v1409, %v1398
  %vm1418 = vcmp.gt.s32.totalorder %v1411, %v1399
  %v1419 = vsel %vm1418, %v1411, %v1399
  %vm1420 = vcmp.gt.s32.totalorder %v1413, %v1400
  %v1421 = vsel %vm1420, %v1413, %v1400
  %vm1422 = vcmp.gt.s32.totalorder %v1415, %v1401
  %v1423 = vsel %vm1422, %v1415, %v1401
  %vm1424 = vcmp.gt.s32.totalorder %v1417, %v1402
  %v1425 = vsel %vm1424, %v1417, %v1402
  %vm1426 = vcmp.gt.s32.totalorder %v1419, %v1403
  %v1427 = vsel %vm1426, %v1419, %v1403
  %vm1428 = vcmp.gt.s32.totalorder %v1421, %v1423
  %v1429 = vsel %vm1428, %v1421, %v1423
  %vm1430 = vcmp.gt.s32.totalorder %v1425, %v1427
  %v1431 = vsel %vm1430, %v1425, %v1427
  %vm1432 = vcmp.gt.s32.totalorder %v1429, %v1431
  %v1433 = vsel %vm1432, %v1429, %v1431
  %v1434 = vrot.slane %v1433, 4
  %vm1435 = vcmp.gt.s32.totalorder %v1433, %v1434
  %v1436 = vsel %vm1435, %v1433, %v1434
  %v1437 = vrot.slane %v1436, 2
  %vm1438 = vcmp.gt.s32.totalorder %v1436, %v1437
  %v1439 = vsel %vm1438, %v1436, %v1437
  %v1440 = vrot.slane %v1439, 1
  %vm1441 = vcmp.gt.s32.totalorder %v1439, %v1440
  %v1442 = vsel %vm1441, %v1439, %v1440
  %vm1443 = vcmp.eq.s32.totalorder %v1388, %v1442
  %vm1444 = vcmp.eq.s32.totalorder %v1389, %v1442
  %vm1445 = vcmp.eq.s32.totalorder %v1390, %v1442
  %vm1446 = vcmp.eq.s32.totalorder %v1391, %v1442
  %vm1447 = vcmp.eq.s32.totalorder %v1392, %v1442
  %vm1448 = vcmp.eq.s32.totalorder %v1393, %v1442
  %vm1449 = vcmp.eq.s32.totalorder %v1394, %v1442
  %vm1450 = vcmp.eq.s32.totalorder %v1395, %v1442
  %vm1451 = vcmp.eq.s32.totalorder %v1396, %v1442
  %vm1452 = vcmp.eq.s32.totalorder %v1397, %v1442
  %vm1453 = vcmp.eq.s32.totalorder %v1398, %v1442
  %vm1454 = vcmp.eq.s32.totalorder %v1399, %v1442
  %vm1455 = vcmp.eq.s32.totalorder %v1400, %v1442
  %vm1456 = vcmp.eq.s32.totalorder %v1401, %v1442
  %vm1457 = vcmp.eq.s32.totalorder %v1402, %v1442
  %vm1458 = vcmp.eq.s32.totalorder %v1403, %v1442
  %v1459 = vsel %vm1443, 4294967295, %v1388
  %v1460 = vsel %vm1444, 4294967295, %v1389
  %v1461 = vsel %vm1445, 4294967295, %v1390
  %v1462 = vsel %vm1446, 4294967295, %v1391
  %v1463 = vsel %vm1447, 4294967295, %v1392
  %v1464 = vsel %vm1448, 4294967295, %v1393
  %v1465 = vsel %vm1449, 4294967295, %v1394
  %v1466 = vsel %vm1450, 4294967295, %v1395
  %v1467 = vsel %vm1451, 4294967295, %v1396
  %v1468 = vsel %vm1452, 4294967295, %v1397
  %v1469 = vsel %vm1453, 4294967295, %v1398
  %v1470 = vsel %vm1454, 4294967295, %v1399
  %v1471 = vsel %vm1455, 4294967295, %v1400
  %v1472 = vsel %vm1456, 4294967295, %v1401
  %v1473 = vsel %vm1457, 4294967295, %v1402
  %v1474 = vsel %vm1458, 4294967295, %v1403
  %vm1475 = vcmp.gt.s32.totalorder %v1459, %v1463
  %v1476 = vsel %vm1475, %v1459, %v1463
  %vm1477 = vcmp.gt.s32.totalorder %v1460, %v1464
  %v1478 = vsel %vm1477, %v1460, %v1464
  %vm1479 = vcmp.gt.s32.totalorder %v1461, %v1465
  %v1480 = vsel %vm1479, %v1461, %v1465
  %vm1481 = vcmp.gt.s32.totalorder %v1462, %v1466
  %v1482 = vsel %vm1481, %v1462, %v1466
  %vm1483 = vcmp.gt.s32.totalorder %v1476, %v1467
  %v1484 = vsel %vm1483, %v1476, %v1467
  %vm1485 = vcmp.gt.s32.totalorder %v1478, %v1468
  %v1486 = vsel %vm1485, %v1478, %v1468
  %vm1487 = vcmp.gt.s32.totalorder %v1480, %v1469
  %v1488 = vsel %vm1487, %v1480, %v1469
  %vm1489 = vcmp.gt.s32.totalorder %v1482, %v1470
  %v1490 = vsel %vm1489, %v1482, %v1470
  %vm1491 = vcmp.gt.s32.totalorder %v1484, %v1471
  %v1492 = vsel %vm1491, %v1484, %v1471
  %vm1493 = vcmp.gt.s32.totalorder %v1486, %v1472
  %v1494 = vsel %vm1493, %v1486, %v1472
  %vm1495 = vcmp.gt.s32.totalorder %v1488, %v1473
  %v1496 = vsel %vm1495, %v1488, %v1473
  %vm1497 = vcmp.gt.s32.totalorder %v1490, %v1474
  %v1498 = vsel %vm1497, %v1490, %v1474
  %vm1499 = vcmp.gt.s32.totalorder %v1492, %v1494
  %v1500 = vsel %vm1499, %v1492, %v1494
  %vm1501 = vcmp.gt.s32.totalorder %v1496, %v1498
  %v1502 = vsel %vm1501, %v1496, %v1498
  %vm1503 = vcmp.gt.s32.totalorder %v1500, %v1502
  %v1504 = vsel %vm1503, %v1500, %v1502
  %v1505 = vrot.slane %v1504, 4
  %vm1506 = vcmp.gt.s32.totalorder %v1504, %v1505
  %v1507 = vsel %vm1506, %v1504, %v1505
  %v1508 = vrot.slane %v1507, 2
  %vm1509 = vcmp.gt.s32.totalorder %v1507, %v1508
  %v1510 = vsel %vm1509, %v1507, %v1508
  %v1511 = vrot.slane %v1510, 1
  %vm1512 = vcmp.gt.s32.totalorder %v1510, %v1511
  %v1513 = vsel %vm1512, %v1510, %v1511
  %vm1514 = vcmp.eq.s32.totalorder %v1459, %v1513
  %vm1515 = vcmp.eq.s32.totalorder %v1460, %v1513
  %vm1516 = vcmp.eq.s32.totalorder %v1461, %v1513
  %vm1517 = vcmp.eq.s32.totalorder %v1462, %v1513
  %vm1518 = vcmp.eq.s32.totalorder %v1463, %v1513
  %vm1519 = vcmp.eq.s32.totalorder %v1464, %v1513
  %vm1520 = vcmp.eq.s32.totalorder %v1465, %v1513
  %vm1521 = vcmp.eq.s32.totalorder %v1466, %v1513
  %vm1522 = vcmp.eq.s32.totalorder %v1467, %v1513
  %vm1523 = vcmp.eq.s32.totalorder %v1468, %v1513
  %vm1524 = vcmp.eq.s32.totalorder %v1469, %v1513
  %vm1525 = vcmp.eq.s32.totalorder %v1470, %v1513
  %vm1526 = vcmp.eq.s32.totalorder %v1471, %v1513
  %vm1527 = vcmp.eq.s32.totalorder %v1472, %v1513
  %vm1528 = vcmp.eq.s32.totalorder %v1473, %v1513
  %vm1529 = vcmp.eq.s32.totalorder %v1474, %v1513
  %v1530 = vsel %vm1514, 4294967295, %v1459
  %v1531 = vsel %vm1515, 4294967295, %v1460
  %v1532 = vsel %vm1516, 4294967295, %v1461
  %v1533 = vsel %vm1517, 4294967295, %v1462
  %v1534 = vsel %vm1518, 4294967295, %v1463
  %v1535 = vsel %vm1519, 4294967295, %v1464
  %v1536 = vsel %vm1520, 4294967295, %v1465
  %v1537 = vsel %vm1521, 4294967295, %v1466
  %v1538 = vsel %vm1522, 4294967295, %v1467
  %v1539 = vsel %vm1523, 4294967295, %v1468
  %v1540 = vsel %vm1524, 4294967295, %v1469
  %v1541 = vsel %vm1525, 4294967295, %v1470
  %v1542 = vsel %vm1526, 4294967295, %v1471
  %v1543 = vsel %vm1527, 4294967295, %v1472
  %v1544 = vsel %vm1528, 4294967295, %v1473
  %v1545 = vsel %vm1529, 4294967295, %v1474
  %vm1546 = vcmp.gt.s32.totalorder %v1530, %v1534
  %v1547 = vsel %vm1546, %v1530, %v1534
  %vm1548 = vcmp.gt.s32.totalorder %v1531, %v1535
  %v1549 = vsel %vm1548, %v1531, %v1535
  %vm1550 = vcmp.gt.s32.totalorder %v1532, %v1536
  %v1551 = vsel %vm1550, %v1532, %v1536
  %vm1552 = vcmp.gt.s32.totalorder %v1533, %v1537
  %v1553 = vsel %vm1552, %v1533, %v1537
  %vm1554 = vcmp.gt.s32.totalorder %v1547, %v1538
  %v1555 = vsel %vm1554, %v1547, %v1538
  %vm1556 = vcmp.gt.s32.totalorder %v1549, %v1539
  %v1557 = vsel %vm1556, %v1549, %v1539
  %vm1558 = vcmp.gt.s32.totalorder %v1551, %v1540
  %v1559 = vsel %vm1558, %v1551, %v1540
  %vm1560 = vcmp.gt.s32.totalorder %v1553, %v1541
  %v1561 = vsel %vm1560, %v1553, %v1541
  %vm1562 = vcmp.gt.s32.totalorder %v1555, %v1542
  %v1563 = vsel %vm1562, %v1555, %v1542
  %vm1564 = vcmp.gt.s32.totalorder %v1557, %v1543
  %v1565 = vsel %vm1564, %v1557, %v1543
  %vm1566 = vcmp.gt.s32.totalorder %v1559, %v1544
  %v1567 = vsel %vm1566, %v1559, %v1544
  %vm1568 = vcmp.gt.s32.totalorder %v1561, %v1545
  %v1569 = vsel %vm1568, %v1561, %v1545
  %vm1570 = vcmp.gt.s32.totalorder %v1563, %v1565
  %v1571 = vsel %vm1570, %v1563, %v1565
  %vm1572 = vcmp.gt.s32.totalorder %v1567, %v1569
  %v1573 = vsel %vm1572, %v1567, %v1569
  %vm1574 = vcmp.gt.s32.totalorder %v1571, %v1573
  %v1575 = vsel %vm1574, %v1571, %v1573
  %v1576 = vrot.slane %v1575, 4
  %vm1577 = vcmp.gt.s32.totalorder %v1575, %v1576
  %v1578 = vsel %vm1577, %v1575, %v1576
  %v1579 = vrot.slane %v1578, 2
  %vm1580 = vcmp.gt.s32.totalorder %v1578, %v1579
  %v1581 = vsel %vm1580, %v1578, %v1579
  %v1582 = vrot.slane %v1581, 1
  %vm1583 = vcmp.gt.s32.totalorder %v1581, %v1582
  %v1584 = vsel %vm1583, %v1581, %v1582
  %vm1585 = vcmp.eq.s32.totalorder %v1530, %v1584
  %vm1586 = vcmp.eq.s32.totalorder %v1531, %v1584
  %vm1587 = vcmp.eq.s32.totalorder %v1532, %v1584
  %vm1588 = vcmp.eq.s32.totalorder %v1533, %v1584
  %vm1589 = vcmp.eq.s32.totalorder %v1534, %v1584
  %vm1590 = vcmp.eq.s32.totalorder %v1535, %v1584
  %vm1591 = vcmp.eq.s32.totalorder %v1536, %v1584
  %vm1592 = vcmp.eq.s32.totalorder %v1537, %v1584
  %vm1593 = vcmp.eq.s32.totalorder %v1538, %v1584
  %vm1594 = vcmp.eq.s32.totalorder %v1539, %v1584
  %vm1595 = vcmp.eq.s32.totalorder %v1540, %v1584
  %vm1596 = vcmp.eq.s32.totalorder %v1541, %v1584
  %vm1597 = vcmp.eq.s32.totalorder %v1542, %v1584
  %vm1598 = vcmp.eq.s32.totalorder %v1543, %v1584
  %vm1599 = vcmp.eq.s32.totalorder %v1544, %v1584
  %vm1600 = vcmp.eq.s32.totalorder %v1545, %v1584
  %v1601 = vsel %vm1585, 4294967295, %v1530
  %v1602 = vsel %vm1586, 4294967295, %v1531
  %v1603 = vsel %vm1587, 4294967295, %v1532
  %v1604 = vsel %vm1588, 4294967295, %v1533
  %v1605 = vsel %vm1589, 4294967295, %v1534
  %v1606 = vsel %vm1590, 4294967295, %v1535
  %v1607 = vsel %vm1591, 4294967295, %v1536
  %v1608 = vsel %vm1592, 4294967295, %v1537
  %v1609 = vsel %vm1593, 4294967295, %v1538
  %v1610 = vsel %vm1594, 4294967295, %v1539
  %v1611 = vsel %vm1595, 4294967295, %v1540
  %v1612 = vsel %vm1596, 4294967295, %v1541
  %v1613 = vsel %vm1597, 4294967295, %v1542
  %v1614 = vsel %vm1598, 4294967295, %v1543
  %v1615 = vsel %vm1599, 4294967295, %v1544
  %v1616 = vsel %vm1600, 4294967295, %v1545
  %vm1617 = vcmp.ge.s32.totalorder %v1601, 0
  %vm1618 = vcmp.ge.s32.totalorder %v1602, 0
  %vm1619 = vcmp.ge.s32.totalorder %v1603, 0
  %vm1620 = vcmp.ge.s32.totalorder %v1604, 0
  %vm1621 = vcmp.ge.s32.totalorder %v1605, 0
  %vm1622 = vcmp.ge.s32.totalorder %v1606, 0
  %vm1623 = vcmp.ge.s32.totalorder %v1607, 0
  %vm1624 = vcmp.ge.s32.totalorder %v1608, 0
  %vm1625 = vcmp.ge.s32.totalorder %v1609, 0
  %vm1626 = vcmp.ge.s32.totalorder %v1610, 0
  %vm1627 = vcmp.ge.s32.totalorder %v1611, 0
  %vm1628 = vcmp.ge.s32.totalorder %v1612, 0
  %vm1629 = vcmp.ge.s32.totalorder %v1613, 0
  %vm1630 = vcmp.ge.s32.totalorder %v1614, 0
  %vm1631 = vcmp.ge.s32.totalorder %v1615, 0
  %vm1632 = vcmp.ge.s32.totalorder %v1616, 0
  %v1633 = vsel %vm1617, %v611, 0.0
  %v1634 = vsel %vm1618, %v613, 0.0
  %v1635 = vsel %vm1619, %v615, 0.0
  %v1636 = vsel %vm1620, %v617, 0.0
  %v1637 = vsel %vm1621, %v619, 0.0
  %v1638 = vsel %vm1622, %v621, 0.0
  %v1639 = vsel %vm1623, %v623, 0.0
  %v1640 = vsel %vm1624, %v625, 0.0
  %v1641 = vsel %vm1625, %v627, 0.0
  %v1642 = vsel %vm1626, %v629, 0.0
  %v1643 = vsel %vm1627, %v631, 0.0
  %v1644 = vsel %vm1628, %v633, 0.0
  %v1645 = vsel %vm1629, %v635, 0.0
  %v1646 = vsel %vm1630, %v637, 0.0
  %v1647 = vsel %vm1631, %v639, 0.0
  %v1648 = vsel %vm1632, %v641, 0.0
  %v1649 = vadd.f32 %v1633, %v1634
  %v1650 = vadd.f32 %v1649, %v1635
  %v1651 = vadd.f32 %v1650, %v1636
  %v1652 = vadd.f32 %v1651, %v1637
  %v1653 = vadd.f32 %v1652, %v1638
  %v1654 = vadd.f32 %v1653, %v1639
  %v1655 = vadd.f32 %v1654, %v1640
  %v1656 = vadd.f32 %v1655, %v1641
  %v1657 = vadd.f32 %v1656, %v1642
  %v1658 = vadd.f32 %v1657, %v1643
  %v1659 = vadd.f32 %v1658, %v1644
  %v1660 = vadd.f32 %v1659, %v1645
  %v1661 = vadd.f32 %v1660, %v1646
  %v1662 = vadd.f32 %v1661, %v1647
  %v1663 = vadd.f32 %v1662, %v1648
  %v1664 = vrot.slane %v1663, 4
  %v1665 = vadd.f32 %v1663, %v1664
  %v1666 = vrot.slane %v1665, 2
  %v1667 = vadd.f32 %v1665, %v1666
  %v1668 = vrot.slane %v1667, 1
  %v1669 = vadd.f32 %v1667, %v1668
  %v1670 = vlog2.pop %v1669
  %v1671 = vmul.f32 %v1670, 0.6931472
  %v1672 = vsub.f32 0.0, %v1229
  %v1673 = vadd.f32 %v1672, %v1671
  %v1674 = vadd.f32 %v1673, 6.0
  %v1675 = vmax.f32 %v1674, 0.0
  %vm1676 = vcmp.lt.s32.totalorder %v221, 16
  %v1677 = vmul.f32 %v1675, 0.5
  %v1678 = vadd.f32 %v1184, %v1677
  %v1679 = vsel %vm1676, %v1678, 0.0
  %1680 = vst [vmem:[%s6] sm:$0x1] %v1679
  // Predicated region
  $region26: #{_ipfl_impl.1} parent=0 // pred_check
    _
  $region27: #{_ipfl_impl.1} parent=0 // pred_check_branch
    %1682 = sbr.rel (0) target = $region29
  $region28: #{_ipfl_impl.1} parent=0 // pred_region
    _
  $region29: #{_ipfl_impl.1} parent=0 // pred_fallthru
    _
  // Predicated region
  $region30: #{_ipfl_impl.1} parent=0 // pred_check
    _
  $region31: #{_ipfl_impl.1} parent=0 // pred_check_branch
    %1684 = sbr.rel (0) target = $region33
  $region32: #{_ipfl_impl.1} parent=0 // pred_region
    _
  $region33: #{_ipfl_impl.1} parent=0 // pred_fallthru
    _

</llo_original>
